<compile_context>
chip_gen: v7x
topology: tpu7x:2x2x1
jax: 0.10.0
libtpu: 0.0.40
codegen_flags: <defaults>
</compile_context>

<pallas_src>
import jax
import jax.numpy as jnp
from jax.experimental import pallas as pl
from jax.experimental.pallas import tpu as pltpu

MOL_DIM = 768
PROT_DIM = 1024
LAYER_DIMS = [1024, 512, 256, 128]
BN_EPS = 1e-5
COS_EPS = 1e-8
PARAMS_PER_LAYER = 4  # w, b, bn_gamma, bn_beta
PAD_DIM = max(MOL_DIM, PROT_DIM)  # common first-layer fan-in after zero-pad


# ---------------------------------------------------------------------------
# Kernels
# ---------------------------------------------------------------------------

def _dual_stack_kernel(x_ref, *rest):
    """One grid step == one full [Linear->ReLU->BN]x3 -> Linear->BN stack.

    grid=(2,): step 0 is the molecule stack, step 1 the protein stack.  With
    dimension_semantics=("parallel",) the two steps land on the two
    TensorCores on v7x; on single-TC chips step 1's weights prefetch while
    step 0 computes.
    """
    w_refs = rest[:-2]          # bf16 (D_in, D_out) weight per layer
    bn_ref = rest[-2]           # f32 (3*n_layers, PAD_DIM): rows = bias, gamma, beta
    emb_ref = rest[-1]          # f32 (B, 128) output embedding
    n_layers = len(w_refs)

    x = x_ref[...].astype(jnp.float32)            # activations stay f32
    for i, w_ref in enumerate(w_refs):
        dout = w_ref.shape[-1]
        # MXU matmul: bf16 operands, f32 accumulation.
        y = jnp.dot(x.astype(jnp.bfloat16), w_ref[...],
                    preferred_element_type=jnp.float32)
        if i < n_layers - 1:
            y = y + bn_ref[3 * i: 3 * i + 1, :dout]      # bias
            y = jnp.maximum(y, 0.0)                      # ReLU
        # else: final-layer bias is exactly cancelled by the BN below.
        gamma = bn_ref[3 * i + 1: 3 * i + 2, :dout]
        beta = bn_ref[3 * i + 2: 3 * i + 3, :dout]
        # BatchNorm1d, training mode: batch mean, biased variance (f32 math).
        mean = jnp.mean(y, axis=0, keepdims=True)
        var = jnp.mean(jnp.square(y - mean), axis=0, keepdims=True)
        x = (y - mean) * jax.lax.rsqrt(var + BN_EPS) * gamma + beta
    emb_ref[...] = x


def _cosine_kernel(emb_ref, out_ref):
    """out = -cosine_similarity(emb[0], emb[1], dim=1)[:, None]."""
    m = emb_ref[0]
    p = emb_ref[1]
    dot = jnp.sum(m * p, axis=-1, keepdims=True)
    m_norm = jnp.sqrt(jnp.sum(m * m, axis=-1, keepdims=True))
    p_norm = jnp.sqrt(jnp.sum(p * p, axis=-1, keepdims=True))
    denom = jnp.maximum(m_norm * p_norm, COS_EPS)
    out_ref[...] = -(dot / denom)


# ---------------------------------------------------------------------------
# Parameter construction / packing (done once, outside the hot path)
# ---------------------------------------------------------------------------

def init_linear(key, d_in, d_out):
    kw, kb = jax.random.split(key)
    bound = 1.0 / (d_in ** 0.5)          # matches torch.nn.Linear uniform init
    w = jax.random.uniform(kw, (d_in, d_out), jnp.float32, -bound, bound)
    b = jax.random.uniform(kb, (1, d_out), jnp.float32, -bound, bound)
    return w, b


def init_stack(key, dims):
    params = []
    keys = jax.random.split(key, len(dims) - 1)
    for i in range(len(dims) - 1):
        w, b = init_linear(keys[i], dims[i], dims[i + 1])
        gamma = jnp.ones((1, dims[i + 1]), jnp.float32)    # BN weight
        beta = jnp.zeros((1, dims[i + 1]), jnp.float32)    # BN bias
        params += [w, b, gamma, beta]
    return params


def pack_params(m_params, p_params):
    """Pack the two per-stack param lists into kernel operands.

    * per-layer weights stacked to (2, D_in, D_out) bf16 (molecule layer-0
      weight zero-padded 768 -> 1024 input rows, an exact no-op),
    * all bias / gamma / beta rows packed into one (2, 3*n_layers, PAD_DIM)
      f32 slab (one DMA instead of 24 tiny ones).
    """
    assert len(m_params) == len(p_params)
    n_layers = len(m_params) // PARAMS_PER_LAYER
    per = PARAMS_PER_LAYER

    w_stacked = []
    for i in range(n_layers):
        wm = m_params[i * per + 0]
        wp = p_params[i * per + 0]
        d_in = max(wm.shape[0], wp.shape[0])
        wm = jnp.pad(wm, ((0, d_in - wm.shape[0]), (0, 0)))
        wp = jnp.pad(wp, ((0, d_in - wp.shape[0]), (0, 0)))
        w_stacked.append(jnp.stack([wm, wp]).astype(jnp.bfloat16))

    def slab(params):
        rows = []
        for i in range(n_layers):
            d_out = params[i * per + 0].shape[1]
            for k in (1, 2, 3):  # bias, gamma, beta
                v = params[i * per + k].reshape(-1).astype(jnp.float32)
                rows.append(jnp.pad(v, (0, PAD_DIM - d_out)))
        return jnp.stack(rows)

    bn_slab = jnp.stack([slab(m_params), slab(p_params)])  # (2, 3*n, PAD_DIM)
    return w_stacked, bn_slab


# ---------------------------------------------------------------------------
# Forward
# ---------------------------------------------------------------------------

def protein_drug_forward(molecule, protein, w_stacked, bn_slab):
    B = molecule.shape[0]
    emb_dim = w_stacked[-1].shape[-1]

    # Zero-pad both inputs to a common fan-in so one kernel body serves both
    # stacks (the corresponding padded weight rows are zero -> exact).
    mol = jnp.pad(molecule.astype(jnp.float32),
                  ((0, 0), (0, PAD_DIM - molecule.shape[1])))
    prot = jnp.pad(protein.astype(jnp.float32),
                   ((0, 0), (0, PAD_DIM - protein.shape[1])))
    x = jnp.stack([mol, prot])                              # (2, B, PAD_DIM)

    operands = [x] + list(w_stacked) + [bn_slab]
    in_specs = [pl.BlockSpec((None,) + op.shape[1:], lambda s: (s, 0, 0))
                for op in operands]
    out_spec = pl.BlockSpec((None, B, emb_dim), lambda s: (s, 0, 0))

    # Scoped VMEM budget from real (double-buffered) block sizes, capped at
    # 48 MiB so it is always valid on v7x (64 MiB physical per TensorCore).
    block_bytes = sum(int(op.nbytes) // 2 for op in operands) + B * emb_dim * 4
    vmem_limit = int(min(48 << 20, max(32 << 20, 2 * block_bytes + (8 << 20))))

    emb = pl.pallas_call(
        _dual_stack_kernel,
        out_shape=jax.ShapeDtypeStruct((2, B, emb_dim), jnp.float32),
        grid=(2,),
        in_specs=in_specs,
        out_specs=out_spec,
        compiler_params=pltpu.CompilerParams(
            dimension_semantics=("parallel",),
            vmem_limit_bytes=vmem_limit),
    )(*operands)

    # Tiny epilogue: -cosine_similarity over the two (B, 128) embeddings.
    return pl.pallas_call(
        _cosine_kernel,
        out_shape=jax.ShapeDtypeStruct((B, 1), jnp.float32),
        in_specs=[pl.BlockSpec(memory_space=pltpu.MemorySpace.VMEM)],
        out_specs=pl.BlockSpec(memory_space=pltpu.MemorySpace.VMEM),
    )(emb)


# ---------------------------------------------------------------------------
# Pure-JAX f32 reference (original module semantics, incl. final-layer bias)
# ---------------------------------------------------------------------------

def reference_forward(molecule, protein, m_params, p_params):
    def stack(xin, params):
        n = len(params) // PARAMS_PER_LAYER
        xcur = xin
        for i in range(n):
            w, b, g, be = params[4 * i: 4 * i + 4]
            y = xcur @ w + b
            if i < n - 1:
                y = jnp.maximum(y, 0.0)
            mean = jnp.mean(y, axis=0, keepdims=True)
            var = jnp.mean(jnp.square(y - mean), axis=0, keepdims=True)
            xcur = (y - mean) * jax.lax.rsqrt(var + BN_EPS) * g + be
        return xcur

    m = stack(molecule, m_params)
    p = stack(protein, p_params)
    dot = jnp.sum(m * p, axis=-1, keepdims=True)
    denom = jnp.maximum(
        jnp.sqrt(jnp.sum(m * m, axis=-1, keepdims=True)) *
        jnp.sqrt(jnp.sum(p * p, axis=-1, keepdims=True)), COS_EPS)
    return -dot / denom


if __name__ == "__main__":
    key = jax.random.PRNGKey(0)
    k_mol, k_prot, k_m, k_p = jax.random.split(key, 4)

    B = 8  # small demo batch; deployment should batch to >=128/256 per call.
    molecule = jax.random.normal(k_mol, (B, MOL_DIM), jnp.float32)
    protein = jax.random.normal(k_prot, (B, PROT_DIM), jnp.float32)

    m_params = init_stack(k_m, [MOL_DIM] + LAYER_DIMS)
    p_params = init_stack(k_p, [PROT_DIM] + LAYER_DIMS)
    w_stacked, bn_slab = pack_params(m_params, p_params)

    out = protein_drug_forward(molecule, protein, w_stacked, bn_slab)
    out = jax.block_until_ready(out)

    assert out.shape == (B, 1), out.shape
    assert bool(jnp.all(jnp.isfinite(out)))

    # Correctness vs. the f32 reference (bf16-weight MXU path -> loose tol).
    ref = reference_forward(molecule, protein, m_params, p_params)
    max_err = float(jnp.max(jnp.abs(out - ref)))
    assert max_err < 5e-2, f"mismatch vs f32 reference: {max_err}"

    print("KERNEL_OK")
</pallas_src>

<mosaic_0001>
module attributes {stable_mosaic.version = 11 : i64} {
  func.func @_dual_stack_kernel(%arg0: i32, %arg1: memref<1x8x1024xf32, #tpu.memory_space<vmem>>, %arg2: memref<1x1024x1024xbf16, #tpu.memory_space<vmem>>, %arg3: memref<1x1024x512xbf16, #tpu.memory_space<vmem>>, %arg4: memref<1x512x256xbf16, #tpu.memory_space<vmem>>, %arg5: memref<1x256x128xbf16, #tpu.memory_space<vmem>>, %arg6: memref<1x12x1024xf32, #tpu.memory_space<vmem>>, %arg7: memref<1x8x128xf32, #tpu.memory_space<vmem>>) attributes {dimension_semantics = [#tpu.dimension_semantics<parallel>], iteration_bounds = array<i64: 2>, scalar_prefetch = 0 : i64, scratch_operands = 0 : i64, tpu.core_type = #tpu.core_type<tc>, window_params = [{transform_indices = @transform_0, window_bounds = array<i64: 1, 8, 1024>}, {transform_indices = @transform_1, window_bounds = array<i64: 1, 1024, 1024>}, {transform_indices = @transform_2, window_bounds = array<i64: 1, 1024, 512>}, {transform_indices = @transform_3, window_bounds = array<i64: 1, 512, 256>}, {transform_indices = @transform_4, window_bounds = array<i64: 1, 256, 128>}, {transform_indices = @transform_5, window_bounds = array<i64: 1, 12, 1024>}, {transform_indices = @transform_6, window_bounds = array<i64: 1, 8, 128>}]} {
    %c0 = arith.constant 0 : index
    %c0_0 = arith.constant 0 : index
    %c0_1 = arith.constant 0 : index
    %0 = vector.load %arg1[%c0, %c0_0, %c0_1] : memref<1x8x1024xf32, #tpu.memory_space<vmem>>, vector<1x8x1024xf32>
    %1 = vector.shape_cast %0 : vector<1x8x1024xf32> to vector<8x1024xf32>
    %2 = arith.truncf %1 : vector<8x1024xf32> to vector<8x1024xbf16>
    %c0_2 = arith.constant 0 : index
    %c0_3 = arith.constant 0 : index
    %c0_4 = arith.constant 0 : index
    %3 = vector.load %arg2[%c0_2, %c0_3, %c0_4] : memref<1x1024x1024xbf16, #tpu.memory_space<vmem>>, vector<1x1024x1024xbf16>
    %4 = vector.shape_cast %3 : vector<1x1024x1024xbf16> to vector<1024x1024xbf16>
    %cst = arith.constant dense<0.000000e+00> : vector<8x1024xf32>
    %5 = tpu.matmul %2, %4, %cst {dimension_numbers = #tpu.dot_dimension_numbers<[1], [0], [0], [1], [0, 0, 1, 1], [], []>} : vector<8x1024xbf16>, vector<1024x1024xbf16>, vector<8x1024xf32> -> vector<8x1024xf32>
    %c0_5 = arith.constant 0 : index
    %c0_6 = arith.constant 0 : index
    %c0_7 = arith.constant 0 : index
    %6 = vector.load %arg6[%c0_5, %c0_6, %c0_7] : memref<1x12x1024xf32, #tpu.memory_space<vmem>>, vector<1x1x1024xf32>
    %7 = vector.shape_cast %6 : vector<1x1x1024xf32> to vector<1x1024xf32>
    %8 = vector.broadcast %7 : vector<1x1024xf32> to vector<8x1024xf32>
    %9 = arith.addf %5, %8 : vector<8x1024xf32>
    %cst_8 = arith.constant 0.000000e+00 : f32
    %10 = vector.broadcast %cst_8 : f32 to vector<8x1024xf32>
    %11 = arith.maximumf %9, %10 : vector<8x1024xf32>
    %c0_9 = arith.constant 0 : index
    %c1 = arith.constant 1 : index
    %c0_10 = arith.constant 0 : index
    %12 = vector.load %arg6[%c0_9, %c1, %c0_10] : memref<1x12x1024xf32, #tpu.memory_space<vmem>>, vector<1x1x1024xf32>
    %13 = vector.shape_cast %12 : vector<1x1x1024xf32> to vector<1x1024xf32>
    %c0_11 = arith.constant 0 : index
    %c2 = arith.constant 2 : index
    %c0_12 = arith.constant 0 : index
    %14 = vector.load %arg6[%c0_11, %c2, %c0_12] : memref<1x12x1024xf32, #tpu.memory_space<vmem>>, vector<1x1x1024xf32>
    %15 = vector.shape_cast %14 : vector<1x1x1024xf32> to vector<1x1024xf32>
    %cst_13 = arith.constant dense<0.000000e+00> : vector<1024xf32>
    %16 = vector.multi_reduction <add>, %11, %cst_13 [0] : vector<8x1024xf32> to vector<1024xf32>
    %17 = vector.shape_cast %16 : vector<1024xf32> to vector<1x1024xf32>
    %cst_14 = arith.constant 8.000000e+00 : f32
    %18 = vector.broadcast %cst_14 : f32 to vector<1x1024xf32>
    %19 = arith.divf %17, %18 : vector<1x1024xf32>
    %20 = vector.broadcast %19 : vector<1x1024xf32> to vector<8x1024xf32>
    %21 = arith.subf %11, %20 : vector<8x1024xf32>
    %22 = arith.mulf %21, %21 : vector<8x1024xf32>
    %cst_15 = arith.constant dense<0.000000e+00> : vector<1024xf32>
    %23 = vector.multi_reduction <add>, %22, %cst_15 [0] : vector<8x1024xf32> to vector<1024xf32>
    %24 = vector.shape_cast %23 : vector<1024xf32> to vector<1x1024xf32>
    %cst_16 = arith.constant 8.000000e+00 : f32
    %25 = vector.broadcast %cst_16 : f32 to vector<1x1024xf32>
    %26 = arith.divf %24, %25 : vector<1x1024xf32>
    %27 = vector.broadcast %19 : vector<1x1024xf32> to vector<8x1024xf32>
    %28 = arith.subf %11, %27 : vector<8x1024xf32>
    %cst_17 = arith.constant 9.99999974E-6 : f32
    %29 = vector.broadcast %cst_17 : f32 to vector<1x1024xf32>
    %30 = arith.addf %26, %29 : vector<1x1024xf32>
    %31 = math.rsqrt %30 : vector<1x1024xf32>
    %32 = vector.broadcast %31 : vector<1x1024xf32> to vector<8x1024xf32>
    %33 = arith.mulf %28, %32 : vector<8x1024xf32>
    %34 = vector.broadcast %13 : vector<1x1024xf32> to vector<8x1024xf32>
    %35 = arith.mulf %33, %34 : vector<8x1024xf32>
    %36 = vector.broadcast %15 : vector<1x1024xf32> to vector<8x1024xf32>
    %37 = arith.addf %35, %36 : vector<8x1024xf32>
    %38 = arith.truncf %37 : vector<8x1024xf32> to vector<8x1024xbf16>
    %c0_18 = arith.constant 0 : index
    %c0_19 = arith.constant 0 : index
    %c0_20 = arith.constant 0 : index
    %39 = vector.load %arg3[%c0_18, %c0_19, %c0_20] : memref<1x1024x512xbf16, #tpu.memory_space<vmem>>, vector<1x1024x512xbf16>
    %40 = vector.shape_cast %39 : vector<1x1024x512xbf16> to vector<1024x512xbf16>
    %cst_21 = arith.constant dense<0.000000e+00> : vector<8x512xf32>
    %41 = tpu.matmul %38, %40, %cst_21 {dimension_numbers = #tpu.dot_dimension_numbers<[1], [0], [0], [1], [0, 0, 1, 1], [], []>} : vector<8x1024xbf16>, vector<1024x512xbf16>, vector<8x512xf32> -> vector<8x512xf32>
    %c0_22 = arith.constant 0 : index
    %c3 = arith.constant 3 : index
    %c0_23 = arith.constant 0 : index
    %42 = vector.load %arg6[%c0_22, %c3, %c0_23] : memref<1x12x1024xf32, #tpu.memory_space<vmem>>, vector<1x1x512xf32>
    %43 = vector.shape_cast %42 : vector<1x1x512xf32> to vector<1x512xf32>
    %44 = vector.broadcast %43 : vector<1x512xf32> to vector<8x512xf32>
    %45 = arith.addf %41, %44 : vector<8x512xf32>
    %cst_24 = arith.constant 0.000000e+00 : f32
    %46 = vector.broadcast %cst_24 : f32 to vector<8x512xf32>
    %47 = arith.maximumf %45, %46 : vector<8x512xf32>
    %c0_25 = arith.constant 0 : index
    %c4 = arith.constant 4 : index
    %c0_26 = arith.constant 0 : index
    %48 = vector.load %arg6[%c0_25, %c4, %c0_26] : memref<1x12x1024xf32, #tpu.memory_space<vmem>>, vector<1x1x512xf32>
    %49 = vector.shape_cast %48 : vector<1x1x512xf32> to vector<1x512xf32>
    %c0_27 = arith.constant 0 : index
    %c5 = arith.constant 5 : index
    %c0_28 = arith.constant 0 : index
    %50 = vector.load %arg6[%c0_27, %c5, %c0_28] : memref<1x12x1024xf32, #tpu.memory_space<vmem>>, vector<1x1x512xf32>
    %51 = vector.shape_cast %50 : vector<1x1x512xf32> to vector<1x512xf32>
    %cst_29 = arith.constant dense<0.000000e+00> : vector<512xf32>
    %52 = vector.multi_reduction <add>, %47, %cst_29 [0] : vector<8x512xf32> to vector<512xf32>
    %53 = vector.shape_cast %52 : vector<512xf32> to vector<1x512xf32>
    %cst_30 = arith.constant 8.000000e+00 : f32
    %54 = vector.broadcast %cst_30 : f32 to vector<1x512xf32>
    %55 = arith.divf %53, %54 : vector<1x512xf32>
    %56 = vector.broadcast %55 : vector<1x512xf32> to vector<8x512xf32>
    %57 = arith.subf %47, %56 : vector<8x512xf32>
    %58 = arith.mulf %57, %57 : vector<8x512xf32>
    %cst_31 = arith.constant dense<0.000000e+00> : vector<512xf32>
    %59 = vector.multi_reduction <add>, %58, %cst_31 [0] : vector<8x512xf32> to vector<512xf32>
    %60 = vector.shape_cast %59 : vector<512xf32> to vector<1x512xf32>
    %cst_32 = arith.constant 8.000000e+00 : f32
    %61 = vector.broadcast %cst_32 : f32 to vector<1x512xf32>
    %62 = arith.divf %60, %61 : vector<1x512xf32>
    %63 = vector.broadcast %55 : vector<1x512xf32> to vector<8x512xf32>
    %64 = arith.subf %47, %63 : vector<8x512xf32>
    %cst_33 = arith.constant 9.99999974E-6 : f32
    %65 = vector.broadcast %cst_33 : f32 to vector<1x512xf32>
    %66 = arith.addf %62, %65 : vector<1x512xf32>
    %67 = math.rsqrt %66 : vector<1x512xf32>
    %68 = vector.broadcast %67 : vector<1x512xf32> to vector<8x512xf32>
    %69 = arith.mulf %64, %68 : vector<8x512xf32>
    %70 = vector.broadcast %49 : vector<1x512xf32> to vector<8x512xf32>
    %71 = arith.mulf %69, %70 : vector<8x512xf32>
    %72 = vector.broadcast %51 : vector<1x512xf32> to vector<8x512xf32>
    %73 = arith.addf %71, %72 : vector<8x512xf32>
    %74 = arith.truncf %73 : vector<8x512xf32> to vector<8x512xbf16>
    %c0_34 = arith.constant 0 : index
    %c0_35 = arith.constant 0 : index
    %c0_36 = arith.constant 0 : index
    %75 = vector.load %arg4[%c0_34, %c0_35, %c0_36] : memref<1x512x256xbf16, #tpu.memory_space<vmem>>, vector<1x512x256xbf16>
    %76 = vector.shape_cast %75 : vector<1x512x256xbf16> to vector<512x256xbf16>
    %cst_37 = arith.constant dense<0.000000e+00> : vector<8x256xf32>
    %77 = tpu.matmul %74, %76, %cst_37 {dimension_numbers = #tpu.dot_dimension_numbers<[1], [0], [0], [1], [0, 0, 1, 1], [], []>} : vector<8x512xbf16>, vector<512x256xbf16>, vector<8x256xf32> -> vector<8x256xf32>
    %c0_38 = arith.constant 0 : index
    %c6 = arith.constant 6 : index
    %c0_39 = arith.constant 0 : index
    %78 = vector.load %arg6[%c0_38, %c6, %c0_39] : memref<1x12x1024xf32, #tpu.memory_space<vmem>>, vector<1x1x256xf32>
    %79 = vector.shape_cast %78 : vector<1x1x256xf32> to vector<1x256xf32>
    %80 = vector.broadcast %79 : vector<1x256xf32> to vector<8x256xf32>
    %81 = arith.addf %77, %80 : vector<8x256xf32>
    %cst_40 = arith.constant 0.000000e+00 : f32
    %82 = vector.broadcast %cst_40 : f32 to vector<8x256xf32>
    %83 = arith.maximumf %81, %82 : vector<8x256xf32>
    %c0_41 = arith.constant 0 : index
    %c7 = arith.constant 7 : index
    %c0_42 = arith.constant 0 : index
    %84 = vector.load %arg6[%c0_41, %c7, %c0_42] : memref<1x12x1024xf32, #tpu.memory_space<vmem>>, vector<1x1x256xf32>
    %85 = vector.shape_cast %84 : vector<1x1x256xf32> to vector<1x256xf32>
    %c0_43 = arith.constant 0 : index
    %c8 = arith.constant 8 : index
    %c0_44 = arith.constant 0 : index
    %86 = vector.load %arg6[%c0_43, %c8, %c0_44] : memref<1x12x1024xf32, #tpu.memory_space<vmem>>, vector<1x1x256xf32>
    %87 = vector.shape_cast %86 : vector<1x1x256xf32> to vector<1x256xf32>
    %cst_45 = arith.constant dense<0.000000e+00> : vector<256xf32>
    %88 = vector.multi_reduction <add>, %83, %cst_45 [0] : vector<8x256xf32> to vector<256xf32>
    %89 = vector.shape_cast %88 : vector<256xf32> to vector<1x256xf32>
    %cst_46 = arith.constant 8.000000e+00 : f32
    %90 = vector.broadcast %cst_46 : f32 to vector<1x256xf32>
    %91 = arith.divf %89, %90 : vector<1x256xf32>
    %92 = vector.broadcast %91 : vector<1x256xf32> to vector<8x256xf32>
    %93 = arith.subf %83, %92 : vector<8x256xf32>
    %94 = arith.mulf %93, %93 : vector<8x256xf32>
    %cst_47 = arith.constant dense<0.000000e+00> : vector<256xf32>
    %95 = vector.multi_reduction <add>, %94, %cst_47 [0] : vector<8x256xf32> to vector<256xf32>
    %96 = vector.shape_cast %95 : vector<256xf32> to vector<1x256xf32>
    %cst_48 = arith.constant 8.000000e+00 : f32
    %97 = vector.broadcast %cst_48 : f32 to vector<1x256xf32>
    %98 = arith.divf %96, %97 : vector<1x256xf32>
    %99 = vector.broadcast %91 : vector<1x256xf32> to vector<8x256xf32>
    %100 = arith.subf %83, %99 : vector<8x256xf32>
    %cst_49 = arith.constant 9.99999974E-6 : f32
    %101 = vector.broadcast %cst_49 : f32 to vector<1x256xf32>
    %102 = arith.addf %98, %101 : vector<1x256xf32>
    %103 = math.rsqrt %102 : vector<1x256xf32>
    %104 = vector.broadcast %103 : vector<1x256xf32> to vector<8x256xf32>
    %105 = arith.mulf %100, %104 : vector<8x256xf32>
    %106 = vector.broadcast %85 : vector<1x256xf32> to vector<8x256xf32>
    %107 = arith.mulf %105, %106 : vector<8x256xf32>
    %108 = vector.broadcast %87 : vector<1x256xf32> to vector<8x256xf32>
    %109 = arith.addf %107, %108 : vector<8x256xf32>
    %110 = arith.truncf %109 : vector<8x256xf32> to vector<8x256xbf16>
    %c0_50 = arith.constant 0 : index
    %c0_51 = arith.constant 0 : index
    %c0_52 = arith.constant 0 : index
    %111 = vector.load %arg5[%c0_50, %c0_51, %c0_52] : memref<1x256x128xbf16, #tpu.memory_space<vmem>>, vector<1x256x128xbf16>
    %112 = vector.shape_cast %111 : vector<1x256x128xbf16> to vector<256x128xbf16>
    %cst_53 = arith.constant dense<0.000000e+00> : vector<8x128xf32>
    %113 = tpu.matmul %110, %112, %cst_53 {dimension_numbers = #tpu.dot_dimension_numbers<[1], [0], [0], [1], [0, 0, 1, 1], [], []>} : vector<8x256xbf16>, vector<256x128xbf16>, vector<8x128xf32> -> vector<8x128xf32>
    %c0_54 = arith.constant 0 : index
    %c10 = arith.constant 10 : index
    %c0_55 = arith.constant 0 : index
    %114 = vector.load %arg6[%c0_54, %c10, %c0_55] : memref<1x12x1024xf32, #tpu.memory_space<vmem>>, vector<1x1x128xf32>
    %115 = vector.shape_cast %114 : vector<1x1x128xf32> to vector<1x128xf32>
    %c0_56 = arith.constant 0 : index
    %c11 = arith.constant 11 : index
    %c0_57 = arith.constant 0 : index
    %116 = vector.load %arg6[%c0_56, %c11, %c0_57] : memref<1x12x1024xf32, #tpu.memory_space<vmem>>, vector<1x1x128xf32>
    %117 = vector.shape_cast %116 : vector<1x1x128xf32> to vector<1x128xf32>
    %cst_58 = arith.constant dense<0.000000e+00> : vector<128xf32>
    %118 = vector.multi_reduction <add>, %113, %cst_58 [0] : vector<8x128xf32> to vector<128xf32>
    %119 = vector.shape_cast %118 : vector<128xf32> to vector<1x128xf32>
    %cst_59 = arith.constant 8.000000e+00 : f32
    %120 = vector.broadcast %cst_59 : f32 to vector<1x128xf32>
    %121 = arith.divf %119, %120 : vector<1x128xf32>
    %122 = vector.broadcast %121 : vector<1x128xf32> to vector<8x128xf32>
    %123 = arith.subf %113, %122 : vector<8x128xf32>
    %124 = arith.mulf %123, %123 : vector<8x128xf32>
    %cst_60 = arith.constant dense<0.000000e+00> : vector<128xf32>
    %125 = vector.multi_reduction <add>, %124, %cst_60 [0] : vector<8x128xf32> to vector<128xf32>
    %126 = vector.shape_cast %125 : vector<128xf32> to vector<1x128xf32>
    %cst_61 = arith.constant 8.000000e+00 : f32
    %127 = vector.broadcast %cst_61 : f32 to vector<1x128xf32>
    %128 = arith.divf %126, %127 : vector<1x128xf32>
    %129 = vector.broadcast %121 : vector<1x128xf32> to vector<8x128xf32>
    %130 = arith.subf %113, %129 : vector<8x128xf32>
    %cst_62 = arith.constant 9.99999974E-6 : f32
    %131 = vector.broadcast %cst_62 : f32 to vector<1x128xf32>
    %132 = arith.addf %128, %131 : vector<1x128xf32>
    %133 = math.rsqrt %132 : vector<1x128xf32>
    %134 = vector.broadcast %133 : vector<1x128xf32> to vector<8x128xf32>
    %135 = arith.mulf %130, %134 : vector<8x128xf32>
    %136 = vector.broadcast %115 : vector<1x128xf32> to vector<8x128xf32>
    %137 = arith.mulf %135, %136 : vector<8x128xf32>
    %138 = vector.broadcast %117 : vector<1x128xf32> to vector<8x128xf32>
    %139 = arith.addf %137, %138 : vector<8x128xf32>
    %c0_63 = arith.constant 0 : index
    %c0_64 = arith.constant 0 : index
    %c0_65 = arith.constant 0 : index
    %140 = vector.load %arg7[%c0_63, %c0_64, %c0_65] : memref<1x8x128xf32, #tpu.memory_space<vmem>>, vector<1x8x128xf32>
    %141 = vector.shape_cast %140 : vector<1x8x128xf32> to vector<8x128xf32>
    %142 = vector.shape_cast %139 : vector<8x128xf32> to vector<1x8x128xf32>
    tpu.vector_store %arg7[%c0_63, %c0_64, %c0_65], %142 {strides = array<i32>} : memref<1x8x128xf32, #tpu.memory_space<vmem>>, vector<1x8x128xf32>,
    return
  }
  func.func @transform_0(%arg0: i32) -> (i32, i32, i32) {
    %c0_i32 = arith.constant 0 : i32
    %c0_i32_0 = arith.constant 0 : i32
    %c0_i32_1 = arith.constant 0 : i32
    return %arg0, %c0_i32, %c0_i32_0 : i32, i32, i32
  }
  func.func @transform_1(%arg0: i32) -> (i32, i32, i32) {
    %c0_i32 = arith.constant 0 : i32
    %c0_i32_0 = arith.constant 0 : i32
    %c0_i32_1 = arith.constant 0 : i32
    return %arg0, %c0_i32, %c0_i32_0 : i32, i32, i32
  }
  func.func @transform_2(%arg0: i32) -> (i32, i32, i32) {
    %c0_i32 = arith.constant 0 : i32
    %c0_i32_0 = arith.constant 0 : i32
    %c0_i32_1 = arith.constant 0 : i32
    return %arg0, %c0_i32, %c0_i32_0 : i32, i32, i32
  }
  func.func @transform_3(%arg0: i32) -> (i32, i32, i32) {
    %c0_i32 = arith.constant 0 : i32
    %c0_i32_0 = arith.constant 0 : i32
    %c0_i32_1 = arith.constant 0 : i32
    return %arg0, %c0_i32, %c0_i32_0 : i32, i32, i32
  }
  func.func @transform_4(%arg0: i32) -> (i32, i32, i32) {
    %c0_i32 = arith.constant 0 : i32
    %c0_i32_0 = arith.constant 0 : i32
    %c0_i32_1 = arith.constant 0 : i32
    return %arg0, %c0_i32, %c0_i32_0 : i32, i32, i32
  }
  func.func @transform_5(%arg0: i32) -> (i32, i32, i32) {
    %c0_i32 = arith.constant 0 : i32
    %c0_i32_0 = arith.constant 0 : i32
    %c0_i32_1 = arith.constant 0 : i32
    return %arg0, %c0_i32, %c0_i32_0 : i32, i32, i32
  }
  func.func @transform_6(%arg0: i32) -> (i32, i32, i32) {
    %c0_i32 = arith.constant 0 : i32
    %c0_i32_0 = arith.constant 0 : i32
    %c0_i32_1 = arith.constant 0 : i32
    return %arg0, %c0_i32, %c0_i32_0 : i32, i32, i32
  }
}

</mosaic_0001>

<llo_original>
// kernel: tpu_custom_call.1
$region0: #{tpu_custom_call.1}
  #allocation0 [shape = 'u32[]', space=smem, size = 0x4, offset = 0x4, fixed_abs, tag = 'smem constant byte address 0x4 - core index']
  #allocation1 [shape = 'u32[144,128]{1,0:T(1,128)}', space=vmem, size = 0x12000, scoped, tag = 'internal scratch']
  %s0 = inlined_call_operand.hbm [shape: f32[2,8,1024], index: 0, kind: input, shape index: {}]
  %s1 = inlined_call_operand.hbm [shape: bf16[2,1024,1024], index: 1, kind: input, shape index: {}]
  %s2 = inlined_call_operand.hbm [shape: bf16[2,1024,512], index: 2, kind: input, shape index: {}]
  %s3 = inlined_call_operand.hbm [shape: bf16[2,512,256], index: 3, kind: input, shape index: {}]
  %s4 = inlined_call_operand.hbm [shape: bf16[2,256,128], index: 4, kind: input, shape index: {}]
  %s5 = inlined_call_operand.vmem [shape: f32[2,12,1024], index: 5, kind: input, shape index: {}]
  %s6 = inlined_call_operand.hbm [shape: f32[2,8,128], index: 6, kind: output, shape index: {}]
  %s7 = sld [smem:[#allocation0]]
  $region77: #{tpu_custom_call.1} parent=0
    _
  %s9 = ssub.s32 1, %s7
  %s10 = scalar_select 0, %s9, %s7
  $region1: #{tpu_custom_call.1} parent=0
    #allocation2 [shape = 'u8[65536]{0}', space=vmem, size = 0x10000, scoped, tag = 'input window, operand 0']
    #allocation3 [shape = 's32[2]{0}', space=sflag, size = 0x8, scoped, tag = 'scoped memory for tpu_custom_call.1']
    #allocation4 [shape = 's32[2]{0}', space=sflag, size = 0x8, scoped, tag = 'scoped memory for tpu_custom_call.1']
    #allocation5 [shape = 'u8[4194304]{0}', space=vmem, size = 0x400000, scoped, tag = 'input window, operand 1']
    #allocation6 [shape = 's32[2]{0}', space=sflag, size = 0x8, scoped, tag = 'scoped memory for tpu_custom_call.1']
    #allocation7 [shape = 'u8[2097152]{0}', space=vmem, size = 0x200000, scoped, tag = 'input window, operand 2']
    #allocation8 [shape = 'u8[524288]{0}', space=vmem, size = 0x80000, scoped, tag = 'input window, operand 3']
    #allocation9 [shape = 's32[2]{0}', space=sflag, size = 0x8, scoped, tag = 'scoped memory for tpu_custom_call.1']
    #allocation10 [shape = 'u8[131072]{0}', space=vmem, size = 0x20000, scoped, tag = 'input window, operand 4']
    #allocation11 [shape = 'u8[8192]{0}', space=vmem, size = 0x2000, scoped, tag = 'output window, operand 0']
    %11 = vsyncpa [#allocation3], 0
    %s12 = scalar_lea.sflag [#allocation3], 1
    %13 = vsyncpa %s12, 0
    %14 = vsyncpa [#allocation6], 0
    %s15 = scalar_lea.sflag [#allocation6], 1
    %16 = vsyncpa %s15, 0
    %17 = vsyncpa [#allocation9], 0
    %s18 = scalar_lea.sflag [#allocation9], 1
    %19 = vsyncpa %s18, 0
    %20 = vsyncpa [#allocation4], 0
    %s21 = scalar_lea.sflag [#allocation4], 1
    %22 = vsyncpa %s21, 0
    loop: start=0, step=1, limit=4
    $region2: #{tpu_custom_call.1} parent=1 // loop_pre_header
      _
    $region3: #{tpu_custom_call.1} parent=1 // loop_header
      %s24 = sphi 0, %s28
      %p25 = scmp.ge.s32.totalorder %s24, 4
      %s34 = sphi 0, %s36
      %s37 = sphi 0, %s34
      %s38 = sphi 0, %s37
      %s54 = sphi 0, %s38
      %s60 = sphi 0, %s62
      %s63 = sphi 0, %s60
      %s64 = sphi 0, %s63
      %s80 = sphi 0, %s64
      %s86 = sphi 0, %s88
      %s89 = sphi 0, %s86
      %s90 = sphi 0, %s89
      %s106 = sphi 0, %s90
      %s112 = sphi 0, %s114
      %s115 = sphi 0, %s112
      %s116 = sphi 0, %s115
      %s132 = sphi 0, %s116
      %s138 = sphi 0, %s140
      %s141 = sphi 0, %s138
      %s142 = sphi 0, %s141
      %s158 = sphi 0, %s142
      %s164 = sphi 0, %s166
      %s167 = sphi 0, %s164
      %s168 = sphi 0, %s167
      %s184 = sphi 0, %s168
      %s190 = sphi 0, %s192
      %s193 = sphi 0, %s190
      %s194 = sphi 0, %s193
      %s210 = sphi 0, %s194
    $region4: #{tpu_custom_call.1} parent=1 // loop_header_branch
      %27 = sbr.rel (%p25) target = $region8
    $region5: #{tpu_custom_call.1} parent=1 // loop_body
      %s29 = ssub.s32 %s24, 1
      %s30 = ssub.s32 %s24, 2
      %s31 = sadd.s32 %s24, 1
      %s32 = ssub.s32 %s24, %s31
      %p33 = scmp.eq.s32.totalorder %s32, 0
      %s35 = sadd.s32 %s34, 1
      %s36 = scalar_select %p33, %s34, %s35
      %p39 = pneg %p33
      %p40 = scmp.eq.s32.totalorder %s24, 1
      %p41 = por %p39, %p40
      %p42 = scmp.ne.s32.totalorder %s34, %s37
      %p43 = scmp.eq.s32.totalorder %s24, 0
      %p44 = por %p42, %p43
      %p45 = scmp.ne.s32.totalorder %s34, %s37
      %p46 = scmp.eq.s32.totalorder %s29, 1
      %p47 = por %p45, %p46
      %p48 = scmp.ne.s32.totalorder %s37, %s38
      %p49 = scmp.eq.s32.totalorder %s29, 0
      %p50 = por %p48, %p49
      %p51 = scmp.ne.s32.totalorder %s37, %s38
      %p52 = scmp.eq.s32.totalorder %s30, 1
      %p53 = por %p51, %p52
      %p55 = scmp.ne.s32.totalorder %s38, %s54
      %p56 = scmp.eq.s32.totalorder %s30, 0
      %p57 = por %p55, %p56
      %s58 = ssub.s32 %s24, %s31
      %p59 = scmp.eq.s32.totalorder %s58, 0
      %s61 = sadd.s32 %s60, 1
      %s62 = scalar_select %p59, %s60, %s61
      %p65 = pneg %p59
      %p66 = scmp.eq.s32.totalorder %s24, 1
      %p67 = por %p65, %p66
      %p68 = scmp.ne.s32.totalorder %s60, %s63
      %p69 = scmp.eq.s32.totalorder %s24, 0
      %p70 = por %p68, %p69
      %p71 = scmp.ne.s32.totalorder %s60, %s63
      %p72 = scmp.eq.s32.totalorder %s29, 1
      %p73 = por %p71, %p72
      %p74 = scmp.ne.s32.totalorder %s63, %s64
      %p75 = scmp.eq.s32.totalorder %s29, 0
      %p76 = por %p74, %p75
      %p77 = scmp.ne.s32.totalorder %s63, %s64
      %p78 = scmp.eq.s32.totalorder %s30, 1
      %p79 = por %p77, %p78
      %p81 = scmp.ne.s32.totalorder %s64, %s80
      %p82 = scmp.eq.s32.totalorder %s30, 0
      %p83 = por %p81, %p82
      %s84 = ssub.s32 %s24, %s31
      %p85 = scmp.eq.s32.totalorder %s84, 0
      %s87 = sadd.s32 %s86, 1
      %s88 = scalar_select %p85, %s86, %s87
      %p91 = pneg %p85
      %p92 = scmp.eq.s32.totalorder %s24, 1
      %p93 = por %p91, %p92
      %p94 = scmp.ne.s32.totalorder %s86, %s89
      %p95 = scmp.eq.s32.totalorder %s24, 0
      %p96 = por %p94, %p95
      %p97 = scmp.ne.s32.totalorder %s86, %s89
      %p98 = scmp.eq.s32.totalorder %s29, 1
      %p99 = por %p97, %p98
      %p100 = scmp.ne.s32.totalorder %s89, %s90
      %p101 = scmp.eq.s32.totalorder %s29, 0
      %p102 = por %p100, %p101
      %p103 = scmp.ne.s32.totalorder %s89, %s90
      %p104 = scmp.eq.s32.totalorder %s30, 1
      %p105 = por %p103, %p104
      %p107 = scmp.ne.s32.totalorder %s90, %s106
      %p108 = scmp.eq.s32.totalorder %s30, 0
      %p109 = por %p107, %p108
      %s110 = ssub.s32 %s24, %s31
      %p111 = scmp.eq.s32.totalorder %s110, 0
      %s113 = sadd.s32 %s112, 1
      %s114 = scalar_select %p111, %s112, %s113
      %p117 = pneg %p111
      %p118 = scmp.eq.s32.totalorder %s24, 1
      %p119 = por %p117, %p118
      %p120 = scmp.ne.s32.totalorder %s112, %s115
      %p121 = scmp.eq.s32.totalorder %s24, 0
      %p122 = por %p120, %p121
      %p123 = scmp.ne.s32.totalorder %s112, %s115
      %p124 = scmp.eq.s32.totalorder %s29, 1
      %p125 = por %p123, %p124
      %p126 = scmp.ne.s32.totalorder %s115, %s116
      %p127 = scmp.eq.s32.totalorder %s29, 0
      %p128 = por %p126, %p127
      %p129 = scmp.ne.s32.totalorder %s115, %s116
      %p130 = scmp.eq.s32.totalorder %s30, 1
      %p131 = por %p129, %p130
      %p133 = scmp.ne.s32.totalorder %s116, %s132
      %p134 = scmp.eq.s32.totalorder %s30, 0
      %p135 = por %p133, %p134
      %s136 = ssub.s32 %s24, %s31
      %p137 = scmp.eq.s32.totalorder %s136, 0
      %s139 = sadd.s32 %s138, 1
      %s140 = scalar_select %p137, %s138, %s139
      %p143 = pneg %p137
      %p144 = scmp.eq.s32.totalorder %s24, 1
      %p145 = por %p143, %p144
      %p146 = scmp.ne.s32.totalorder %s138, %s141
      %p147 = scmp.eq.s32.totalorder %s24, 0
      %p148 = por %p146, %p147
      %p149 = scmp.ne.s32.totalorder %s138, %s141
      %p150 = scmp.eq.s32.totalorder %s29, 1
      %p151 = por %p149, %p150
      %p152 = scmp.ne.s32.totalorder %s141, %s142
      %p153 = scmp.eq.s32.totalorder %s29, 0
      %p154 = por %p152, %p153
      %p155 = scmp.ne.s32.totalorder %s141, %s142
      %p156 = scmp.eq.s32.totalorder %s30, 1
      %p157 = por %p155, %p156
      %p159 = scmp.ne.s32.totalorder %s142, %s158
      %p160 = scmp.eq.s32.totalorder %s30, 0
      %p161 = por %p159, %p160
      %s162 = ssub.s32 %s24, %s31
      %p163 = scmp.eq.s32.totalorder %s162, 0
      %s165 = sadd.s32 %s164, 1
      %s166 = scalar_select %p163, %s164, %s165
      %p169 = pneg %p163
      %p170 = scmp.eq.s32.totalorder %s24, 1
      %p171 = por %p169, %p170
      %p172 = scmp.ne.s32.totalorder %s164, %s167
      %p173 = scmp.eq.s32.totalorder %s24, 0
      %p174 = por %p172, %p173
      %p175 = scmp.ne.s32.totalorder %s164, %s167
      %p176 = scmp.eq.s32.totalorder %s29, 1
      %p177 = por %p175, %p176
      %p178 = scmp.ne.s32.totalorder %s167, %s168
      %p179 = scmp.eq.s32.totalorder %s29, 0
      %p180 = por %p178, %p179
      %p181 = scmp.ne.s32.totalorder %s167, %s168
      %p182 = scmp.eq.s32.totalorder %s30, 1
      %p183 = por %p181, %p182
      %p185 = scmp.ne.s32.totalorder %s168, %s184
      %p186 = scmp.eq.s32.totalorder %s30, 0
      %p187 = por %p185, %p186
      %s188 = ssub.s32 %s24, %s31
      %p189 = scmp.eq.s32.totalorder %s188, 0
      %s191 = sadd.s32 %s190, 1
      %s192 = scalar_select %p189, %s190, %s191
      %p195 = pneg %p189
      %p196 = scmp.eq.s32.totalorder %s24, 1
      %p197 = por %p195, %p196
      %p198 = scmp.ne.s32.totalorder %s190, %s193
      %p199 = scmp.eq.s32.totalorder %s24, 0
      %p200 = por %p198, %p199
      %p201 = scmp.ne.s32.totalorder %s190, %s193
      %p202 = scmp.eq.s32.totalorder %s29, 1
      %p203 = por %p201, %p202
      %p204 = scmp.ne.s32.totalorder %s193, %s194
      %p205 = scmp.eq.s32.totalorder %s29, 0
      %p206 = por %p204, %p205
      %p207 = scmp.ne.s32.totalorder %s193, %s194
      %p208 = scmp.eq.s32.totalorder %s30, 1
      %p209 = por %p207, %p208
      %p211 = scmp.ne.s32.totalorder %s194, %s210
      %p212 = scmp.eq.s32.totalorder %s30, 0
      %p213 = por %p211, %p212
      %p214 = scmp.le.s32.totalorder 1, %s24
      %p215 = scmp.lt.s32.totalorder %s24, 3
      %p216 = pnand %p214, %p215
      %p217 = pneg %p216
      // Predicated region
      $region9: #{tpu_custom_call.1} parent=5 // pred_check
        _
      $region10: #{tpu_custom_call.1} parent=5 // pred_check_branch
        %219 = sbr.rel (%p216) target = $region12
      $region11: #{tpu_custom_call.1} parent=5 // pred_region
        %s220 = ssub.s32 %s24, 1
      $region12: #{tpu_custom_call.1} parent=5 // pred_fallthru
        _
      %p221 = scmp.lt.s32.totalorder %s24, 2
      // Predicated region
      $region13: #{tpu_custom_call.1} parent=5 // pred_check
        %p222 = pneg %p221
      $region14: #{tpu_custom_call.1} parent=5 // pred_check_branch
        %224 = sbr.rel (%p222) target = $region16
      $region15: #{tpu_custom_call.1} parent=5 // pred_region
        // Predicated region
        $region17: #{tpu_custom_call.1} parent=15 // pred_check
          %p225 = pneg %p44
        $region18: #{tpu_custom_call.1} parent=15 // pred_check_branch
          %227 = sbr.rel (%p225) target = $region20
        $region19: #{tpu_custom_call.1} parent=15 // pred_region
          %s228 = sand.u32 %s34, 1
          %s229 = scalar_lea.sflag [#allocation3], %s228
          %s230 = sand.u32 %s34, 1
          %s231 = smul.addr %s230, 64
          %s232 = scalar_lea.vmem [#allocation2], %s231
          %s234 = ssub.s32 1024, 1024
          %235 = vsyncadd %s229, %s234
          %s236 = smul.addr %s24, 8
          %s237 = smul.addr %s236, 128
          %s238 = scalar_lea.hbm %s0, %s237
          %s240 = sshll.u32 %s232, 4
          %s241 = int_to_ptr.vmem [resolvable:$true] %s240
          %243 = dma.hbm_to_vmem [thread:$0]  %s238, 1024, %s241, %s229
        $region20: #{tpu_custom_call.1} parent=15 // pred_fallthru
          _
        // Predicated region
        $region21: #{tpu_custom_call.1} parent=15 // pred_check
          %p244 = pneg %p70
        $region22: #{tpu_custom_call.1} parent=15 // pred_check_branch
          %246 = sbr.rel (%p244) target = $region24
        $region23: #{tpu_custom_call.1} parent=15 // pred_region
          %s247 = sand.u32 %s24, 1
          %s248 = scalar_lea.sflag [#allocation6], %s247
          %s249 = sand.u32 %s60, 1
          %s250 = smul.addr %s249, 4096
          %s251 = scalar_lea.vmem [#allocation5], %s250
          %s253 = ssub.s32 65536, 65536
          %254 = vsyncadd %s248, %s253
          %s255 = smul.addr %s24, 1024
          %s256 = smul.addr %s255, 64
          %s257 = scalar_lea.hbm %s1, %s256
          %s258 = sshll.u32 %s251, 4
          %s259 = int_to_ptr.vmem [resolvable:$true] %s258
          %264 = dma.hbm_to_vmem [thread:$0]  %s257, 65536, %s259, %s248, 512, 512, 32
        $region24: #{tpu_custom_call.1} parent=15 // pred_fallthru
          _
        // Predicated region
        $region25: #{tpu_custom_call.1} parent=15 // pred_check
          %p265 = pneg %p96
        $region26: #{tpu_custom_call.1} parent=15 // pred_check_branch
          %267 = sbr.rel (%p265) target = $region28
        $region27: #{tpu_custom_call.1} parent=15 // pred_region
          %s268 = sand.u32 %s24, 1
          %s269 = scalar_lea.sflag [#allocation6], %s268
          %s270 = sand.u32 %s86, 1
          %s271 = smul.addr %s270, 2048
          %s272 = scalar_lea.vmem [#allocation7], %s271
          %s274 = ssub.s32 32768, 32768
          %275 = vsyncadd %s269, %s274
          %s276 = smul.addr %s24, 512
          %s277 = smul.addr %s276, 64
          %s278 = scalar_lea.hbm %s2, %s277
          %s279 = sshll.u32 %s272, 4
          %s280 = int_to_ptr.vmem [resolvable:$true] %s279
          %285 = dma.hbm_to_vmem [thread:$0]  %s278, 32768, %s280, %s269, 256, 256, 16
        $region28: #{tpu_custom_call.1} parent=15 // pred_fallthru
          _
        // Predicated region
        $region29: #{tpu_custom_call.1} parent=15 // pred_check
          %p286 = pneg %p122
        $region30: #{tpu_custom_call.1} parent=15 // pred_check_branch
          %288 = sbr.rel (%p286) target = $region32
        $region31: #{tpu_custom_call.1} parent=15 // pred_region
          %s289 = sand.u32 %s24, 1
          %s290 = scalar_lea.sflag [#allocation9], %s289
          %s291 = sand.u32 %s112, 1
          %s292 = smul.addr %s291, 512
          %s293 = scalar_lea.vmem [#allocation8], %s292
          %s295 = ssub.s32 8192, 8192
          %296 = vsyncadd %s290, %s295
          %s297 = smul.addr %s24, 128
          %s298 = smul.addr %s297, 64
          %s299 = scalar_lea.hbm %s3, %s298
          %s300 = sshll.u32 %s293, 4
          %s301 = int_to_ptr.vmem [resolvable:$true] %s300
          %306 = dma.hbm_to_vmem [thread:$0]  %s299, 8192, %s301, %s290, 128, 128, 8
        $region32: #{tpu_custom_call.1} parent=15 // pred_fallthru
          _
        // Predicated region
        $region33: #{tpu_custom_call.1} parent=15 // pred_check
          %p307 = pneg %p148
        $region34: #{tpu_custom_call.1} parent=15 // pred_check_branch
          %309 = sbr.rel (%p307) target = $region36
        $region35: #{tpu_custom_call.1} parent=15 // pred_region
          %s310 = sand.u32 %s24, 1
          %s311 = scalar_lea.sflag [#allocation9], %s310
          %s312 = sand.u32 %s138, 1
          %s313 = smul.addr %s312, 128
          %s314 = scalar_lea.vmem [#allocation10], %s313
          %s316 = ssub.s32 2048, 2048
          %317 = vsyncadd %s311, %s316
          %s318 = smul.addr %s24, 32
          %s319 = smul.addr %s318, 64
          %s320 = scalar_lea.hbm %s4, %s319
          %s321 = sshll.u32 %s314, 4
          %s322 = int_to_ptr.vmem [resolvable:$true] %s321
          %327 = dma.hbm_to_vmem [thread:$0]  %s320, 2048, %s322, %s311, 64, 64, 4
        $region36: #{tpu_custom_call.1} parent=15 // pred_fallthru
          _
        // Predicated region
        $region37: #{tpu_custom_call.1} parent=15 // pred_check
          %p328 = pneg %p174
        $region38: #{tpu_custom_call.1} parent=15 // pred_check_branch
          %330 = sbr.rel (%p328) target = $region40
        $region39: #{tpu_custom_call.1} parent=15 // pred_region
          %p331 = scmp.lt.s32.totalorder %s24, 1
          %s332 = scalar_select %p331, %s24, 1
          %s333 = smul.addr %s332, 16
          %s334 = smul.addr %s333, 8
          %s335 = scalar_lea.vmem %s5, %s334
        $region40: #{tpu_custom_call.1} parent=15 // pred_fallthru
          _
      $region16: #{tpu_custom_call.1} parent=5 // pred_fallthru
        _
      %p336 = scmp.le.s32.totalorder 1, %s24
      %p337 = scmp.lt.s32.totalorder %s24, 3
      %p338 = pnand %p336, %p337
      %p339 = pneg %p338
      // Predicated region
      $region41: #{tpu_custom_call.1} parent=5 // pred_check
        _
      $region42: #{tpu_custom_call.1} parent=5 // pred_check_branch
        %341 = sbr.rel (%p338) target = $region44
      $region43: #{tpu_custom_call.1} parent=5 // pred_region
        %s342 = ssub.s32 %s24, 1
        %s343 = sand.u32 %s37, 1
        %s344 = scalar_lea.sflag [#allocation3], %s343
        %s345 = sand.u32 %s37, 1
        %s346 = smul.addr %s345, 64
        %s347 = scalar_lea.vmem [#allocation2], %s346
        // Predicated region
        $region45: #{tpu_custom_call.1} parent=43 // pred_check
          %p348 = pneg %p50
        $region46: #{tpu_custom_call.1} parent=43 // pred_check_branch
          %350 = sbr.rel (%p348) target = $region48
        $region47: #{tpu_custom_call.1} parent=43 // pred_region
          %351 = dma.done %s344, 1024
        $region48: #{tpu_custom_call.1} parent=43 // pred_fallthru
          _
        %s352 = sand.u32 %s29, 1
        %s353 = scalar_lea.sflag [#allocation6], %s352
        %s354 = sand.u32 %s63, 1
        %s355 = smul.addr %s354, 4096
        %s356 = scalar_lea.vmem [#allocation5], %s355
        // Predicated region
        $region49: #{tpu_custom_call.1} parent=43 // pred_check
          %p357 = pneg %p76
        $region50: #{tpu_custom_call.1} parent=43 // pred_check_branch
          %359 = sbr.rel (%p357) target = $region52
        $region51: #{tpu_custom_call.1} parent=43 // pred_region
          %360 = dma.done %s353, 65536
        $region52: #{tpu_custom_call.1} parent=43 // pred_fallthru
          _
        %s361 = sand.u32 %s29, 1
        %s362 = scalar_lea.sflag [#allocation6], %s361
        %s363 = sand.u32 %s89, 1
        %s364 = smul.addr %s363, 2048
        %s365 = scalar_lea.vmem [#allocation7], %s364
        // Predicated region
        $region53: #{tpu_custom_call.1} parent=43 // pred_check
          %p366 = pneg %p102
        $region54: #{tpu_custom_call.1} parent=43 // pred_check_branch
          %368 = sbr.rel (%p366) target = $region56
        $region55: #{tpu_custom_call.1} parent=43 // pred_region
          %369 = dma.done %s362, 32768
        $region56: #{tpu_custom_call.1} parent=43 // pred_fallthru
          _
        %s370 = sand.u32 %s29, 1
        %s371 = scalar_lea.sflag [#allocation9], %s370
        %s372 = sand.u32 %s115, 1
        %s373 = smul.addr %s372, 512
        %s374 = scalar_lea.vmem [#allocation8], %s373
        // Predicated region
        $region57: #{tpu_custom_call.1} parent=43 // pred_check
          %p375 = pneg %p128
        $region58: #{tpu_custom_call.1} parent=43 // pred_check_branch
          %377 = sbr.rel (%p375) target = $region60
        $region59: #{tpu_custom_call.1} parent=43 // pred_region
          %378 = dma.done %s371, 8192
        $region60: #{tpu_custom_call.1} parent=43 // pred_fallthru
          _
        %s379 = sand.u32 %s29, 1
        %s380 = scalar_lea.sflag [#allocation9], %s379
        %s381 = sand.u32 %s141, 1
        %s382 = smul.addr %s381, 128
        %s383 = scalar_lea.vmem [#allocation10], %s382
        // Predicated region
        $region61: #{tpu_custom_call.1} parent=43 // pred_check
          %p384 = pneg %p154
        $region62: #{tpu_custom_call.1} parent=43 // pred_check_branch
          %386 = sbr.rel (%p384) target = $region64
        $region63: #{tpu_custom_call.1} parent=43 // pred_region
          %387 = dma.done %s380, 2048
        $region64: #{tpu_custom_call.1} parent=43 // pred_fallthru
          _
        %s388 = sand.u32 %s37, 1
        %s389 = scalar_lea.sflag [#allocation3], %s388
        %s390 = sand.u32 %s37, 1
        %s391 = smul.addr %s390, 64
        %s392 = scalar_lea.vmem [#allocation2], %s391
        %p393 = pneg %p50
        %p394 = pneg %p47
        %s395 = sand.u32 %s29, 1
        %s396 = scalar_lea.sflag [#allocation6], %s395
        %s397 = sand.u32 %s63, 1
        %s398 = smul.addr %s397, 4096
        %s399 = scalar_lea.vmem [#allocation5], %s398
        %p400 = pneg %p76
        %p401 = pneg %p73
        %s402 = sand.u32 %s29, 1
        %s403 = scalar_lea.sflag [#allocation6], %s402
        %s404 = sand.u32 %s89, 1
        %s405 = smul.addr %s404, 2048
        %s406 = scalar_lea.vmem [#allocation7], %s405
        %p407 = pneg %p102
        %p408 = pneg %p99
        %s409 = sand.u32 %s29, 1
        %s410 = scalar_lea.sflag [#allocation9], %s409
        %s411 = sand.u32 %s115, 1
        %s412 = smul.addr %s411, 512
        %s413 = scalar_lea.vmem [#allocation8], %s412
        %p414 = pneg %p128
        %p415 = pneg %p125
        %s416 = sand.u32 %s29, 1
        %s417 = scalar_lea.sflag [#allocation9], %s416
        %s418 = sand.u32 %s141, 1
        %s419 = smul.addr %s418, 128
        %s420 = scalar_lea.vmem [#allocation10], %s419
        %p421 = pneg %p154
        %p422 = pneg %p151
        %p423 = scmp.lt.s32.totalorder %s29, 1
        %s424 = scalar_select %p423, %s29, 1
        %s425 = smul.addr %s424, 16
        %s426 = smul.addr %s425, 8
        %s427 = scalar_lea.vmem %s5, %s426
        %p428 = pneg %p180
        %p429 = pneg %p177
        %p430 = pneg %p206
        %p431 = pneg %p203
        %s432 = sand.u32 %s193, 1
        %s433 = scalar_lea.sflag [#allocation4], %s432
        %s434 = sand.u32 %s193, 1
        %s435 = smul.addr %s434, 8
        %s436 = scalar_lea.vmem [#allocation11], %s435
        %p437 = scmp.lt.s32.totalorder %s29, 1
        %s438 = scalar_select %p437, %s29, 1
        %s439 = smul.addr %s438, 16
        %s440 = smul.addr %s439, 8
        %s441 = scalar_lea.vmem %s5, %s440
        %v443 = vld [vmem:[%s347] sm:$0xff]
        %v444 = vld [vmem:[%s347 + $0x8] sm:$0xff]
        %v445 = vld [vmem:[%s347 + $0x10] sm:$0xff]
        %v446 = vld [vmem:[%s347 + $0x18] sm:$0xff]
        %v447 = vld [vmem:[%s347 + $0x20] sm:$0xff]
        %v448 = vld [vmem:[%s347 + $0x28] sm:$0xff]
        %v449 = vld [vmem:[%s347 + $0x30] sm:$0xff]
        %v450 = vld [vmem:[%s347 + $0x38] sm:$0xff]
        %v451 = vpack.c.bf16 %v443, %v443
        %v452 = vpack.c.bf16 %v444, %v444
        %v453 = vpack.c.bf16 %v445, %v445
        %v454 = vpack.c.bf16 %v446, %v446
        %v455 = vpack.c.bf16 %v447, %v447
        %v456 = vpack.c.bf16 %v448, %v448
        %v457 = vpack.c.bf16 %v449, %v449
        %v458 = vpack.c.bf16 %v450, %v450
        %v459 = vld [vmem:[%s356] sm:$0xff]
        %v460 = vld [vmem:[%s356 + $0x8] sm:$0xff]
        %v461 = vld [vmem:[%s356 + $0x10] sm:$0xff]
        %v462 = vld [vmem:[%s356 + $0x18] sm:$0xff]
        %v463 = vld [vmem:[%s356 + $0x20] sm:$0xff]
        %v464 = vld [vmem:[%s356 + $0x28] sm:$0xff]
        %v465 = vld [vmem:[%s356 + $0x30] sm:$0xff]
        %v466 = vld [vmem:[%s356 + $0x38] sm:$0xff]
        %v467 = vld [vmem:[%s356 + $0x40] sm:$0xff]
        %v468 = vld [vmem:[%s356 + $0x48] sm:$0xff]
        %v469 = vld [vmem:[%s356 + $0x50] sm:$0xff]
        %v470 = vld [vmem:[%s356 + $0x58] sm:$0xff]
        %v471 = vld [vmem:[%s356 + $0x60] sm:$0xff]
        %v472 = vld [vmem:[%s356 + $0x68] sm:$0xff]
        %v473 = vld [vmem:[%s356 + $0x70] sm:$0xff]
        %v474 = vld [vmem:[%s356 + $0x78] sm:$0xff]
        %v475 = vld [vmem:[%s356 + $0x80] sm:$0xff]
        %v476 = vld [vmem:[%s356 + $0x88] sm:$0xff]
        %v477 = vld [vmem:[%s356 + $0x90] sm:$0xff]
        %v478 = vld [vmem:[%s356 + $0x98] sm:$0xff]
        %v479 = vld [vmem:[%s356 + $0xa0] sm:$0xff]
        %v480 = vld [vmem:[%s356 + $0xa8] sm:$0xff]
        %v481 = vld [vmem:[%s356 + $0xb0] sm:$0xff]
        %v482 = vld [vmem:[%s356 + $0xb8] sm:$0xff]
        %v483 = vld [vmem:[%s356 + $0xc0] sm:$0xff]
        %v484 = vld [vmem:[%s356 + $0xc8] sm:$0xff]
        %v485 = vld [vmem:[%s356 + $0xd0] sm:$0xff]
        %v486 = vld [vmem:[%s356 + $0xd8] sm:$0xff]
        %v487 = vld [vmem:[%s356 + $0xe0] sm:$0xff]
        %v488 = vld [vmem:[%s356 + $0xe8] sm:$0xff]
        %v489 = vld [vmem:[%s356 + $0xf0] sm:$0xff]
        %v490 = vld [vmem:[%s356 + $0xf8] sm:$0xff]
        %v491 = vld [vmem:[%s356 + $0x100] sm:$0xff]
        %v492 = vld [vmem:[%s356 + $0x108] sm:$0xff]
        %v493 = vld [vmem:[%s356 + $0x110] sm:$0xff]
        %v494 = vld [vmem:[%s356 + $0x118] sm:$0xff]
        %v495 = vld [vmem:[%s356 + $0x120] sm:$0xff]
        %v496 = vld [vmem:[%s356 + $0x128] sm:$0xff]
        %v497 = vld [vmem:[%s356 + $0x130] sm:$0xff]
        %v498 = vld [vmem:[%s356 + $0x138] sm:$0xff]
        %v499 = vld [vmem:[%s356 + $0x140] sm:$0xff]
        %v500 = vld [vmem:[%s356 + $0x148] sm:$0xff]
        %v501 = vld [vmem:[%s356 + $0x150] sm:$0xff]
        %v502 = vld [vmem:[%s356 + $0x158] sm:$0xff]
        %v503 = vld [vmem:[%s356 + $0x160] sm:$0xff]
        %v504 = vld [vmem:[%s356 + $0x168] sm:$0xff]
        %v505 = vld [vmem:[%s356 + $0x170] sm:$0xff]
        %v506 = vld [vmem:[%s356 + $0x178] sm:$0xff]
        %v507 = vld [vmem:[%s356 + $0x180] sm:$0xff]
        %v508 = vld [vmem:[%s356 + $0x188] sm:$0xff]
        %v509 = vld [vmem:[%s356 + $0x190] sm:$0xff]
        %v510 = vld [vmem:[%s356 + $0x198] sm:$0xff]
        %v511 = vld [vmem:[%s356 + $0x1a0] sm:$0xff]
        %v512 = vld [vmem:[%s356 + $0x1a8] sm:$0xff]
        %v513 = vld [vmem:[%s356 + $0x1b0] sm:$0xff]
        %v514 = vld [vmem:[%s356 + $0x1b8] sm:$0xff]
        %v515 = vld [vmem:[%s356 + $0x1c0] sm:$0xff]
        %v516 = vld [vmem:[%s356 + $0x1c8] sm:$0xff]
        %v517 = vld [vmem:[%s356 + $0x1d0] sm:$0xff]
        %v518 = vld [vmem:[%s356 + $0x1d8] sm:$0xff]
        %v519 = vld [vmem:[%s356 + $0x1e0] sm:$0xff]
        %v520 = vld [vmem:[%s356 + $0x1e8] sm:$0xff]
        %v521 = vld [vmem:[%s356 + $0x1f0] sm:$0xff]
        %v522 = vld [vmem:[%s356 + $0x1f8] sm:$0xff]
        %v523 = vld [vmem:[%s356 + $0x200] sm:$0xff]
        %v524 = vld [vmem:[%s356 + $0x208] sm:$0xff]
        %v525 = vld [vmem:[%s356 + $0x210] sm:$0xff]
        %v526 = vld [vmem:[%s356 + $0x218] sm:$0xff]
        %v527 = vld [vmem:[%s356 + $0x220] sm:$0xff]
        %v528 = vld [vmem:[%s356 + $0x228] sm:$0xff]
        %v529 = vld [vmem:[%s356 + $0x230] sm:$0xff]
        %v530 = vld [vmem:[%s356 + $0x238] sm:$0xff]
        %v531 = vld [vmem:[%s356 + $0x240] sm:$0xff]
        %v532 = vld [vmem:[%s356 + $0x248] sm:$0xff]
        %v533 = vld [vmem:[%s356 + $0x250] sm:$0xff]
        %v534 = vld [vmem:[%s356 + $0x258] sm:$0xff]
        %v535 = vld [vmem:[%s356 + $0x260] sm:$0xff]
        %v536 = vld [vmem:[%s356 + $0x268] sm:$0xff]
        %v537 = vld [vmem:[%s356 + $0x270] sm:$0xff]
        %v538 = vld [vmem:[%s356 + $0x278] sm:$0xff]
        %v539 = vld [vmem:[%s356 + $0x280] sm:$0xff]
        %v540 = vld [vmem:[%s356 + $0x288] sm:$0xff]
        %v541 = vld [vmem:[%s356 + $0x290] sm:$0xff]
        %v542 = vld [vmem:[%s356 + $0x298] sm:$0xff]
        %v543 = vld [vmem:[%s356 + $0x2a0] sm:$0xff]
        %v544 = vld [vmem:[%s356 + $0x2a8] sm:$0xff]
        %v545 = vld [vmem:[%s356 + $0x2b0] sm:$0xff]
        %v546 = vld [vmem:[%s356 + $0x2b8] sm:$0xff]
        %v547 = vld [vmem:[%s356 + $0x2c0] sm:$0xff]
        %v548 = vld [vmem:[%s356 + $0x2c8] sm:$0xff]
        %v549 = vld [vmem:[%s356 + $0x2d0] sm:$0xff]
        %v550 = vld [vmem:[%s356 + $0x2d8] sm:$0xff]
        %v551 = vld [vmem:[%s356 + $0x2e0] sm:$0xff]
        %v552 = vld [vmem:[%s356 + $0x2e8] sm:$0xff]
        %v553 = vld [vmem:[%s356 + $0x2f0] sm:$0xff]
        %v554 = vld [vmem:[%s356 + $0x2f8] sm:$0xff]
        %v555 = vld [vmem:[%s356 + $0x300] sm:$0xff]
        %v556 = vld [vmem:[%s356 + $0x308] sm:$0xff]
        %v557 = vld [vmem:[%s356 + $0x310] sm:$0xff]
        %v558 = vld [vmem:[%s356 + $0x318] sm:$0xff]
        %v559 = vld [vmem:[%s356 + $0x320] sm:$0xff]
        %v560 = vld [vmem:[%s356 + $0x328] sm:$0xff]
        %v561 = vld [vmem:[%s356 + $0x330] sm:$0xff]
        %v562 = vld [vmem:[%s356 + $0x338] sm:$0xff]
        %v563 = vld [vmem:[%s356 + $0x340] sm:$0xff]
        %v564 = vld [vmem:[%s356 + $0x348] sm:$0xff]
        %v565 = vld [vmem:[%s356 + $0x350] sm:$0xff]
        %v566 = vld [vmem:[%s356 + $0x358] sm:$0xff]
        %v567 = vld [vmem:[%s356 + $0x360] sm:$0xff]
        %v568 = vld [vmem:[%s356 + $0x368] sm:$0xff]
        %v569 = vld [vmem:[%s356 + $0x370] sm:$0xff]
        %v570 = vld [vmem:[%s356 + $0x378] sm:$0xff]
        %v571 = vld [vmem:[%s356 + $0x380] sm:$0xff]
        %v572 = vld [vmem:[%s356 + $0x388] sm:$0xff]
        %v573 = vld [vmem:[%s356 + $0x390] sm:$0xff]
        %v574 = vld [vmem:[%s356 + $0x398] sm:$0xff]
        %v575 = vld [vmem:[%s356 + $0x3a0] sm:$0xff]
        %v576 = vld [vmem:[%s356 + $0x3a8] sm:$0xff]
        %v577 = vld [vmem:[%s356 + $0x3b0] sm:$0xff]
        %v578 = vld [vmem:[%s356 + $0x3b8] sm:$0xff]
        %v579 = vld [vmem:[%s356 + $0x3c0] sm:$0xff]
        %v580 = vld [vmem:[%s356 + $0x3c8] sm:$0xff]
        %v581 = vld [vmem:[%s356 + $0x3d0] sm:$0xff]
        %v582 = vld [vmem:[%s356 + $0x3d8] sm:$0xff]
        %v583 = vld [vmem:[%s356 + $0x3e0] sm:$0xff]
        %v584 = vld [vmem:[%s356 + $0x3e8] sm:$0xff]
        %v585 = vld [vmem:[%s356 + $0x3f0] sm:$0xff]
        %v586 = vld [vmem:[%s356 + $0x3f8] sm:$0xff]
        %v587 = vld [vmem:[%s356 + $0x400] sm:$0xff]
        %v588 = vld [vmem:[%s356 + $0x408] sm:$0xff]
        %v589 = vld [vmem:[%s356 + $0x410] sm:$0xff]
        %v590 = vld [vmem:[%s356 + $0x418] sm:$0xff]
        %v591 = vld [vmem:[%s356 + $0x420] sm:$0xff]
        %v592 = vld [vmem:[%s356 + $0x428] sm:$0xff]
        %v593 = vld [vmem:[%s356 + $0x430] sm:$0xff]
        %v594 = vld [vmem:[%s356 + $0x438] sm:$0xff]
        %v595 = vld [vmem:[%s356 + $0x440] sm:$0xff]
        %v596 = vld [vmem:[%s356 + $0x448] sm:$0xff]
        %v597 = vld [vmem:[%s356 + $0x450] sm:$0xff]
        %v598 = vld [vmem:[%s356 + $0x458] sm:$0xff]
        %v599 = vld [vmem:[%s356 + $0x460] sm:$0xff]
        %v600 = vld [vmem:[%s356 + $0x468] sm:$0xff]
        %v601 = vld [vmem:[%s356 + $0x470] sm:$0xff]
        %v602 = vld [vmem:[%s356 + $0x478] sm:$0xff]
        %v603 = vld [vmem:[%s356 + $0x480] sm:$0xff]
        %v604 = vld [vmem:[%s356 + $0x488] sm:$0xff]
        %v605 = vld [vmem:[%s356 + $0x490] sm:$0xff]
        %v606 = vld [vmem:[%s356 + $0x498] sm:$0xff]
        %v607 = vld [vmem:[%s356 + $0x4a0] sm:$0xff]
        %v608 = vld [vmem:[%s356 + $0x4a8] sm:$0xff]
        %v609 = vld [vmem:[%s356 + $0x4b0] sm:$0xff]
        %v610 = vld [vmem:[%s356 + $0x4b8] sm:$0xff]
        %v611 = vld [vmem:[%s356 + $0x4c0] sm:$0xff]
        %v612 = vld [vmem:[%s356 + $0x4c8] sm:$0xff]
        %v613 = vld [vmem:[%s356 + $0x4d0] sm:$0xff]
        %v614 = vld [vmem:[%s356 + $0x4d8] sm:$0xff]
        %v615 = vld [vmem:[%s356 + $0x4e0] sm:$0xff]
        %v616 = vld [vmem:[%s356 + $0x4e8] sm:$0xff]
        %v617 = vld [vmem:[%s356 + $0x4f0] sm:$0xff]
        %v618 = vld [vmem:[%s356 + $0x4f8] sm:$0xff]
        %v619 = vld [vmem:[%s356 + $0x500] sm:$0xff]
        %v620 = vld [vmem:[%s356 + $0x508] sm:$0xff]
        %v621 = vld [vmem:[%s356 + $0x510] sm:$0xff]
        %v622 = vld [vmem:[%s356 + $0x518] sm:$0xff]
        %v623 = vld [vmem:[%s356 + $0x520] sm:$0xff]
        %v624 = vld [vmem:[%s356 + $0x528] sm:$0xff]
        %v625 = vld [vmem:[%s356 + $0x530] sm:$0xff]
        %v626 = vld [vmem:[%s356 + $0x538] sm:$0xff]
        %v627 = vld [vmem:[%s356 + $0x540] sm:$0xff]
        %v628 = vld [vmem:[%s356 + $0x548] sm:$0xff]
        %v629 = vld [vmem:[%s356 + $0x550] sm:$0xff]
        %v630 = vld [vmem:[%s356 + $0x558] sm:$0xff]
        %v631 = vld [vmem:[%s356 + $0x560] sm:$0xff]
        %v632 = vld [vmem:[%s356 + $0x568] sm:$0xff]
        %v633 = vld [vmem:[%s356 + $0x570] sm:$0xff]
        %v634 = vld [vmem:[%s356 + $0x578] sm:$0xff]
        %v635 = vld [vmem:[%s356 + $0x580] sm:$0xff]
        %v636 = vld [vmem:[%s356 + $0x588] sm:$0xff]
        %v637 = vld [vmem:[%s356 + $0x590] sm:$0xff]
        %v638 = vld [vmem:[%s356 + $0x598] sm:$0xff]
        %v639 = vld [vmem:[%s356 + $0x5a0] sm:$0xff]
        %v640 = vld [vmem:[%s356 + $0x5a8] sm:$0xff]
        %v641 = vld [vmem:[%s356 + $0x5b0] sm:$0xff]
        %v642 = vld [vmem:[%s356 + $0x5b8] sm:$0xff]
        %v643 = vld [vmem:[%s356 + $0x5c0] sm:$0xff]
        %v644 = vld [vmem:[%s356 + $0x5c8] sm:$0xff]
        %v645 = vld [vmem:[%s356 + $0x5d0] sm:$0xff]
        %v646 = vld [vmem:[%s356 + $0x5d8] sm:$0xff]
        %v647 = vld [vmem:[%s356 + $0x5e0] sm:$0xff]
        %v648 = vld [vmem:[%s356 + $0x5e8] sm:$0xff]
        %v649 = vld [vmem:[%s356 + $0x5f0] sm:$0xff]
        %v650 = vld [vmem:[%s356 + $0x5f8] sm:$0xff]
        %v651 = vld [vmem:[%s356 + $0x600] sm:$0xff]
        %v652 = vld [vmem:[%s356 + $0x608] sm:$0xff]
        %v653 = vld [vmem:[%s356 + $0x610] sm:$0xff]
        %v654 = vld [vmem:[%s356 + $0x618] sm:$0xff]
        %v655 = vld [vmem:[%s356 + $0x620] sm:$0xff]
        %v656 = vld [vmem:[%s356 + $0x628] sm:$0xff]
        %v657 = vld [vmem:[%s356 + $0x630] sm:$0xff]
        %v658 = vld [vmem:[%s356 + $0x638] sm:$0xff]
        %v659 = vld [vmem:[%s356 + $0x640] sm:$0xff]
        %v660 = vld [vmem:[%s356 + $0x648] sm:$0xff]
        %v661 = vld [vmem:[%s356 + $0x650] sm:$0xff]
        %v662 = vld [vmem:[%s356 + $0x658] sm:$0xff]
        %v663 = vld [vmem:[%s356 + $0x660] sm:$0xff]
        %v664 = vld [vmem:[%s356 + $0x668] sm:$0xff]
        %v665 = vld [vmem:[%s356 + $0x670] sm:$0xff]
        %v666 = vld [vmem:[%s356 + $0x678] sm:$0xff]
        %v667 = vld [vmem:[%s356 + $0x680] sm:$0xff]
        %v668 = vld [vmem:[%s356 + $0x688] sm:$0xff]
        %v669 = vld [vmem:[%s356 + $0x690] sm:$0xff]
        %v670 = vld [vmem:[%s356 + $0x698] sm:$0xff]
        %v671 = vld [vmem:[%s356 + $0x6a0] sm:$0xff]
        %v672 = vld [vmem:[%s356 + $0x6a8] sm:$0xff]
        %v673 = vld [vmem:[%s356 + $0x6b0] sm:$0xff]
        %v674 = vld [vmem:[%s356 + $0x6b8] sm:$0xff]
        %v675 = vld [vmem:[%s356 + $0x6c0] sm:$0xff]
        %v676 = vld [vmem:[%s356 + $0x6c8] sm:$0xff]
        %v677 = vld [vmem:[%s356 + $0x6d0] sm:$0xff]
        %v678 = vld [vmem:[%s356 + $0x6d8] sm:$0xff]
        %v679 = vld [vmem:[%s356 + $0x6e0] sm:$0xff]
        %v680 = vld [vmem:[%s356 + $0x6e8] sm:$0xff]
        %v681 = vld [vmem:[%s356 + $0x6f0] sm:$0xff]
        %v682 = vld [vmem:[%s356 + $0x6f8] sm:$0xff]
        %v683 = vld [vmem:[%s356 + $0x700] sm:$0xff]
        %v684 = vld [vmem:[%s356 + $0x708] sm:$0xff]
        %v685 = vld [vmem:[%s356 + $0x710] sm:$0xff]
        %v686 = vld [vmem:[%s356 + $0x718] sm:$0xff]
        %v687 = vld [vmem:[%s356 + $0x720] sm:$0xff]
        %v688 = vld [vmem:[%s356 + $0x728] sm:$0xff]
        %v689 = vld [vmem:[%s356 + $0x730] sm:$0xff]
        %v690 = vld [vmem:[%s356 + $0x738] sm:$0xff]
        %v691 = vld [vmem:[%s356 + $0x740] sm:$0xff]
        %v692 = vld [vmem:[%s356 + $0x748] sm:$0xff]
        %v693 = vld [vmem:[%s356 + $0x750] sm:$0xff]
        %v694 = vld [vmem:[%s356 + $0x758] sm:$0xff]
        %v695 = vld [vmem:[%s356 + $0x760] sm:$0xff]
        %v696 = vld [vmem:[%s356 + $0x768] sm:$0xff]
        %v697 = vld [vmem:[%s356 + $0x770] sm:$0xff]
        %v698 = vld [vmem:[%s356 + $0x778] sm:$0xff]
        %v699 = vld [vmem:[%s356 + $0x780] sm:$0xff]
        %v700 = vld [vmem:[%s356 + $0x788] sm:$0xff]
        %v701 = vld [vmem:[%s356 + $0x790] sm:$0xff]
        %v702 = vld [vmem:[%s356 + $0x798] sm:$0xff]
        %v703 = vld [vmem:[%s356 + $0x7a0] sm:$0xff]
        %v704 = vld [vmem:[%s356 + $0x7a8] sm:$0xff]
        %v705 = vld [vmem:[%s356 + $0x7b0] sm:$0xff]
        %v706 = vld [vmem:[%s356 + $0x7b8] sm:$0xff]
        %v707 = vld [vmem:[%s356 + $0x7c0] sm:$0xff]
        %v708 = vld [vmem:[%s356 + $0x7c8] sm:$0xff]
        %v709 = vld [vmem:[%s356 + $0x7d0] sm:$0xff]
        %v710 = vld [vmem:[%s356 + $0x7d8] sm:$0xff]
        %v711 = vld [vmem:[%s356 + $0x7e0] sm:$0xff]
        %v712 = vld [vmem:[%s356 + $0x7e8] sm:$0xff]
        %v713 = vld [vmem:[%s356 + $0x7f0] sm:$0xff]
        %v714 = vld [vmem:[%s356 + $0x7f8] sm:$0xff]
        %v715 = vld [vmem:[%s356 + $0x800] sm:$0xff]
        %v716 = vld [vmem:[%s356 + $0x808] sm:$0xff]
        %v717 = vld [vmem:[%s356 + $0x810] sm:$0xff]
        %v718 = vld [vmem:[%s356 + $0x818] sm:$0xff]
        %v719 = vld [vmem:[%s356 + $0x820] sm:$0xff]
        %v720 = vld [vmem:[%s356 + $0x828] sm:$0xff]
        %v721 = vld [vmem:[%s356 + $0x830] sm:$0xff]
        %v722 = vld [vmem:[%s356 + $0x838] sm:$0xff]
        %v723 = vld [vmem:[%s356 + $0x840] sm:$0xff]
        %v724 = vld [vmem:[%s356 + $0x848] sm:$0xff]
        %v725 = vld [vmem:[%s356 + $0x850] sm:$0xff]
        %v726 = vld [vmem:[%s356 + $0x858] sm:$0xff]
        %v727 = vld [vmem:[%s356 + $0x860] sm:$0xff]
        %v728 = vld [vmem:[%s356 + $0x868] sm:$0xff]
        %v729 = vld [vmem:[%s356 + $0x870] sm:$0xff]
        %v730 = vld [vmem:[%s356 + $0x878] sm:$0xff]
        %v731 = vld [vmem:[%s356 + $0x880] sm:$0xff]
        %v732 = vld [vmem:[%s356 + $0x888] sm:$0xff]
        %v733 = vld [vmem:[%s356 + $0x890] sm:$0xff]
        %v734 = vld [vmem:[%s356 + $0x898] sm:$0xff]
        %v735 = vld [vmem:[%s356 + $0x8a0] sm:$0xff]
        %v736 = vld [vmem:[%s356 + $0x8a8] sm:$0xff]
        %v737 = vld [vmem:[%s356 + $0x8b0] sm:$0xff]
        %v738 = vld [vmem:[%s356 + $0x8b8] sm:$0xff]
        %v739 = vld [vmem:[%s356 + $0x8c0] sm:$0xff]
        %v740 = vld [vmem:[%s356 + $0x8c8] sm:$0xff]
        %v741 = vld [vmem:[%s356 + $0x8d0] sm:$0xff]
        %v742 = vld [vmem:[%s356 + $0x8d8] sm:$0xff]
        %v743 = vld [vmem:[%s356 + $0x8e0] sm:$0xff]
        %v744 = vld [vmem:[%s356 + $0x8e8] sm:$0xff]
        %v745 = vld [vmem:[%s356 + $0x8f0] sm:$0xff]
        %v746 = vld [vmem:[%s356 + $0x8f8] sm:$0xff]
        %v747 = vld [vmem:[%s356 + $0x900] sm:$0xff]
        %v748 = vld [vmem:[%s356 + $0x908] sm:$0xff]
        %v749 = vld [vmem:[%s356 + $0x910] sm:$0xff]
        %v750 = vld [vmem:[%s356 + $0x918] sm:$0xff]
        %v751 = vld [vmem:[%s356 + $0x920] sm:$0xff]
        %v752 = vld [vmem:[%s356 + $0x928] sm:$0xff]
        %v753 = vld [vmem:[%s356 + $0x930] sm:$0xff]
        %v754 = vld [vmem:[%s356 + $0x938] sm:$0xff]
        %v755 = vld [vmem:[%s356 + $0x940] sm:$0xff]
        %v756 = vld [vmem:[%s356 + $0x948] sm:$0xff]
        %v757 = vld [vmem:[%s356 + $0x950] sm:$0xff]
        %v758 = vld [vmem:[%s356 + $0x958] sm:$0xff]
        %v759 = vld [vmem:[%s356 + $0x960] sm:$0xff]
        %v760 = vld [vmem:[%s356 + $0x968] sm:$0xff]
        %v761 = vld [vmem:[%s356 + $0x970] sm:$0xff]
        %v762 = vld [vmem:[%s356 + $0x978] sm:$0xff]
        %v763 = vld [vmem:[%s356 + $0x980] sm:$0xff]
        %v764 = vld [vmem:[%s356 + $0x988] sm:$0xff]
        %v765 = vld [vmem:[%s356 + $0x990] sm:$0xff]
        %v766 = vld [vmem:[%s356 + $0x998] sm:$0xff]
        %v767 = vld [vmem:[%s356 + $0x9a0] sm:$0xff]
        %v768 = vld [vmem:[%s356 + $0x9a8] sm:$0xff]
        %v769 = vld [vmem:[%s356 + $0x9b0] sm:$0xff]
        %v770 = vld [vmem:[%s356 + $0x9b8] sm:$0xff]
        %v771 = vld [vmem:[%s356 + $0x9c0] sm:$0xff]
        %v772 = vld [vmem:[%s356 + $0x9c8] sm:$0xff]
        %v773 = vld [vmem:[%s356 + $0x9d0] sm:$0xff]
        %v774 = vld [vmem:[%s356 + $0x9d8] sm:$0xff]
        %v775 = vld [vmem:[%s356 + $0x9e0] sm:$0xff]
        %v776 = vld [vmem:[%s356 + $0x9e8] sm:$0xff]
        %v777 = vld [vmem:[%s356 + $0x9f0] sm:$0xff]
        %v778 = vld [vmem:[%s356 + $0x9f8] sm:$0xff]
        %v779 = vld [vmem:[%s356 + $0xa00] sm:$0xff]
        %v780 = vld [vmem:[%s356 + $0xa08] sm:$0xff]
        %v781 = vld [vmem:[%s356 + $0xa10] sm:$0xff]
        %v782 = vld [vmem:[%s356 + $0xa18] sm:$0xff]
        %v783 = vld [vmem:[%s356 + $0xa20] sm:$0xff]
        %v784 = vld [vmem:[%s356 + $0xa28] sm:$0xff]
        %v785 = vld [vmem:[%s356 + $0xa30] sm:$0xff]
        %v786 = vld [vmem:[%s356 + $0xa38] sm:$0xff]
        %v787 = vld [vmem:[%s356 + $0xa40] sm:$0xff]
        %v788 = vld [vmem:[%s356 + $0xa48] sm:$0xff]
        %v789 = vld [vmem:[%s356 + $0xa50] sm:$0xff]
        %v790 = vld [vmem:[%s356 + $0xa58] sm:$0xff]
        %v791 = vld [vmem:[%s356 + $0xa60] sm:$0xff]
        %v792 = vld [vmem:[%s356 + $0xa68] sm:$0xff]
        %v793 = vld [vmem:[%s356 + $0xa70] sm:$0xff]
        %v794 = vld [vmem:[%s356 + $0xa78] sm:$0xff]
        %v795 = vld [vmem:[%s356 + $0xa80] sm:$0xff]
        %v796 = vld [vmem:[%s356 + $0xa88] sm:$0xff]
        %v797 = vld [vmem:[%s356 + $0xa90] sm:$0xff]
        %v798 = vld [vmem:[%s356 + $0xa98] sm:$0xff]
        %v799 = vld [vmem:[%s356 + $0xaa0] sm:$0xff]
        %v800 = vld [vmem:[%s356 + $0xaa8] sm:$0xff]
        %v801 = vld [vmem:[%s356 + $0xab0] sm:$0xff]
        %v802 = vld [vmem:[%s356 + $0xab8] sm:$0xff]
        %v803 = vld [vmem:[%s356 + $0xac0] sm:$0xff]
        %v804 = vld [vmem:[%s356 + $0xac8] sm:$0xff]
        %v805 = vld [vmem:[%s356 + $0xad0] sm:$0xff]
        %v806 = vld [vmem:[%s356 + $0xad8] sm:$0xff]
        %v807 = vld [vmem:[%s356 + $0xae0] sm:$0xff]
        %v808 = vld [vmem:[%s356 + $0xae8] sm:$0xff]
        %v809 = vld [vmem:[%s356 + $0xaf0] sm:$0xff]
        %v810 = vld [vmem:[%s356 + $0xaf8] sm:$0xff]
        %v811 = vld [vmem:[%s356 + $0xb00] sm:$0xff]
        %v812 = vld [vmem:[%s356 + $0xb08] sm:$0xff]
        %v813 = vld [vmem:[%s356 + $0xb10] sm:$0xff]
        %v814 = vld [vmem:[%s356 + $0xb18] sm:$0xff]
        %v815 = vld [vmem:[%s356 + $0xb20] sm:$0xff]
        %v816 = vld [vmem:[%s356 + $0xb28] sm:$0xff]
        %v817 = vld [vmem:[%s356 + $0xb30] sm:$0xff]
        %v818 = vld [vmem:[%s356 + $0xb38] sm:$0xff]
        %v819 = vld [vmem:[%s356 + $0xb40] sm:$0xff]
        %v820 = vld [vmem:[%s356 + $0xb48] sm:$0xff]
        %v821 = vld [vmem:[%s356 + $0xb50] sm:$0xff]
        %v822 = vld [vmem:[%s356 + $0xb58] sm:$0xff]
        %v823 = vld [vmem:[%s356 + $0xb60] sm:$0xff]
        %v824 = vld [vmem:[%s356 + $0xb68] sm:$0xff]
        %v825 = vld [vmem:[%s356 + $0xb70] sm:$0xff]
        %v826 = vld [vmem:[%s356 + $0xb78] sm:$0xff]
        %v827 = vld [vmem:[%s356 + $0xb80] sm:$0xff]
        %v828 = vld [vmem:[%s356 + $0xb88] sm:$0xff]
        %v829 = vld [vmem:[%s356 + $0xb90] sm:$0xff]
        %v830 = vld [vmem:[%s356 + $0xb98] sm:$0xff]
        %v831 = vld [vmem:[%s356 + $0xba0] sm:$0xff]
        %v832 = vld [vmem:[%s356 + $0xba8] sm:$0xff]
        %v833 = vld [vmem:[%s356 + $0xbb0] sm:$0xff]
        %v834 = vld [vmem:[%s356 + $0xbb8] sm:$0xff]
        %v835 = vld [vmem:[%s356 + $0xbc0] sm:$0xff]
        %v836 = vld [vmem:[%s356 + $0xbc8] sm:$0xff]
        %v837 = vld [vmem:[%s356 + $0xbd0] sm:$0xff]
        %v838 = vld [vmem:[%s356 + $0xbd8] sm:$0xff]
        %v839 = vld [vmem:[%s356 + $0xbe0] sm:$0xff]
        %v840 = vld [vmem:[%s356 + $0xbe8] sm:$0xff]
        %v841 = vld [vmem:[%s356 + $0xbf0] sm:$0xff]
        %v842 = vld [vmem:[%s356 + $0xbf8] sm:$0xff]
        %v843 = vld [vmem:[%s356 + $0xc00] sm:$0xff]
        %v844 = vld [vmem:[%s356 + $0xc08] sm:$0xff]
        %v845 = vld [vmem:[%s356 + $0xc10] sm:$0xff]
        %v846 = vld [vmem:[%s356 + $0xc18] sm:$0xff]
        %v847 = vld [vmem:[%s356 + $0xc20] sm:$0xff]
        %v848 = vld [vmem:[%s356 + $0xc28] sm:$0xff]
        %v849 = vld [vmem:[%s356 + $0xc30] sm:$0xff]
        %v850 = vld [vmem:[%s356 + $0xc38] sm:$0xff]
        %v851 = vld [vmem:[%s356 + $0xc40] sm:$0xff]
        %v852 = vld [vmem:[%s356 + $0xc48] sm:$0xff]
        %v853 = vld [vmem:[%s356 + $0xc50] sm:$0xff]
        %v854 = vld [vmem:[%s356 + $0xc58] sm:$0xff]
        %v855 = vld [vmem:[%s356 + $0xc60] sm:$0xff]
        %v856 = vld [vmem:[%s356 + $0xc68] sm:$0xff]
        %v857 = vld [vmem:[%s356 + $0xc70] sm:$0xff]
        %v858 = vld [vmem:[%s356 + $0xc78] sm:$0xff]
        %v859 = vld [vmem:[%s356 + $0xc80] sm:$0xff]
        %v860 = vld [vmem:[%s356 + $0xc88] sm:$0xff]
        %v861 = vld [vmem:[%s356 + $0xc90] sm:$0xff]
        %v862 = vld [vmem:[%s356 + $0xc98] sm:$0xff]
        %v863 = vld [vmem:[%s356 + $0xca0] sm:$0xff]
        %v864 = vld [vmem:[%s356 + $0xca8] sm:$0xff]
        %v865 = vld [vmem:[%s356 + $0xcb0] sm:$0xff]
        %v866 = vld [vmem:[%s356 + $0xcb8] sm:$0xff]
        %v867 = vld [vmem:[%s356 + $0xcc0] sm:$0xff]
        %v868 = vld [vmem:[%s356 + $0xcc8] sm:$0xff]
        %v869 = vld [vmem:[%s356 + $0xcd0] sm:$0xff]
        %v870 = vld [vmem:[%s356 + $0xcd8] sm:$0xff]
        %v871 = vld [vmem:[%s356 + $0xce0] sm:$0xff]
        %v872 = vld [vmem:[%s356 + $0xce8] sm:$0xff]
        %v873 = vld [vmem:[%s356 + $0xcf0] sm:$0xff]
        %v874 = vld [vmem:[%s356 + $0xcf8] sm:$0xff]
        %v875 = vld [vmem:[%s356 + $0xd00] sm:$0xff]
        %v876 = vld [vmem:[%s356 + $0xd08] sm:$0xff]
        %v877 = vld [vmem:[%s356 + $0xd10] sm:$0xff]
        %v878 = vld [vmem:[%s356 + $0xd18] sm:$0xff]
        %v879 = vld [vmem:[%s356 + $0xd20] sm:$0xff]
        %v880 = vld [vmem:[%s356 + $0xd28] sm:$0xff]
        %v881 = vld [vmem:[%s356 + $0xd30] sm:$0xff]
        %v882 = vld [vmem:[%s356 + $0xd38] sm:$0xff]
        %v883 = vld [vmem:[%s356 + $0xd40] sm:$0xff]
        %v884 = vld [vmem:[%s356 + $0xd48] sm:$0xff]
        %v885 = vld [vmem:[%s356 + $0xd50] sm:$0xff]
        %v886 = vld [vmem:[%s356 + $0xd58] sm:$0xff]
        %v887 = vld [vmem:[%s356 + $0xd60] sm:$0xff]
        %v888 = vld [vmem:[%s356 + $0xd68] sm:$0xff]
        %v889 = vld [vmem:[%s356 + $0xd70] sm:$0xff]
        %v890 = vld [vmem:[%s356 + $0xd78] sm:$0xff]
        %v891 = vld [vmem:[%s356 + $0xd80] sm:$0xff]
        %v892 = vld [vmem:[%s356 + $0xd88] sm:$0xff]
        %v893 = vld [vmem:[%s356 + $0xd90] sm:$0xff]
        %v894 = vld [vmem:[%s356 + $0xd98] sm:$0xff]
        %v895 = vld [vmem:[%s356 + $0xda0] sm:$0xff]
        %v896 = vld [vmem:[%s356 + $0xda8] sm:$0xff]
        %v897 = vld [vmem:[%s356 + $0xdb0] sm:$0xff]
        %v898 = vld [vmem:[%s356 + $0xdb8] sm:$0xff]
        %v899 = vld [vmem:[%s356 + $0xdc0] sm:$0xff]
        %v900 = vld [vmem:[%s356 + $0xdc8] sm:$0xff]
        %v901 = vld [vmem:[%s356 + $0xdd0] sm:$0xff]
        %v902 = vld [vmem:[%s356 + $0xdd8] sm:$0xff]
        %v903 = vld [vmem:[%s356 + $0xde0] sm:$0xff]
        %v904 = vld [vmem:[%s356 + $0xde8] sm:$0xff]
        %v905 = vld [vmem:[%s356 + $0xdf0] sm:$0xff]
        %v906 = vld [vmem:[%s356 + $0xdf8] sm:$0xff]
        %v907 = vld [vmem:[%s356 + $0xe00] sm:$0xff]
        %v908 = vld [vmem:[%s356 + $0xe08] sm:$0xff]
        %v909 = vld [vmem:[%s356 + $0xe10] sm:$0xff]
        %v910 = vld [vmem:[%s356 + $0xe18] sm:$0xff]
        %v911 = vld [vmem:[%s356 + $0xe20] sm:$0xff]
        %v912 = vld [vmem:[%s356 + $0xe28] sm:$0xff]
        %v913 = vld [vmem:[%s356 + $0xe30] sm:$0xff]
        %v914 = vld [vmem:[%s356 + $0xe38] sm:$0xff]
        %v915 = vld [vmem:[%s356 + $0xe40] sm:$0xff]
        %v916 = vld [vmem:[%s356 + $0xe48] sm:$0xff]
        %v917 = vld [vmem:[%s356 + $0xe50] sm:$0xff]
        %v918 = vld [vmem:[%s356 + $0xe58] sm:$0xff]
        %v919 = vld [vmem:[%s356 + $0xe60] sm:$0xff]
        %v920 = vld [vmem:[%s356 + $0xe68] sm:$0xff]
        %v921 = vld [vmem:[%s356 + $0xe70] sm:$0xff]
        %v922 = vld [vmem:[%s356 + $0xe78] sm:$0xff]
        %v923 = vld [vmem:[%s356 + $0xe80] sm:$0xff]
        %v924 = vld [vmem:[%s356 + $0xe88] sm:$0xff]
        %v925 = vld [vmem:[%s356 + $0xe90] sm:$0xff]
        %v926 = vld [vmem:[%s356 + $0xe98] sm:$0xff]
        %v927 = vld [vmem:[%s356 + $0xea0] sm:$0xff]
        %v928 = vld [vmem:[%s356 + $0xea8] sm:$0xff]
        %v929 = vld [vmem:[%s356 + $0xeb0] sm:$0xff]
        %v930 = vld [vmem:[%s356 + $0xeb8] sm:$0xff]
        %v931 = vld [vmem:[%s356 + $0xec0] sm:$0xff]
        %v932 = vld [vmem:[%s356 + $0xec8] sm:$0xff]
        %v933 = vld [vmem:[%s356 + $0xed0] sm:$0xff]
        %v934 = vld [vmem:[%s356 + $0xed8] sm:$0xff]
        %v935 = vld [vmem:[%s356 + $0xee0] sm:$0xff]
        %v936 = vld [vmem:[%s356 + $0xee8] sm:$0xff]
        %v937 = vld [vmem:[%s356 + $0xef0] sm:$0xff]
        %v938 = vld [vmem:[%s356 + $0xef8] sm:$0xff]
        %v939 = vld [vmem:[%s356 + $0xf00] sm:$0xff]
        %v940 = vld [vmem:[%s356 + $0xf08] sm:$0xff]
        %v941 = vld [vmem:[%s356 + $0xf10] sm:$0xff]
        %v942 = vld [vmem:[%s356 + $0xf18] sm:$0xff]
        %v943 = vld [vmem:[%s356 + $0xf20] sm:$0xff]
        %v944 = vld [vmem:[%s356 + $0xf28] sm:$0xff]
        %v945 = vld [vmem:[%s356 + $0xf30] sm:$0xff]
        %v946 = vld [vmem:[%s356 + $0xf38] sm:$0xff]
        %v947 = vld [vmem:[%s356 + $0xf40] sm:$0xff]
        %v948 = vld [vmem:[%s356 + $0xf48] sm:$0xff]
        %v949 = vld [vmem:[%s356 + $0xf50] sm:$0xff]
        %v950 = vld [vmem:[%s356 + $0xf58] sm:$0xff]
        %v951 = vld [vmem:[%s356 + $0xf60] sm:$0xff]
        %v952 = vld [vmem:[%s356 + $0xf68] sm:$0xff]
        %v953 = vld [vmem:[%s356 + $0xf70] sm:$0xff]
        %v954 = vld [vmem:[%s356 + $0xf78] sm:$0xff]
        %v955 = vld [vmem:[%s356 + $0xf80] sm:$0xff]
        %v956 = vld [vmem:[%s356 + $0xf88] sm:$0xff]
        %v957 = vld [vmem:[%s356 + $0xf90] sm:$0xff]
        %v958 = vld [vmem:[%s356 + $0xf98] sm:$0xff]
        %v959 = vld [vmem:[%s356 + $0xfa0] sm:$0xff]
        %v960 = vld [vmem:[%s356 + $0xfa8] sm:$0xff]
        %v961 = vld [vmem:[%s356 + $0xfb0] sm:$0xff]
        %v962 = vld [vmem:[%s356 + $0xfb8] sm:$0xff]
        %v963 = vld [vmem:[%s356 + $0xfc0] sm:$0xff]
        %v964 = vld [vmem:[%s356 + $0xfc8] sm:$0xff]
        %v965 = vld [vmem:[%s356 + $0xfd0] sm:$0xff]
        %v966 = vld [vmem:[%s356 + $0xfd8] sm:$0xff]
        %v967 = vld [vmem:[%s356 + $0xfe0] sm:$0xff]
        %v968 = vld [vmem:[%s356 + $0xfe8] sm:$0xff]
        %v969 = vld [vmem:[%s356 + $0xff0] sm:$0xff]
        %v970 = vld [vmem:[%s356 + $0xff8] sm:$0xff]
        %v971 = vld [vmem:[%s441] ss:$8 sm:$0xf]
        %v972 = vld [vmem:[%s441] ss:$8 sm:$0xf0]
        %v973 = vor.u32 %v971, %v972
        %v975 = vlaneseq
        %v976 = vshrl.u32 %v975, 7
        %v977 = vsub.s32 0, %v976
        %v978 = vrot.slane %v973, %v977
        %v979 = vlaneseq
        %v980 = vshrl.u32 %v979, 7
        %v981 = vsub.s32 1, %v980
        %v982 = vrot.slane %v973, %v981
        %v983 = vlaneseq
        %v984 = vshrl.u32 %v983, 7
        %v985 = vsub.s32 2, %v984
        %v986 = vrot.slane %v973, %v985
        %v987 = vlaneseq
        %v988 = vshrl.u32 %v987, 7
        %v989 = vsub.s32 3, %v988
        %v990 = vrot.slane %v973, %v989
        %v991 = vlaneseq
        %v992 = vshrl.u32 %v991, 7
        %v993 = vsub.s32 4, %v992
        %v994 = vrot.slane %v973, %v993
        %v995 = vlaneseq
        %v996 = vshrl.u32 %v995, 7
        %v997 = vsub.s32 5, %v996
        %v998 = vrot.slane %v973, %v997
        %v999 = vlaneseq
        %v1000 = vshrl.u32 %v999, 7
        %v1001 = vsub.s32 6, %v1000
        %v1002 = vrot.slane %v973, %v1001
        %v1003 = vlaneseq
        %v1004 = vshrl.u32 %v1003, 7
        %v1005 = vsub.s32 7, %v1004
        %v1006 = vrot.slane %v973, %v1005
        %v1527 = vunpack.c.l.b16 %v459
        %v1528 = vunpack.c.h.b16 %v459
        %v1529 = vunpack.c.l.b16 %v460
        %v1530 = vunpack.c.h.b16 %v460
        %v1531 = vunpack.c.l.b16 %v461
        %v1532 = vunpack.c.h.b16 %v461
        %v1533 = vunpack.c.l.b16 %v462
        %v1534 = vunpack.c.h.b16 %v462
        %v1535 = vunpack.c.l.b16 %v463
        %v1536 = vunpack.c.h.b16 %v463
        %v1537 = vunpack.c.l.b16 %v464
        %v1538 = vunpack.c.h.b16 %v464
        %v1539 = vunpack.c.l.b16 %v465
        %v1540 = vunpack.c.h.b16 %v465
        %v1541 = vunpack.c.l.b16 %v466
        %v1542 = vunpack.c.h.b16 %v466
        %v1543 = vunpack.c.l.b16 %v467
        %v1544 = vunpack.c.h.b16 %v467
        %v1545 = vunpack.c.l.b16 %v468
        %v1546 = vunpack.c.h.b16 %v468
        %v1547 = vunpack.c.l.b16 %v469
        %v1548 = vunpack.c.h.b16 %v469
        %v1549 = vunpack.c.l.b16 %v470
        %v1550 = vunpack.c.h.b16 %v470
        %v1551 = vunpack.c.l.b16 %v471
        %v1552 = vunpack.c.h.b16 %v471
        %v1553 = vunpack.c.l.b16 %v472
        %v1554 = vunpack.c.h.b16 %v472
        %v1555 = vunpack.c.l.b16 %v473
        %v1556 = vunpack.c.h.b16 %v473
        %v1557 = vunpack.c.l.b16 %v474
        %v1558 = vunpack.c.h.b16 %v474
        %v1559 = vunpack.c.l.b16 %v475
        %v1560 = vunpack.c.h.b16 %v475
        %v1561 = vunpack.c.l.b16 %v476
        %v1562 = vunpack.c.h.b16 %v476
        %v1563 = vunpack.c.l.b16 %v477
        %v1564 = vunpack.c.h.b16 %v477
        %v1565 = vunpack.c.l.b16 %v478
        %v1566 = vunpack.c.h.b16 %v478
        %v1567 = vunpack.c.l.b16 %v479
        %v1568 = vunpack.c.h.b16 %v479
        %v1569 = vunpack.c.l.b16 %v480
        %v1570 = vunpack.c.h.b16 %v480
        %v1571 = vunpack.c.l.b16 %v481
        %v1572 = vunpack.c.h.b16 %v481
        %v1573 = vunpack.c.l.b16 %v482
        %v1574 = vunpack.c.h.b16 %v482
        %v1575 = vunpack.c.l.b16 %v483
        %v1576 = vunpack.c.h.b16 %v483
        %v1577 = vunpack.c.l.b16 %v484
        %v1578 = vunpack.c.h.b16 %v484
        %v1579 = vunpack.c.l.b16 %v485
        %v1580 = vunpack.c.h.b16 %v485
        %v1581 = vunpack.c.l.b16 %v486
        %v1582 = vunpack.c.h.b16 %v486
        %v1583 = vunpack.c.l.b16 %v487
        %v1584 = vunpack.c.h.b16 %v487
        %v1585 = vunpack.c.l.b16 %v488
        %v1586 = vunpack.c.h.b16 %v488
        %v1587 = vunpack.c.l.b16 %v489
        %v1588 = vunpack.c.h.b16 %v489
        %v1589 = vunpack.c.l.b16 %v490
        %v1590 = vunpack.c.h.b16 %v490
        %v1591 = vunpack.c.l.b16 %v491
        %v1592 = vunpack.c.h.b16 %v491
        %v1593 = vunpack.c.l.b16 %v492
        %v1594 = vunpack.c.h.b16 %v492
        %v1595 = vunpack.c.l.b16 %v493
        %v1596 = vunpack.c.h.b16 %v493
        %v1597 = vunpack.c.l.b16 %v494
        %v1598 = vunpack.c.h.b16 %v494
        %v1599 = vunpack.c.l.b16 %v495
        %v1600 = vunpack.c.h.b16 %v495
        %v1601 = vunpack.c.l.b16 %v496
        %v1602 = vunpack.c.h.b16 %v496
        %v1603 = vunpack.c.l.b16 %v497
        %v1604 = vunpack.c.h.b16 %v497
        %v1605 = vunpack.c.l.b16 %v498
        %v1606 = vunpack.c.h.b16 %v498
        %v1607 = vunpack.c.l.b16 %v499
        %v1608 = vunpack.c.h.b16 %v499
        %v1609 = vunpack.c.l.b16 %v500
        %v1610 = vunpack.c.h.b16 %v500
        %v1611 = vunpack.c.l.b16 %v501
        %v1612 = vunpack.c.h.b16 %v501
        %v1613 = vunpack.c.l.b16 %v502
        %v1614 = vunpack.c.h.b16 %v502
        %v1615 = vunpack.c.l.b16 %v503
        %v1616 = vunpack.c.h.b16 %v503
        %v1617 = vunpack.c.l.b16 %v504
        %v1618 = vunpack.c.h.b16 %v504
        %v1619 = vunpack.c.l.b16 %v505
        %v1620 = vunpack.c.h.b16 %v505
        %v1621 = vunpack.c.l.b16 %v506
        %v1622 = vunpack.c.h.b16 %v506
        %v1623 = vunpack.c.l.b16 %v507
        %v1624 = vunpack.c.h.b16 %v507
        %v1625 = vunpack.c.l.b16 %v508
        %v1626 = vunpack.c.h.b16 %v508
        %v1627 = vunpack.c.l.b16 %v509
        %v1628 = vunpack.c.h.b16 %v509
        %v1629 = vunpack.c.l.b16 %v510
        %v1630 = vunpack.c.h.b16 %v510
        %v1631 = vunpack.c.l.b16 %v511
        %v1632 = vunpack.c.h.b16 %v511
        %v1633 = vunpack.c.l.b16 %v512
        %v1634 = vunpack.c.h.b16 %v512
        %v1635 = vunpack.c.l.b16 %v513
        %v1636 = vunpack.c.h.b16 %v513
        %v1637 = vunpack.c.l.b16 %v514
        %v1638 = vunpack.c.h.b16 %v514
        %v1639 = vunpack.c.l.b16 %v515
        %v1640 = vunpack.c.h.b16 %v515
        %v1641 = vunpack.c.l.b16 %v516
        %v1642 = vunpack.c.h.b16 %v516
        %v1643 = vunpack.c.l.b16 %v517
        %v1644 = vunpack.c.h.b16 %v517
        %v1645 = vunpack.c.l.b16 %v518
        %v1646 = vunpack.c.h.b16 %v518
        %v1647 = vunpack.c.l.b16 %v519
        %v1648 = vunpack.c.h.b16 %v519
        %v1649 = vunpack.c.l.b16 %v520
        %v1650 = vunpack.c.h.b16 %v520
        %v1651 = vunpack.c.l.b16 %v521
        %v1652 = vunpack.c.h.b16 %v521
        %v1653 = vunpack.c.l.b16 %v522
        %v1654 = vunpack.c.h.b16 %v522
        %v1655 = vunpack.c.l.b16 %v523
        %v1656 = vunpack.c.h.b16 %v523
        %v1657 = vunpack.c.l.b16 %v524
        %v1658 = vunpack.c.h.b16 %v524
        %v1659 = vunpack.c.l.b16 %v525
        %v1660 = vunpack.c.h.b16 %v525
        %v1661 = vunpack.c.l.b16 %v526
        %v1662 = vunpack.c.h.b16 %v526
        %v1663 = vunpack.c.l.b16 %v527
        %v1664 = vunpack.c.h.b16 %v527
        %v1665 = vunpack.c.l.b16 %v528
        %v1666 = vunpack.c.h.b16 %v528
        %v1667 = vunpack.c.l.b16 %v529
        %v1668 = vunpack.c.h.b16 %v529
        %v1669 = vunpack.c.l.b16 %v530
        %v1670 = vunpack.c.h.b16 %v530
        %v1671 = vunpack.c.l.b16 %v531
        %v1672 = vunpack.c.h.b16 %v531
        %v1673 = vunpack.c.l.b16 %v532
        %v1674 = vunpack.c.h.b16 %v532
        %v1675 = vunpack.c.l.b16 %v533
        %v1676 = vunpack.c.h.b16 %v533
        %v1677 = vunpack.c.l.b16 %v534
        %v1678 = vunpack.c.h.b16 %v534
        %v1679 = vunpack.c.l.b16 %v535
        %v1680 = vunpack.c.h.b16 %v535
        %v1681 = vunpack.c.l.b16 %v536
        %v1682 = vunpack.c.h.b16 %v536
        %v1683 = vunpack.c.l.b16 %v537
        %v1684 = vunpack.c.h.b16 %v537
        %v1685 = vunpack.c.l.b16 %v538
        %v1686 = vunpack.c.h.b16 %v538
        %v1687 = vunpack.c.l.b16 %v539
        %v1688 = vunpack.c.h.b16 %v539
        %v1689 = vunpack.c.l.b16 %v540
        %v1690 = vunpack.c.h.b16 %v540
        %v1691 = vunpack.c.l.b16 %v541
        %v1692 = vunpack.c.h.b16 %v541
        %v1693 = vunpack.c.l.b16 %v542
        %v1694 = vunpack.c.h.b16 %v542
        %v1695 = vunpack.c.l.b16 %v543
        %v1696 = vunpack.c.h.b16 %v543
        %v1697 = vunpack.c.l.b16 %v544
        %v1698 = vunpack.c.h.b16 %v544
        %v1699 = vunpack.c.l.b16 %v545
        %v1700 = vunpack.c.h.b16 %v545
        %v1701 = vunpack.c.l.b16 %v546
        %v1702 = vunpack.c.h.b16 %v546
        %v1703 = vunpack.c.l.b16 %v547
        %v1704 = vunpack.c.h.b16 %v547
        %v1705 = vunpack.c.l.b16 %v548
        %v1706 = vunpack.c.h.b16 %v548
        %v1707 = vunpack.c.l.b16 %v549
        %v1708 = vunpack.c.h.b16 %v549
        %v1709 = vunpack.c.l.b16 %v550
        %v1710 = vunpack.c.h.b16 %v550
        %v1711 = vunpack.c.l.b16 %v551
        %v1712 = vunpack.c.h.b16 %v551
        %v1713 = vunpack.c.l.b16 %v552
        %v1714 = vunpack.c.h.b16 %v552
        %v1715 = vunpack.c.l.b16 %v553
        %v1716 = vunpack.c.h.b16 %v553
        %v1717 = vunpack.c.l.b16 %v554
        %v1718 = vunpack.c.h.b16 %v554
        %v1719 = vunpack.c.l.b16 %v555
        %v1720 = vunpack.c.h.b16 %v555
        %v1721 = vunpack.c.l.b16 %v556
        %v1722 = vunpack.c.h.b16 %v556
        %v1723 = vunpack.c.l.b16 %v557
        %v1724 = vunpack.c.h.b16 %v557
        %v1725 = vunpack.c.l.b16 %v558
        %v1726 = vunpack.c.h.b16 %v558
        %v1727 = vunpack.c.l.b16 %v559
        %v1728 = vunpack.c.h.b16 %v559
        %v1729 = vunpack.c.l.b16 %v560
        %v1730 = vunpack.c.h.b16 %v560
        %v1731 = vunpack.c.l.b16 %v561
        %v1732 = vunpack.c.h.b16 %v561
        %v1733 = vunpack.c.l.b16 %v562
        %v1734 = vunpack.c.h.b16 %v562
        %v1735 = vunpack.c.l.b16 %v563
        %v1736 = vunpack.c.h.b16 %v563
        %v1737 = vunpack.c.l.b16 %v564
        %v1738 = vunpack.c.h.b16 %v564
        %v1739 = vunpack.c.l.b16 %v565
        %v1740 = vunpack.c.h.b16 %v565
        %v1741 = vunpack.c.l.b16 %v566
        %v1742 = vunpack.c.h.b16 %v566
        %v1743 = vunpack.c.l.b16 %v567
        %v1744 = vunpack.c.h.b16 %v567
        %v1745 = vunpack.c.l.b16 %v568
        %v1746 = vunpack.c.h.b16 %v568
        %v1747 = vunpack.c.l.b16 %v569
        %v1748 = vunpack.c.h.b16 %v569
        %v1749 = vunpack.c.l.b16 %v570
        %v1750 = vunpack.c.h.b16 %v570
        %v1751 = vunpack.c.l.b16 %v571
        %v1752 = vunpack.c.h.b16 %v571
        %v1753 = vunpack.c.l.b16 %v572
        %v1754 = vunpack.c.h.b16 %v572
        %v1755 = vunpack.c.l.b16 %v573
        %v1756 = vunpack.c.h.b16 %v573
        %v1757 = vunpack.c.l.b16 %v574
        %v1758 = vunpack.c.h.b16 %v574
        %v1759 = vunpack.c.l.b16 %v575
        %v1760 = vunpack.c.h.b16 %v575
        %v1761 = vunpack.c.l.b16 %v576
        %v1762 = vunpack.c.h.b16 %v576
        %v1763 = vunpack.c.l.b16 %v577
        %v1764 = vunpack.c.h.b16 %v577
        %v1765 = vunpack.c.l.b16 %v578
        %v1766 = vunpack.c.h.b16 %v578
        %v1767 = vunpack.c.l.b16 %v579
        %v1768 = vunpack.c.h.b16 %v579
        %v1769 = vunpack.c.l.b16 %v580
        %v1770 = vunpack.c.h.b16 %v580
        %v1771 = vunpack.c.l.b16 %v581
        %v1772 = vunpack.c.h.b16 %v581
        %v1773 = vunpack.c.l.b16 %v582
        %v1774 = vunpack.c.h.b16 %v582
        %v1775 = vunpack.c.l.b16 %v583
        %v1776 = vunpack.c.h.b16 %v583
        %v1777 = vunpack.c.l.b16 %v584
        %v1778 = vunpack.c.h.b16 %v584
        %v1779 = vunpack.c.l.b16 %v585
        %v1780 = vunpack.c.h.b16 %v585
        %v1781 = vunpack.c.l.b16 %v586
        %v1782 = vunpack.c.h.b16 %v586
        %v1783 = vunpack.c.l.b16 %v587
        %v1784 = vunpack.c.h.b16 %v587
        %v1785 = vunpack.c.l.b16 %v588
        %v1786 = vunpack.c.h.b16 %v588
        %v1787 = vunpack.c.l.b16 %v589
        %v1788 = vunpack.c.h.b16 %v589
        %v1789 = vunpack.c.l.b16 %v590
        %v1790 = vunpack.c.h.b16 %v590
        %v1791 = vunpack.c.l.b16 %v591
        %v1792 = vunpack.c.h.b16 %v591
        %v1793 = vunpack.c.l.b16 %v592
        %v1794 = vunpack.c.h.b16 %v592
        %v1795 = vunpack.c.l.b16 %v593
        %v1796 = vunpack.c.h.b16 %v593
        %v1797 = vunpack.c.l.b16 %v594
        %v1798 = vunpack.c.h.b16 %v594
        %v1799 = vunpack.c.l.b16 %v595
        %v1800 = vunpack.c.h.b16 %v595
        %v1801 = vunpack.c.l.b16 %v596
        %v1802 = vunpack.c.h.b16 %v596
        %v1803 = vunpack.c.l.b16 %v597
        %v1804 = vunpack.c.h.b16 %v597
        %v1805 = vunpack.c.l.b16 %v598
        %v1806 = vunpack.c.h.b16 %v598
        %v1807 = vunpack.c.l.b16 %v599
        %v1808 = vunpack.c.h.b16 %v599
        %v1809 = vunpack.c.l.b16 %v600
        %v1810 = vunpack.c.h.b16 %v600
        %v1811 = vunpack.c.l.b16 %v601
        %v1812 = vunpack.c.h.b16 %v601
        %v1813 = vunpack.c.l.b16 %v602
        %v1814 = vunpack.c.h.b16 %v602
        %v1815 = vunpack.c.l.b16 %v603
        %v1816 = vunpack.c.h.b16 %v603
        %v1817 = vunpack.c.l.b16 %v604
        %v1818 = vunpack.c.h.b16 %v604
        %v1819 = vunpack.c.l.b16 %v605
        %v1820 = vunpack.c.h.b16 %v605
        %v1821 = vunpack.c.l.b16 %v606
        %v1822 = vunpack.c.h.b16 %v606
        %v1823 = vunpack.c.l.b16 %v607
        %v1824 = vunpack.c.h.b16 %v607
        %v1825 = vunpack.c.l.b16 %v608
        %v1826 = vunpack.c.h.b16 %v608
        %v1827 = vunpack.c.l.b16 %v609
        %v1828 = vunpack.c.h.b16 %v609
        %v1829 = vunpack.c.l.b16 %v610
        %v1830 = vunpack.c.h.b16 %v610
        %v1831 = vunpack.c.l.b16 %v611
        %v1832 = vunpack.c.h.b16 %v611
        %v1833 = vunpack.c.l.b16 %v612
        %v1834 = vunpack.c.h.b16 %v612
        %v1835 = vunpack.c.l.b16 %v613
        %v1836 = vunpack.c.h.b16 %v613
        %v1837 = vunpack.c.l.b16 %v614
        %v1838 = vunpack.c.h.b16 %v614
        %v1839 = vunpack.c.l.b16 %v615
        %v1840 = vunpack.c.h.b16 %v615
        %v1841 = vunpack.c.l.b16 %v616
        %v1842 = vunpack.c.h.b16 %v616
        %v1843 = vunpack.c.l.b16 %v617
        %v1844 = vunpack.c.h.b16 %v617
        %v1845 = vunpack.c.l.b16 %v618
        %v1846 = vunpack.c.h.b16 %v618
        %v1847 = vunpack.c.l.b16 %v619
        %v1848 = vunpack.c.h.b16 %v619
        %v1849 = vunpack.c.l.b16 %v620
        %v1850 = vunpack.c.h.b16 %v620
        %v1851 = vunpack.c.l.b16 %v621
        %v1852 = vunpack.c.h.b16 %v621
        %v1853 = vunpack.c.l.b16 %v622
        %v1854 = vunpack.c.h.b16 %v622
        %v1855 = vunpack.c.l.b16 %v623
        %v1856 = vunpack.c.h.b16 %v623
        %v1857 = vunpack.c.l.b16 %v624
        %v1858 = vunpack.c.h.b16 %v624
        %v1859 = vunpack.c.l.b16 %v625
        %v1860 = vunpack.c.h.b16 %v625
        %v1861 = vunpack.c.l.b16 %v626
        %v1862 = vunpack.c.h.b16 %v626
        %v1863 = vunpack.c.l.b16 %v627
        %v1864 = vunpack.c.h.b16 %v627
        %v1865 = vunpack.c.l.b16 %v628
        %v1866 = vunpack.c.h.b16 %v628
        %v1867 = vunpack.c.l.b16 %v629
        %v1868 = vunpack.c.h.b16 %v629
        %v1869 = vunpack.c.l.b16 %v630
        %v1870 = vunpack.c.h.b16 %v630
        %v1871 = vunpack.c.l.b16 %v631
        %v1872 = vunpack.c.h.b16 %v631
        %v1873 = vunpack.c.l.b16 %v632
        %v1874 = vunpack.c.h.b16 %v632
        %v1875 = vunpack.c.l.b16 %v633
        %v1876 = vunpack.c.h.b16 %v633
        %v1877 = vunpack.c.l.b16 %v634
        %v1878 = vunpack.c.h.b16 %v634
        %v1879 = vunpack.c.l.b16 %v635
        %v1880 = vunpack.c.h.b16 %v635
        %v1881 = vunpack.c.l.b16 %v636
        %v1882 = vunpack.c.h.b16 %v636
        %v1883 = vunpack.c.l.b16 %v637
        %v1884 = vunpack.c.h.b16 %v637
        %v1885 = vunpack.c.l.b16 %v638
        %v1886 = vunpack.c.h.b16 %v638
        %v1887 = vunpack.c.l.b16 %v639
        %v1888 = vunpack.c.h.b16 %v639
        %v1889 = vunpack.c.l.b16 %v640
        %v1890 = vunpack.c.h.b16 %v640
        %v1891 = vunpack.c.l.b16 %v641
        %v1892 = vunpack.c.h.b16 %v641
        %v1893 = vunpack.c.l.b16 %v642
        %v1894 = vunpack.c.h.b16 %v642
        %v1895 = vunpack.c.l.b16 %v643
        %v1896 = vunpack.c.h.b16 %v643
        %v1897 = vunpack.c.l.b16 %v644
        %v1898 = vunpack.c.h.b16 %v644
        %v1899 = vunpack.c.l.b16 %v645
        %v1900 = vunpack.c.h.b16 %v645
        %v1901 = vunpack.c.l.b16 %v646
        %v1902 = vunpack.c.h.b16 %v646
        %v1903 = vunpack.c.l.b16 %v647
        %v1904 = vunpack.c.h.b16 %v647
        %v1905 = vunpack.c.l.b16 %v648
        %v1906 = vunpack.c.h.b16 %v648
        %v1907 = vunpack.c.l.b16 %v649
        %v1908 = vunpack.c.h.b16 %v649
        %v1909 = vunpack.c.l.b16 %v650
        %v1910 = vunpack.c.h.b16 %v650
        %v1911 = vunpack.c.l.b16 %v651
        %v1912 = vunpack.c.h.b16 %v651
        %v1913 = vunpack.c.l.b16 %v652
        %v1914 = vunpack.c.h.b16 %v652
        %v1915 = vunpack.c.l.b16 %v653
        %v1916 = vunpack.c.h.b16 %v653
        %v1917 = vunpack.c.l.b16 %v654
        %v1918 = vunpack.c.h.b16 %v654
        %v1919 = vunpack.c.l.b16 %v655
        %v1920 = vunpack.c.h.b16 %v655
        %v1921 = vunpack.c.l.b16 %v656
        %v1922 = vunpack.c.h.b16 %v656
        %v1923 = vunpack.c.l.b16 %v657
        %v1924 = vunpack.c.h.b16 %v657
        %v1925 = vunpack.c.l.b16 %v658
        %v1926 = vunpack.c.h.b16 %v658
        %v1927 = vunpack.c.l.b16 %v659
        %v1928 = vunpack.c.h.b16 %v659
        %v1929 = vunpack.c.l.b16 %v660
        %v1930 = vunpack.c.h.b16 %v660
        %v1931 = vunpack.c.l.b16 %v661
        %v1932 = vunpack.c.h.b16 %v661
        %v1933 = vunpack.c.l.b16 %v662
        %v1934 = vunpack.c.h.b16 %v662
        %v1935 = vunpack.c.l.b16 %v663
        %v1936 = vunpack.c.h.b16 %v663
        %v1937 = vunpack.c.l.b16 %v664
        %v1938 = vunpack.c.h.b16 %v664
        %v1939 = vunpack.c.l.b16 %v665
        %v1940 = vunpack.c.h.b16 %v665
        %v1941 = vunpack.c.l.b16 %v666
        %v1942 = vunpack.c.h.b16 %v666
        %v1943 = vunpack.c.l.b16 %v667
        %v1944 = vunpack.c.h.b16 %v667
        %v1945 = vunpack.c.l.b16 %v668
        %v1946 = vunpack.c.h.b16 %v668
        %v1947 = vunpack.c.l.b16 %v669
        %v1948 = vunpack.c.h.b16 %v669
        %v1949 = vunpack.c.l.b16 %v670
        %v1950 = vunpack.c.h.b16 %v670
        %v1951 = vunpack.c.l.b16 %v671
        %v1952 = vunpack.c.h.b16 %v671
        %v1953 = vunpack.c.l.b16 %v672
        %v1954 = vunpack.c.h.b16 %v672
        %v1955 = vunpack.c.l.b16 %v673
        %v1956 = vunpack.c.h.b16 %v673
        %v1957 = vunpack.c.l.b16 %v674
        %v1958 = vunpack.c.h.b16 %v674
        %v1959 = vunpack.c.l.b16 %v675
        %v1960 = vunpack.c.h.b16 %v675
        %v1961 = vunpack.c.l.b16 %v676
        %v1962 = vunpack.c.h.b16 %v676
        %v1963 = vunpack.c.l.b16 %v677
        %v1964 = vunpack.c.h.b16 %v677
        %v1965 = vunpack.c.l.b16 %v678
        %v1966 = vunpack.c.h.b16 %v678
        %v1967 = vunpack.c.l.b16 %v679
        %v1968 = vunpack.c.h.b16 %v679
        %v1969 = vunpack.c.l.b16 %v680
        %v1970 = vunpack.c.h.b16 %v680
        %v1971 = vunpack.c.l.b16 %v681
        %v1972 = vunpack.c.h.b16 %v681
        %v1973 = vunpack.c.l.b16 %v682
        %v1974 = vunpack.c.h.b16 %v682
        %v1975 = vunpack.c.l.b16 %v683
        %v1976 = vunpack.c.h.b16 %v683
        %v1977 = vunpack.c.l.b16 %v684
        %v1978 = vunpack.c.h.b16 %v684
        %v1979 = vunpack.c.l.b16 %v685
        %v1980 = vunpack.c.h.b16 %v685
        %v1981 = vunpack.c.l.b16 %v686
        %v1982 = vunpack.c.h.b16 %v686
        %v1983 = vunpack.c.l.b16 %v687
        %v1984 = vunpack.c.h.b16 %v687
        %v1985 = vunpack.c.l.b16 %v688
        %v1986 = vunpack.c.h.b16 %v688
        %v1987 = vunpack.c.l.b16 %v689
        %v1988 = vunpack.c.h.b16 %v689
        %v1989 = vunpack.c.l.b16 %v690
        %v1990 = vunpack.c.h.b16 %v690
        %v1991 = vunpack.c.l.b16 %v691
        %v1992 = vunpack.c.h.b16 %v691
        %v1993 = vunpack.c.l.b16 %v692
        %v1994 = vunpack.c.h.b16 %v692
        %v1995 = vunpack.c.l.b16 %v693
        %v1996 = vunpack.c.h.b16 %v693
        %v1997 = vunpack.c.l.b16 %v694
        %v1998 = vunpack.c.h.b16 %v694
        %v1999 = vunpack.c.l.b16 %v695
        %v2000 = vunpack.c.h.b16 %v695
        %v2001 = vunpack.c.l.b16 %v696
        %v2002 = vunpack.c.h.b16 %v696
        %v2003 = vunpack.c.l.b16 %v697
        %v2004 = vunpack.c.h.b16 %v697
        %v2005 = vunpack.c.l.b16 %v698
        %v2006 = vunpack.c.h.b16 %v698
        %v2007 = vunpack.c.l.b16 %v699
        %v2008 = vunpack.c.h.b16 %v699
        %v2009 = vunpack.c.l.b16 %v700
        %v2010 = vunpack.c.h.b16 %v700
        %v2011 = vunpack.c.l.b16 %v701
        %v2012 = vunpack.c.h.b16 %v701
        %v2013 = vunpack.c.l.b16 %v702
        %v2014 = vunpack.c.h.b16 %v702
        %v2015 = vunpack.c.l.b16 %v703
        %v2016 = vunpack.c.h.b16 %v703
        %v2017 = vunpack.c.l.b16 %v704
        %v2018 = vunpack.c.h.b16 %v704
        %v2019 = vunpack.c.l.b16 %v705
        %v2020 = vunpack.c.h.b16 %v705
        %v2021 = vunpack.c.l.b16 %v706
        %v2022 = vunpack.c.h.b16 %v706
        %v2023 = vunpack.c.l.b16 %v707
        %v2024 = vunpack.c.h.b16 %v707
        %v2025 = vunpack.c.l.b16 %v708
        %v2026 = vunpack.c.h.b16 %v708
        %v2027 = vunpack.c.l.b16 %v709
        %v2028 = vunpack.c.h.b16 %v709
        %v2029 = vunpack.c.l.b16 %v710
        %v2030 = vunpack.c.h.b16 %v710
        %v2031 = vunpack.c.l.b16 %v711
        %v2032 = vunpack.c.h.b16 %v711
        %v2033 = vunpack.c.l.b16 %v712
        %v2034 = vunpack.c.h.b16 %v712
        %v2035 = vunpack.c.l.b16 %v713
        %v2036 = vunpack.c.h.b16 %v713
        %v2037 = vunpack.c.l.b16 %v714
        %v2038 = vunpack.c.h.b16 %v714
        %v2039 = vunpack.c.l.b16 %v715
        %v2040 = vunpack.c.h.b16 %v715
        %v2041 = vunpack.c.l.b16 %v716
        %v2042 = vunpack.c.h.b16 %v716
        %v2043 = vunpack.c.l.b16 %v717
        %v2044 = vunpack.c.h.b16 %v717
        %v2045 = vunpack.c.l.b16 %v718
        %v2046 = vunpack.c.h.b16 %v718
        %v2047 = vunpack.c.l.b16 %v719
        %v2048 = vunpack.c.h.b16 %v719
        %v2049 = vunpack.c.l.b16 %v720
        %v2050 = vunpack.c.h.b16 %v720
        %v2051 = vunpack.c.l.b16 %v721
        %v2052 = vunpack.c.h.b16 %v721
        %v2053 = vunpack.c.l.b16 %v722
        %v2054 = vunpack.c.h.b16 %v722
        %v2055 = vunpack.c.l.b16 %v723
        %v2056 = vunpack.c.h.b16 %v723
        %v2057 = vunpack.c.l.b16 %v724
        %v2058 = vunpack.c.h.b16 %v724
        %v2059 = vunpack.c.l.b16 %v725
        %v2060 = vunpack.c.h.b16 %v725
        %v2061 = vunpack.c.l.b16 %v726
        %v2062 = vunpack.c.h.b16 %v726
        %v2063 = vunpack.c.l.b16 %v727
        %v2064 = vunpack.c.h.b16 %v727
        %v2065 = vunpack.c.l.b16 %v728
        %v2066 = vunpack.c.h.b16 %v728
        %v2067 = vunpack.c.l.b16 %v729
        %v2068 = vunpack.c.h.b16 %v729
        %v2069 = vunpack.c.l.b16 %v730
        %v2070 = vunpack.c.h.b16 %v730
        %v2071 = vunpack.c.l.b16 %v731
        %v2072 = vunpack.c.h.b16 %v731
        %v2073 = vunpack.c.l.b16 %v732
        %v2074 = vunpack.c.h.b16 %v732
        %v2075 = vunpack.c.l.b16 %v733
        %v2076 = vunpack.c.h.b16 %v733
        %v2077 = vunpack.c.l.b16 %v734
        %v2078 = vunpack.c.h.b16 %v734
        %v2079 = vunpack.c.l.b16 %v735
        %v2080 = vunpack.c.h.b16 %v735
        %v2081 = vunpack.c.l.b16 %v736
        %v2082 = vunpack.c.h.b16 %v736
        %v2083 = vunpack.c.l.b16 %v737
        %v2084 = vunpack.c.h.b16 %v737
        %v2085 = vunpack.c.l.b16 %v738
        %v2086 = vunpack.c.h.b16 %v738
        %v2087 = vunpack.c.l.b16 %v739
        %v2088 = vunpack.c.h.b16 %v739
        %v2089 = vunpack.c.l.b16 %v740
        %v2090 = vunpack.c.h.b16 %v740
        %v2091 = vunpack.c.l.b16 %v741
        %v2092 = vunpack.c.h.b16 %v741
        %v2093 = vunpack.c.l.b16 %v742
        %v2094 = vunpack.c.h.b16 %v742
        %v2095 = vunpack.c.l.b16 %v743
        %v2096 = vunpack.c.h.b16 %v743
        %v2097 = vunpack.c.l.b16 %v744
        %v2098 = vunpack.c.h.b16 %v744
        %v2099 = vunpack.c.l.b16 %v745
        %v2100 = vunpack.c.h.b16 %v745
        %v2101 = vunpack.c.l.b16 %v746
        %v2102 = vunpack.c.h.b16 %v746
        %v2103 = vunpack.c.l.b16 %v747
        %v2104 = vunpack.c.h.b16 %v747
        %v2105 = vunpack.c.l.b16 %v748
        %v2106 = vunpack.c.h.b16 %v748
        %v2107 = vunpack.c.l.b16 %v749
        %v2108 = vunpack.c.h.b16 %v749
        %v2109 = vunpack.c.l.b16 %v750
        %v2110 = vunpack.c.h.b16 %v750
        %v2111 = vunpack.c.l.b16 %v751
        %v2112 = vunpack.c.h.b16 %v751
        %v2113 = vunpack.c.l.b16 %v752
        %v2114 = vunpack.c.h.b16 %v752
        %v2115 = vunpack.c.l.b16 %v753
        %v2116 = vunpack.c.h.b16 %v753
        %v2117 = vunpack.c.l.b16 %v754
        %v2118 = vunpack.c.h.b16 %v754
        %v2119 = vunpack.c.l.b16 %v755
        %v2120 = vunpack.c.h.b16 %v755
        %v2121 = vunpack.c.l.b16 %v756
        %v2122 = vunpack.c.h.b16 %v756
        %v2123 = vunpack.c.l.b16 %v757
        %v2124 = vunpack.c.h.b16 %v757
        %v2125 = vunpack.c.l.b16 %v758
        %v2126 = vunpack.c.h.b16 %v758
        %v2127 = vunpack.c.l.b16 %v759
        %v2128 = vunpack.c.h.b16 %v759
        %v2129 = vunpack.c.l.b16 %v760
        %v2130 = vunpack.c.h.b16 %v760
        %v2131 = vunpack.c.l.b16 %v761
        %v2132 = vunpack.c.h.b16 %v761
        %v2133 = vunpack.c.l.b16 %v762
        %v2134 = vunpack.c.h.b16 %v762
        %v2135 = vunpack.c.l.b16 %v763
        %v2136 = vunpack.c.h.b16 %v763
        %v2137 = vunpack.c.l.b16 %v764
        %v2138 = vunpack.c.h.b16 %v764
        %v2139 = vunpack.c.l.b16 %v765
        %v2140 = vunpack.c.h.b16 %v765
        %v2141 = vunpack.c.l.b16 %v766
        %v2142 = vunpack.c.h.b16 %v766
        %v2143 = vunpack.c.l.b16 %v767
        %v2144 = vunpack.c.h.b16 %v767
        %v2145 = vunpack.c.l.b16 %v768
        %v2146 = vunpack.c.h.b16 %v768
        %v2147 = vunpack.c.l.b16 %v769
        %v2148 = vunpack.c.h.b16 %v769
        %v2149 = vunpack.c.l.b16 %v770
        %v2150 = vunpack.c.h.b16 %v770
        %v2151 = vunpack.c.l.b16 %v771
        %v2152 = vunpack.c.h.b16 %v771
        %v2153 = vunpack.c.l.b16 %v772
        %v2154 = vunpack.c.h.b16 %v772
        %v2155 = vunpack.c.l.b16 %v773
        %v2156 = vunpack.c.h.b16 %v773
        %v2157 = vunpack.c.l.b16 %v774
        %v2158 = vunpack.c.h.b16 %v774
        %v2159 = vunpack.c.l.b16 %v775
        %v2160 = vunpack.c.h.b16 %v775
        %v2161 = vunpack.c.l.b16 %v776
        %v2162 = vunpack.c.h.b16 %v776
        %v2163 = vunpack.c.l.b16 %v777
        %v2164 = vunpack.c.h.b16 %v777
        %v2165 = vunpack.c.l.b16 %v778
        %v2166 = vunpack.c.h.b16 %v778
        %v2167 = vunpack.c.l.b16 %v779
        %v2168 = vunpack.c.h.b16 %v779
        %v2169 = vunpack.c.l.b16 %v780
        %v2170 = vunpack.c.h.b16 %v780
        %v2171 = vunpack.c.l.b16 %v781
        %v2172 = vunpack.c.h.b16 %v781
        %v2173 = vunpack.c.l.b16 %v782
        %v2174 = vunpack.c.h.b16 %v782
        %v2175 = vunpack.c.l.b16 %v783
        %v2176 = vunpack.c.h.b16 %v783
        %v2177 = vunpack.c.l.b16 %v784
        %v2178 = vunpack.c.h.b16 %v784
        %v2179 = vunpack.c.l.b16 %v785
        %v2180 = vunpack.c.h.b16 %v785
        %v2181 = vunpack.c.l.b16 %v786
        %v2182 = vunpack.c.h.b16 %v786
        %v2183 = vunpack.c.l.b16 %v787
        %v2184 = vunpack.c.h.b16 %v787
        %v2185 = vunpack.c.l.b16 %v788
        %v2186 = vunpack.c.h.b16 %v788
        %v2187 = vunpack.c.l.b16 %v789
        %v2188 = vunpack.c.h.b16 %v789
        %v2189 = vunpack.c.l.b16 %v790
        %v2190 = vunpack.c.h.b16 %v790
        %v2191 = vunpack.c.l.b16 %v791
        %v2192 = vunpack.c.h.b16 %v791
        %v2193 = vunpack.c.l.b16 %v792
        %v2194 = vunpack.c.h.b16 %v792
        %v2195 = vunpack.c.l.b16 %v793
        %v2196 = vunpack.c.h.b16 %v793
        %v2197 = vunpack.c.l.b16 %v794
        %v2198 = vunpack.c.h.b16 %v794
        %v2199 = vunpack.c.l.b16 %v795
        %v2200 = vunpack.c.h.b16 %v795
        %v2201 = vunpack.c.l.b16 %v796
        %v2202 = vunpack.c.h.b16 %v796
        %v2203 = vunpack.c.l.b16 %v797
        %v2204 = vunpack.c.h.b16 %v797
        %v2205 = vunpack.c.l.b16 %v798
        %v2206 = vunpack.c.h.b16 %v798
        %v2207 = vunpack.c.l.b16 %v799
        %v2208 = vunpack.c.h.b16 %v799
        %v2209 = vunpack.c.l.b16 %v800
        %v2210 = vunpack.c.h.b16 %v800
        %v2211 = vunpack.c.l.b16 %v801
        %v2212 = vunpack.c.h.b16 %v801
        %v2213 = vunpack.c.l.b16 %v802
        %v2214 = vunpack.c.h.b16 %v802
        %v2215 = vunpack.c.l.b16 %v803
        %v2216 = vunpack.c.h.b16 %v803
        %v2217 = vunpack.c.l.b16 %v804
        %v2218 = vunpack.c.h.b16 %v804
        %v2219 = vunpack.c.l.b16 %v805
        %v2220 = vunpack.c.h.b16 %v805
        %v2221 = vunpack.c.l.b16 %v806
        %v2222 = vunpack.c.h.b16 %v806
        %v2223 = vunpack.c.l.b16 %v807
        %v2224 = vunpack.c.h.b16 %v807
        %v2225 = vunpack.c.l.b16 %v808
        %v2226 = vunpack.c.h.b16 %v808
        %v2227 = vunpack.c.l.b16 %v809
        %v2228 = vunpack.c.h.b16 %v809
        %v2229 = vunpack.c.l.b16 %v810
        %v2230 = vunpack.c.h.b16 %v810
        %v2231 = vunpack.c.l.b16 %v811
        %v2232 = vunpack.c.h.b16 %v811
        %v2233 = vunpack.c.l.b16 %v812
        %v2234 = vunpack.c.h.b16 %v812
        %v2235 = vunpack.c.l.b16 %v813
        %v2236 = vunpack.c.h.b16 %v813
        %v2237 = vunpack.c.l.b16 %v814
        %v2238 = vunpack.c.h.b16 %v814
        %v2239 = vunpack.c.l.b16 %v815
        %v2240 = vunpack.c.h.b16 %v815
        %v2241 = vunpack.c.l.b16 %v816
        %v2242 = vunpack.c.h.b16 %v816
        %v2243 = vunpack.c.l.b16 %v817
        %v2244 = vunpack.c.h.b16 %v817
        %v2245 = vunpack.c.l.b16 %v818
        %v2246 = vunpack.c.h.b16 %v818
        %v2247 = vunpack.c.l.b16 %v819
        %v2248 = vunpack.c.h.b16 %v819
        %v2249 = vunpack.c.l.b16 %v820
        %v2250 = vunpack.c.h.b16 %v820
        %v2251 = vunpack.c.l.b16 %v821
        %v2252 = vunpack.c.h.b16 %v821
        %v2253 = vunpack.c.l.b16 %v822
        %v2254 = vunpack.c.h.b16 %v822
        %v2255 = vunpack.c.l.b16 %v823
        %v2256 = vunpack.c.h.b16 %v823
        %v2257 = vunpack.c.l.b16 %v824
        %v2258 = vunpack.c.h.b16 %v824
        %v2259 = vunpack.c.l.b16 %v825
        %v2260 = vunpack.c.h.b16 %v825
        %v2261 = vunpack.c.l.b16 %v826
        %v2262 = vunpack.c.h.b16 %v826
        %v2263 = vunpack.c.l.b16 %v827
        %v2264 = vunpack.c.h.b16 %v827
        %v2265 = vunpack.c.l.b16 %v828
        %v2266 = vunpack.c.h.b16 %v828
        %v2267 = vunpack.c.l.b16 %v829
        %v2268 = vunpack.c.h.b16 %v829
        %v2269 = vunpack.c.l.b16 %v830
        %v2270 = vunpack.c.h.b16 %v830
        %v2271 = vunpack.c.l.b16 %v831
        %v2272 = vunpack.c.h.b16 %v831
        %v2273 = vunpack.c.l.b16 %v832
        %v2274 = vunpack.c.h.b16 %v832
        %v2275 = vunpack.c.l.b16 %v833
        %v2276 = vunpack.c.h.b16 %v833
        %v2277 = vunpack.c.l.b16 %v834
        %v2278 = vunpack.c.h.b16 %v834
        %v2279 = vunpack.c.l.b16 %v835
        %v2280 = vunpack.c.h.b16 %v835
        %v2281 = vunpack.c.l.b16 %v836
        %v2282 = vunpack.c.h.b16 %v836
        %v2283 = vunpack.c.l.b16 %v837
        %v2284 = vunpack.c.h.b16 %v837
        %v2285 = vunpack.c.l.b16 %v838
        %v2286 = vunpack.c.h.b16 %v838
        %v2287 = vunpack.c.l.b16 %v839
        %v2288 = vunpack.c.h.b16 %v839
        %v2289 = vunpack.c.l.b16 %v840
        %v2290 = vunpack.c.h.b16 %v840
        %v2291 = vunpack.c.l.b16 %v841
        %v2292 = vunpack.c.h.b16 %v841
        %v2293 = vunpack.c.l.b16 %v842
        %v2294 = vunpack.c.h.b16 %v842
        %v2295 = vunpack.c.l.b16 %v843
        %v2296 = vunpack.c.h.b16 %v843
        %v2297 = vunpack.c.l.b16 %v844
        %v2298 = vunpack.c.h.b16 %v844
        %v2299 = vunpack.c.l.b16 %v845
        %v2300 = vunpack.c.h.b16 %v845
        %v2301 = vunpack.c.l.b16 %v846
        %v2302 = vunpack.c.h.b16 %v846
        %v2303 = vunpack.c.l.b16 %v847
        %v2304 = vunpack.c.h.b16 %v847
        %v2305 = vunpack.c.l.b16 %v848
        %v2306 = vunpack.c.h.b16 %v848
        %v2307 = vunpack.c.l.b16 %v849
        %v2308 = vunpack.c.h.b16 %v849
        %v2309 = vunpack.c.l.b16 %v850
        %v2310 = vunpack.c.h.b16 %v850
        %v2311 = vunpack.c.l.b16 %v851
        %v2312 = vunpack.c.h.b16 %v851
        %v2313 = vunpack.c.l.b16 %v852
        %v2314 = vunpack.c.h.b16 %v852
        %v2315 = vunpack.c.l.b16 %v853
        %v2316 = vunpack.c.h.b16 %v853
        %v2317 = vunpack.c.l.b16 %v854
        %v2318 = vunpack.c.h.b16 %v854
        %v2319 = vunpack.c.l.b16 %v855
        %v2320 = vunpack.c.h.b16 %v855
        %v2321 = vunpack.c.l.b16 %v856
        %v2322 = vunpack.c.h.b16 %v856
        %v2323 = vunpack.c.l.b16 %v857
        %v2324 = vunpack.c.h.b16 %v857
        %v2325 = vunpack.c.l.b16 %v858
        %v2326 = vunpack.c.h.b16 %v858
        %v2327 = vunpack.c.l.b16 %v859
        %v2328 = vunpack.c.h.b16 %v859
        %v2329 = vunpack.c.l.b16 %v860
        %v2330 = vunpack.c.h.b16 %v860
        %v2331 = vunpack.c.l.b16 %v861
        %v2332 = vunpack.c.h.b16 %v861
        %v2333 = vunpack.c.l.b16 %v862
        %v2334 = vunpack.c.h.b16 %v862
        %v2335 = vunpack.c.l.b16 %v863
        %v2336 = vunpack.c.h.b16 %v863
        %v2337 = vunpack.c.l.b16 %v864
        %v2338 = vunpack.c.h.b16 %v864
        %v2339 = vunpack.c.l.b16 %v865
        %v2340 = vunpack.c.h.b16 %v865
        %v2341 = vunpack.c.l.b16 %v866
        %v2342 = vunpack.c.h.b16 %v866
        %v2343 = vunpack.c.l.b16 %v867
        %v2344 = vunpack.c.h.b16 %v867
        %v2345 = vunpack.c.l.b16 %v868
        %v2346 = vunpack.c.h.b16 %v868
        %v2347 = vunpack.c.l.b16 %v869
        %v2348 = vunpack.c.h.b16 %v869
        %v2349 = vunpack.c.l.b16 %v870
        %v2350 = vunpack.c.h.b16 %v870
        %v2351 = vunpack.c.l.b16 %v871
        %v2352 = vunpack.c.h.b16 %v871
        %v2353 = vunpack.c.l.b16 %v872
        %v2354 = vunpack.c.h.b16 %v872
        %v2355 = vunpack.c.l.b16 %v873
        %v2356 = vunpack.c.h.b16 %v873
        %v2357 = vunpack.c.l.b16 %v874
        %v2358 = vunpack.c.h.b16 %v874
        %v2359 = vunpack.c.l.b16 %v875
        %v2360 = vunpack.c.h.b16 %v875
        %v2361 = vunpack.c.l.b16 %v876
        %v2362 = vunpack.c.h.b16 %v876
        %v2363 = vunpack.c.l.b16 %v877
        %v2364 = vunpack.c.h.b16 %v877
        %v2365 = vunpack.c.l.b16 %v878
        %v2366 = vunpack.c.h.b16 %v878
        %v2367 = vunpack.c.l.b16 %v879
        %v2368 = vunpack.c.h.b16 %v879
        %v2369 = vunpack.c.l.b16 %v880
        %v2370 = vunpack.c.h.b16 %v880
        %v2371 = vunpack.c.l.b16 %v881
        %v2372 = vunpack.c.h.b16 %v881
        %v2373 = vunpack.c.l.b16 %v882
        %v2374 = vunpack.c.h.b16 %v882
        %v2375 = vunpack.c.l.b16 %v883
        %v2376 = vunpack.c.h.b16 %v883
        %v2377 = vunpack.c.l.b16 %v884
        %v2378 = vunpack.c.h.b16 %v884
        %v2379 = vunpack.c.l.b16 %v885
        %v2380 = vunpack.c.h.b16 %v885
        %v2381 = vunpack.c.l.b16 %v886
        %v2382 = vunpack.c.h.b16 %v886
        %v2383 = vunpack.c.l.b16 %v887
        %v2384 = vunpack.c.h.b16 %v887
        %v2385 = vunpack.c.l.b16 %v888
        %v2386 = vunpack.c.h.b16 %v888
        %v2387 = vunpack.c.l.b16 %v889
        %v2388 = vunpack.c.h.b16 %v889
        %v2389 = vunpack.c.l.b16 %v890
        %v2390 = vunpack.c.h.b16 %v890
        %v2391 = vunpack.c.l.b16 %v891
        %v2392 = vunpack.c.h.b16 %v891
        %v2393 = vunpack.c.l.b16 %v892
        %v2394 = vunpack.c.h.b16 %v892
        %v2395 = vunpack.c.l.b16 %v893
        %v2396 = vunpack.c.h.b16 %v893
        %v2397 = vunpack.c.l.b16 %v894
        %v2398 = vunpack.c.h.b16 %v894
        %v2399 = vunpack.c.l.b16 %v895
        %v2400 = vunpack.c.h.b16 %v895
        %v2401 = vunpack.c.l.b16 %v896
        %v2402 = vunpack.c.h.b16 %v896
        %v2403 = vunpack.c.l.b16 %v897
        %v2404 = vunpack.c.h.b16 %v897
        %v2405 = vunpack.c.l.b16 %v898
        %v2406 = vunpack.c.h.b16 %v898
        %v2407 = vunpack.c.l.b16 %v899
        %v2408 = vunpack.c.h.b16 %v899
        %v2409 = vunpack.c.l.b16 %v900
        %v2410 = vunpack.c.h.b16 %v900
        %v2411 = vunpack.c.l.b16 %v901
        %v2412 = vunpack.c.h.b16 %v901
        %v2413 = vunpack.c.l.b16 %v902
        %v2414 = vunpack.c.h.b16 %v902
        %v2415 = vunpack.c.l.b16 %v903
        %v2416 = vunpack.c.h.b16 %v903
        %v2417 = vunpack.c.l.b16 %v904
        %v2418 = vunpack.c.h.b16 %v904
        %v2419 = vunpack.c.l.b16 %v905
        %v2420 = vunpack.c.h.b16 %v905
        %v2421 = vunpack.c.l.b16 %v906
        %v2422 = vunpack.c.h.b16 %v906
        %v2423 = vunpack.c.l.b16 %v907
        %v2424 = vunpack.c.h.b16 %v907
        %v2425 = vunpack.c.l.b16 %v908
        %v2426 = vunpack.c.h.b16 %v908
        %v2427 = vunpack.c.l.b16 %v909
        %v2428 = vunpack.c.h.b16 %v909
        %v2429 = vunpack.c.l.b16 %v910
        %v2430 = vunpack.c.h.b16 %v910
        %v2431 = vunpack.c.l.b16 %v911
        %v2432 = vunpack.c.h.b16 %v911
        %v2433 = vunpack.c.l.b16 %v912
        %v2434 = vunpack.c.h.b16 %v912
        %v2435 = vunpack.c.l.b16 %v913
        %v2436 = vunpack.c.h.b16 %v913
        %v2437 = vunpack.c.l.b16 %v914
        %v2438 = vunpack.c.h.b16 %v914
        %v2439 = vunpack.c.l.b16 %v915
        %v2440 = vunpack.c.h.b16 %v915
        %v2441 = vunpack.c.l.b16 %v916
        %v2442 = vunpack.c.h.b16 %v916
        %v2443 = vunpack.c.l.b16 %v917
        %v2444 = vunpack.c.h.b16 %v917
        %v2445 = vunpack.c.l.b16 %v918
        %v2446 = vunpack.c.h.b16 %v918
        %v2447 = vunpack.c.l.b16 %v919
        %v2448 = vunpack.c.h.b16 %v919
        %v2449 = vunpack.c.l.b16 %v920
        %v2450 = vunpack.c.h.b16 %v920
        %v2451 = vunpack.c.l.b16 %v921
        %v2452 = vunpack.c.h.b16 %v921
        %v2453 = vunpack.c.l.b16 %v922
        %v2454 = vunpack.c.h.b16 %v922
        %v2455 = vunpack.c.l.b16 %v923
        %v2456 = vunpack.c.h.b16 %v923
        %v2457 = vunpack.c.l.b16 %v924
        %v2458 = vunpack.c.h.b16 %v924
        %v2459 = vunpack.c.l.b16 %v925
        %v2460 = vunpack.c.h.b16 %v925
        %v2461 = vunpack.c.l.b16 %v926
        %v2462 = vunpack.c.h.b16 %v926
        %v2463 = vunpack.c.l.b16 %v927
        %v2464 = vunpack.c.h.b16 %v927
        %v2465 = vunpack.c.l.b16 %v928
        %v2466 = vunpack.c.h.b16 %v928
        %v2467 = vunpack.c.l.b16 %v929
        %v2468 = vunpack.c.h.b16 %v929
        %v2469 = vunpack.c.l.b16 %v930
        %v2470 = vunpack.c.h.b16 %v930
        %v2471 = vunpack.c.l.b16 %v931
        %v2472 = vunpack.c.h.b16 %v931
        %v2473 = vunpack.c.l.b16 %v932
        %v2474 = vunpack.c.h.b16 %v932
        %v2475 = vunpack.c.l.b16 %v933
        %v2476 = vunpack.c.h.b16 %v933
        %v2477 = vunpack.c.l.b16 %v934
        %v2478 = vunpack.c.h.b16 %v934
        %v2479 = vunpack.c.l.b16 %v935
        %v2480 = vunpack.c.h.b16 %v935
        %v2481 = vunpack.c.l.b16 %v936
        %v2482 = vunpack.c.h.b16 %v936
        %v2483 = vunpack.c.l.b16 %v937
        %v2484 = vunpack.c.h.b16 %v937
        %v2485 = vunpack.c.l.b16 %v938
        %v2486 = vunpack.c.h.b16 %v938
        %v2487 = vunpack.c.l.b16 %v939
        %v2488 = vunpack.c.h.b16 %v939
        %v2489 = vunpack.c.l.b16 %v940
        %v2490 = vunpack.c.h.b16 %v940
        %v2491 = vunpack.c.l.b16 %v941
        %v2492 = vunpack.c.h.b16 %v941
        %v2493 = vunpack.c.l.b16 %v942
        %v2494 = vunpack.c.h.b16 %v942
        %v2495 = vunpack.c.l.b16 %v943
        %v2496 = vunpack.c.h.b16 %v943
        %v2497 = vunpack.c.l.b16 %v944
        %v2498 = vunpack.c.h.b16 %v944
        %v2499 = vunpack.c.l.b16 %v945
        %v2500 = vunpack.c.h.b16 %v945
        %v2501 = vunpack.c.l.b16 %v946
        %v2502 = vunpack.c.h.b16 %v946
        %v2503 = vunpack.c.l.b16 %v947
        %v2504 = vunpack.c.h.b16 %v947
        %v2505 = vunpack.c.l.b16 %v948
        %v2506 = vunpack.c.h.b16 %v948
        %v2507 = vunpack.c.l.b16 %v949
        %v2508 = vunpack.c.h.b16 %v949
        %v2509 = vunpack.c.l.b16 %v950
        %v2510 = vunpack.c.h.b16 %v950
        %v2511 = vunpack.c.l.b16 %v951
        %v2512 = vunpack.c.h.b16 %v951
        %v2513 = vunpack.c.l.b16 %v952
        %v2514 = vunpack.c.h.b16 %v952
        %v2515 = vunpack.c.l.b16 %v953
        %v2516 = vunpack.c.h.b16 %v953
        %v2517 = vunpack.c.l.b16 %v954
        %v2518 = vunpack.c.h.b16 %v954
        %v2519 = vunpack.c.l.b16 %v955
        %v2520 = vunpack.c.h.b16 %v955
        %v2521 = vunpack.c.l.b16 %v956
        %v2522 = vunpack.c.h.b16 %v956
        %v2523 = vunpack.c.l.b16 %v957
        %v2524 = vunpack.c.h.b16 %v957
        %v2525 = vunpack.c.l.b16 %v958
        %v2526 = vunpack.c.h.b16 %v958
        %v2527 = vunpack.c.l.b16 %v959
        %v2528 = vunpack.c.h.b16 %v959
        %v2529 = vunpack.c.l.b16 %v960
        %v2530 = vunpack.c.h.b16 %v960
        %v2531 = vunpack.c.l.b16 %v961
        %v2532 = vunpack.c.h.b16 %v961
        %v2533 = vunpack.c.l.b16 %v962
        %v2534 = vunpack.c.h.b16 %v962
        %v2535 = vunpack.c.l.b16 %v963
        %v2536 = vunpack.c.h.b16 %v963
        %v2537 = vunpack.c.l.b16 %v964
        %v2538 = vunpack.c.h.b16 %v964
        %v2539 = vunpack.c.l.b16 %v965
        %v2540 = vunpack.c.h.b16 %v965
        %v2541 = vunpack.c.l.b16 %v966
        %v2542 = vunpack.c.h.b16 %v966
        %v2543 = vunpack.c.l.b16 %v967
        %v2544 = vunpack.c.h.b16 %v967
        %v2545 = vunpack.c.l.b16 %v968
        %v2546 = vunpack.c.h.b16 %v968
        %v2547 = vunpack.c.l.b16 %v969
        %v2548 = vunpack.c.h.b16 %v969
        %v2549 = vunpack.c.l.b16 %v970
        %v2550 = vunpack.c.h.b16 %v970
        %v2551 = vpack.c.b16 %v1535, %v1527
        %v2552 = vpack.c.b16 %v1536, %v1528
        %v2553 = vpack.c.b16 %v1537, %v1529
        %v2554 = vpack.c.b16 %v1538, %v1530
        %v2555 = vpack.c.b16 %v1539, %v1531
        %v2556 = vpack.c.b16 %v1540, %v1532
        %v2557 = vpack.c.b16 %v1541, %v1533
        %v2558 = vpack.c.b16 %v1542, %v1534
        %v2559 = vpack.c.b16 %v1551, %v1543
        %v2560 = vpack.c.b16 %v1552, %v1544
        %v2561 = vpack.c.b16 %v1553, %v1545
        %v2562 = vpack.c.b16 %v1554, %v1546
        %v2563 = vpack.c.b16 %v1555, %v1547
        %v2564 = vpack.c.b16 %v1556, %v1548
        %v2565 = vpack.c.b16 %v1557, %v1549
        %v2566 = vpack.c.b16 %v1558, %v1550
        %v2567 = vpack.c.b16 %v1567, %v1559
        %v2568 = vpack.c.b16 %v1568, %v1560
        %v2569 = vpack.c.b16 %v1569, %v1561
        %v2570 = vpack.c.b16 %v1570, %v1562
        %v2571 = vpack.c.b16 %v1571, %v1563
        %v2572 = vpack.c.b16 %v1572, %v1564
        %v2573 = vpack.c.b16 %v1573, %v1565
        %v2574 = vpack.c.b16 %v1574, %v1566
        %v2575 = vpack.c.b16 %v1583, %v1575
        %v2576 = vpack.c.b16 %v1584, %v1576
        %v2577 = vpack.c.b16 %v1585, %v1577
        %v2578 = vpack.c.b16 %v1586, %v1578
        %v2579 = vpack.c.b16 %v1587, %v1579
        %v2580 = vpack.c.b16 %v1588, %v1580
        %v2581 = vpack.c.b16 %v1589, %v1581
        %v2582 = vpack.c.b16 %v1590, %v1582
        %v2583 = vpack.c.b16 %v1599, %v1591
        %v2584 = vpack.c.b16 %v1600, %v1592
        %v2585 = vpack.c.b16 %v1601, %v1593
        %v2586 = vpack.c.b16 %v1602, %v1594
        %v2587 = vpack.c.b16 %v1603, %v1595
        %v2588 = vpack.c.b16 %v1604, %v1596
        %v2589 = vpack.c.b16 %v1605, %v1597
        %v2590 = vpack.c.b16 %v1606, %v1598
        %v2591 = vpack.c.b16 %v1615, %v1607
        %v2592 = vpack.c.b16 %v1616, %v1608
        %v2593 = vpack.c.b16 %v1617, %v1609
        %v2594 = vpack.c.b16 %v1618, %v1610
        %v2595 = vpack.c.b16 %v1619, %v1611
        %v2596 = vpack.c.b16 %v1620, %v1612
        %v2597 = vpack.c.b16 %v1621, %v1613
        %v2598 = vpack.c.b16 %v1622, %v1614
        %v2599 = vpack.c.b16 %v1631, %v1623
        %v2600 = vpack.c.b16 %v1632, %v1624
        %v2601 = vpack.c.b16 %v1633, %v1625
        %v2602 = vpack.c.b16 %v1634, %v1626
        %v2603 = vpack.c.b16 %v1635, %v1627
        %v2604 = vpack.c.b16 %v1636, %v1628
        %v2605 = vpack.c.b16 %v1637, %v1629
        %v2606 = vpack.c.b16 %v1638, %v1630
        %v2607 = vpack.c.b16 %v1647, %v1639
        %v2608 = vpack.c.b16 %v1648, %v1640
        %v2609 = vpack.c.b16 %v1649, %v1641
        %v2610 = vpack.c.b16 %v1650, %v1642
        %v2611 = vpack.c.b16 %v1651, %v1643
        %v2612 = vpack.c.b16 %v1652, %v1644
        %v2613 = vpack.c.b16 %v1653, %v1645
        %v2614 = vpack.c.b16 %v1654, %v1646
        %v2615 = vpack.c.b16 %v1663, %v1655
        %v2616 = vpack.c.b16 %v1664, %v1656
        %v2617 = vpack.c.b16 %v1665, %v1657
        %v2618 = vpack.c.b16 %v1666, %v1658
        %v2619 = vpack.c.b16 %v1667, %v1659
        %v2620 = vpack.c.b16 %v1668, %v1660
        %v2621 = vpack.c.b16 %v1669, %v1661
        %v2622 = vpack.c.b16 %v1670, %v1662
        %v2623 = vpack.c.b16 %v1679, %v1671
        %v2624 = vpack.c.b16 %v1680, %v1672
        %v2625 = vpack.c.b16 %v1681, %v1673
        %v2626 = vpack.c.b16 %v1682, %v1674
        %v2627 = vpack.c.b16 %v1683, %v1675
        %v2628 = vpack.c.b16 %v1684, %v1676
        %v2629 = vpack.c.b16 %v1685, %v1677
        %v2630 = vpack.c.b16 %v1686, %v1678
        %v2631 = vpack.c.b16 %v1695, %v1687
        %v2632 = vpack.c.b16 %v1696, %v1688
        %v2633 = vpack.c.b16 %v1697, %v1689
        %v2634 = vpack.c.b16 %v1698, %v1690
        %v2635 = vpack.c.b16 %v1699, %v1691
        %v2636 = vpack.c.b16 %v1700, %v1692
        %v2637 = vpack.c.b16 %v1701, %v1693
        %v2638 = vpack.c.b16 %v1702, %v1694
        %v2639 = vpack.c.b16 %v1711, %v1703
        %v2640 = vpack.c.b16 %v1712, %v1704
        %v2641 = vpack.c.b16 %v1713, %v1705
        %v2642 = vpack.c.b16 %v1714, %v1706
        %v2643 = vpack.c.b16 %v1715, %v1707
        %v2644 = vpack.c.b16 %v1716, %v1708
        %v2645 = vpack.c.b16 %v1717, %v1709
        %v2646 = vpack.c.b16 %v1718, %v1710
        %v2647 = vpack.c.b16 %v1727, %v1719
        %v2648 = vpack.c.b16 %v1728, %v1720
        %v2649 = vpack.c.b16 %v1729, %v1721
        %v2650 = vpack.c.b16 %v1730, %v1722
        %v2651 = vpack.c.b16 %v1731, %v1723
        %v2652 = vpack.c.b16 %v1732, %v1724
        %v2653 = vpack.c.b16 %v1733, %v1725
        %v2654 = vpack.c.b16 %v1734, %v1726
        %v2655 = vpack.c.b16 %v1743, %v1735
        %v2656 = vpack.c.b16 %v1744, %v1736
        %v2657 = vpack.c.b16 %v1745, %v1737
        %v2658 = vpack.c.b16 %v1746, %v1738
        %v2659 = vpack.c.b16 %v1747, %v1739
        %v2660 = vpack.c.b16 %v1748, %v1740
        %v2661 = vpack.c.b16 %v1749, %v1741
        %v2662 = vpack.c.b16 %v1750, %v1742
        %v2663 = vpack.c.b16 %v1759, %v1751
        %v2664 = vpack.c.b16 %v1760, %v1752
        %v2665 = vpack.c.b16 %v1761, %v1753
        %v2666 = vpack.c.b16 %v1762, %v1754
        %v2667 = vpack.c.b16 %v1763, %v1755
        %v2668 = vpack.c.b16 %v1764, %v1756
        %v2669 = vpack.c.b16 %v1765, %v1757
        %v2670 = vpack.c.b16 %v1766, %v1758
        %v2671 = vpack.c.b16 %v1775, %v1767
        %v2672 = vpack.c.b16 %v1776, %v1768
        %v2673 = vpack.c.b16 %v1777, %v1769
        %v2674 = vpack.c.b16 %v1778, %v1770
        %v2675 = vpack.c.b16 %v1779, %v1771
        %v2676 = vpack.c.b16 %v1780, %v1772
        %v2677 = vpack.c.b16 %v1781, %v1773
        %v2678 = vpack.c.b16 %v1782, %v1774
        %v2679 = vpack.c.b16 %v1791, %v1783
        %v2680 = vpack.c.b16 %v1792, %v1784
        %v2681 = vpack.c.b16 %v1793, %v1785
        %v2682 = vpack.c.b16 %v1794, %v1786
        %v2683 = vpack.c.b16 %v1795, %v1787
        %v2684 = vpack.c.b16 %v1796, %v1788
        %v2685 = vpack.c.b16 %v1797, %v1789
        %v2686 = vpack.c.b16 %v1798, %v1790
        %v2687 = vpack.c.b16 %v1807, %v1799
        %v2688 = vpack.c.b16 %v1808, %v1800
        %v2689 = vpack.c.b16 %v1809, %v1801
        %v2690 = vpack.c.b16 %v1810, %v1802
        %v2691 = vpack.c.b16 %v1811, %v1803
        %v2692 = vpack.c.b16 %v1812, %v1804
        %v2693 = vpack.c.b16 %v1813, %v1805
        %v2694 = vpack.c.b16 %v1814, %v1806
        %v2695 = vpack.c.b16 %v1823, %v1815
        %v2696 = vpack.c.b16 %v1824, %v1816
        %v2697 = vpack.c.b16 %v1825, %v1817
        %v2698 = vpack.c.b16 %v1826, %v1818
        %v2699 = vpack.c.b16 %v1827, %v1819
        %v2700 = vpack.c.b16 %v1828, %v1820
        %v2701 = vpack.c.b16 %v1829, %v1821
        %v2702 = vpack.c.b16 %v1830, %v1822
        %v2703 = vpack.c.b16 %v1839, %v1831
        %v2704 = vpack.c.b16 %v1840, %v1832
        %v2705 = vpack.c.b16 %v1841, %v1833
        %v2706 = vpack.c.b16 %v1842, %v1834
        %v2707 = vpack.c.b16 %v1843, %v1835
        %v2708 = vpack.c.b16 %v1844, %v1836
        %v2709 = vpack.c.b16 %v1845, %v1837
        %v2710 = vpack.c.b16 %v1846, %v1838
        %v2711 = vpack.c.b16 %v1855, %v1847
        %v2712 = vpack.c.b16 %v1856, %v1848
        %v2713 = vpack.c.b16 %v1857, %v1849
        %v2714 = vpack.c.b16 %v1858, %v1850
        %v2715 = vpack.c.b16 %v1859, %v1851
        %v2716 = vpack.c.b16 %v1860, %v1852
        %v2717 = vpack.c.b16 %v1861, %v1853
        %v2718 = vpack.c.b16 %v1862, %v1854
        %v2719 = vpack.c.b16 %v1871, %v1863
        %v2720 = vpack.c.b16 %v1872, %v1864
        %v2721 = vpack.c.b16 %v1873, %v1865
        %v2722 = vpack.c.b16 %v1874, %v1866
        %v2723 = vpack.c.b16 %v1875, %v1867
        %v2724 = vpack.c.b16 %v1876, %v1868
        %v2725 = vpack.c.b16 %v1877, %v1869
        %v2726 = vpack.c.b16 %v1878, %v1870
        %v2727 = vpack.c.b16 %v1887, %v1879
        %v2728 = vpack.c.b16 %v1888, %v1880
        %v2729 = vpack.c.b16 %v1889, %v1881
        %v2730 = vpack.c.b16 %v1890, %v1882
        %v2731 = vpack.c.b16 %v1891, %v1883
        %v2732 = vpack.c.b16 %v1892, %v1884
        %v2733 = vpack.c.b16 %v1893, %v1885
        %v2734 = vpack.c.b16 %v1894, %v1886
        %v2735 = vpack.c.b16 %v1903, %v1895
        %v2736 = vpack.c.b16 %v1904, %v1896
        %v2737 = vpack.c.b16 %v1905, %v1897
        %v2738 = vpack.c.b16 %v1906, %v1898
        %v2739 = vpack.c.b16 %v1907, %v1899
        %v2740 = vpack.c.b16 %v1908, %v1900
        %v2741 = vpack.c.b16 %v1909, %v1901
        %v2742 = vpack.c.b16 %v1910, %v1902
        %v2743 = vpack.c.b16 %v1919, %v1911
        %v2744 = vpack.c.b16 %v1920, %v1912
        %v2745 = vpack.c.b16 %v1921, %v1913
        %v2746 = vpack.c.b16 %v1922, %v1914
        %v2747 = vpack.c.b16 %v1923, %v1915
        %v2748 = vpack.c.b16 %v1924, %v1916
        %v2749 = vpack.c.b16 %v1925, %v1917
        %v2750 = vpack.c.b16 %v1926, %v1918
        %v2751 = vpack.c.b16 %v1935, %v1927
        %v2752 = vpack.c.b16 %v1936, %v1928
        %v2753 = vpack.c.b16 %v1937, %v1929
        %v2754 = vpack.c.b16 %v1938, %v1930
        %v2755 = vpack.c.b16 %v1939, %v1931
        %v2756 = vpack.c.b16 %v1940, %v1932
        %v2757 = vpack.c.b16 %v1941, %v1933
        %v2758 = vpack.c.b16 %v1942, %v1934
        %v2759 = vpack.c.b16 %v1951, %v1943
        %v2760 = vpack.c.b16 %v1952, %v1944
        %v2761 = vpack.c.b16 %v1953, %v1945
        %v2762 = vpack.c.b16 %v1954, %v1946
        %v2763 = vpack.c.b16 %v1955, %v1947
        %v2764 = vpack.c.b16 %v1956, %v1948
        %v2765 = vpack.c.b16 %v1957, %v1949
        %v2766 = vpack.c.b16 %v1958, %v1950
        %v2767 = vpack.c.b16 %v1967, %v1959
        %v2768 = vpack.c.b16 %v1968, %v1960
        %v2769 = vpack.c.b16 %v1969, %v1961
        %v2770 = vpack.c.b16 %v1970, %v1962
        %v2771 = vpack.c.b16 %v1971, %v1963
        %v2772 = vpack.c.b16 %v1972, %v1964
        %v2773 = vpack.c.b16 %v1973, %v1965
        %v2774 = vpack.c.b16 %v1974, %v1966
        %v2775 = vpack.c.b16 %v1983, %v1975
        %v2776 = vpack.c.b16 %v1984, %v1976
        %v2777 = vpack.c.b16 %v1985, %v1977
        %v2778 = vpack.c.b16 %v1986, %v1978
        %v2779 = vpack.c.b16 %v1987, %v1979
        %v2780 = vpack.c.b16 %v1988, %v1980
        %v2781 = vpack.c.b16 %v1989, %v1981
        %v2782 = vpack.c.b16 %v1990, %v1982
        %v2783 = vpack.c.b16 %v1999, %v1991
        %v2784 = vpack.c.b16 %v2000, %v1992
        %v2785 = vpack.c.b16 %v2001, %v1993
        %v2786 = vpack.c.b16 %v2002, %v1994
        %v2787 = vpack.c.b16 %v2003, %v1995
        %v2788 = vpack.c.b16 %v2004, %v1996
        %v2789 = vpack.c.b16 %v2005, %v1997
        %v2790 = vpack.c.b16 %v2006, %v1998
        %v2791 = vpack.c.b16 %v2015, %v2007
        %v2792 = vpack.c.b16 %v2016, %v2008
        %v2793 = vpack.c.b16 %v2017, %v2009
        %v2794 = vpack.c.b16 %v2018, %v2010
        %v2795 = vpack.c.b16 %v2019, %v2011
        %v2796 = vpack.c.b16 %v2020, %v2012
        %v2797 = vpack.c.b16 %v2021, %v2013
        %v2798 = vpack.c.b16 %v2022, %v2014
        %v2799 = vpack.c.b16 %v2031, %v2023
        %v2800 = vpack.c.b16 %v2032, %v2024
        %v2801 = vpack.c.b16 %v2033, %v2025
        %v2802 = vpack.c.b16 %v2034, %v2026
        %v2803 = vpack.c.b16 %v2035, %v2027
        %v2804 = vpack.c.b16 %v2036, %v2028
        %v2805 = vpack.c.b16 %v2037, %v2029
        %v2806 = vpack.c.b16 %v2038, %v2030
        %v2807 = vpack.c.b16 %v2047, %v2039
        %v2808 = vpack.c.b16 %v2048, %v2040
        %v2809 = vpack.c.b16 %v2049, %v2041
        %v2810 = vpack.c.b16 %v2050, %v2042
        %v2811 = vpack.c.b16 %v2051, %v2043
        %v2812 = vpack.c.b16 %v2052, %v2044
        %v2813 = vpack.c.b16 %v2053, %v2045
        %v2814 = vpack.c.b16 %v2054, %v2046
        %v2815 = vpack.c.b16 %v2063, %v2055
        %v2816 = vpack.c.b16 %v2064, %v2056
        %v2817 = vpack.c.b16 %v2065, %v2057
        %v2818 = vpack.c.b16 %v2066, %v2058
        %v2819 = vpack.c.b16 %v2067, %v2059
        %v2820 = vpack.c.b16 %v2068, %v2060
        %v2821 = vpack.c.b16 %v2069, %v2061
        %v2822 = vpack.c.b16 %v2070, %v2062
        %v2823 = vpack.c.b16 %v2079, %v2071
        %v2824 = vpack.c.b16 %v2080, %v2072
        %v2825 = vpack.c.b16 %v2081, %v2073
        %v2826 = vpack.c.b16 %v2082, %v2074
        %v2827 = vpack.c.b16 %v2083, %v2075
        %v2828 = vpack.c.b16 %v2084, %v2076
        %v2829 = vpack.c.b16 %v2085, %v2077
        %v2830 = vpack.c.b16 %v2086, %v2078
        %v2831 = vpack.c.b16 %v2095, %v2087
        %v2832 = vpack.c.b16 %v2096, %v2088
        %v2833 = vpack.c.b16 %v2097, %v2089
        %v2834 = vpack.c.b16 %v2098, %v2090
        %v2835 = vpack.c.b16 %v2099, %v2091
        %v2836 = vpack.c.b16 %v2100, %v2092
        %v2837 = vpack.c.b16 %v2101, %v2093
        %v2838 = vpack.c.b16 %v2102, %v2094
        %v2839 = vpack.c.b16 %v2111, %v2103
        %v2840 = vpack.c.b16 %v2112, %v2104
        %v2841 = vpack.c.b16 %v2113, %v2105
        %v2842 = vpack.c.b16 %v2114, %v2106
        %v2843 = vpack.c.b16 %v2115, %v2107
        %v2844 = vpack.c.b16 %v2116, %v2108
        %v2845 = vpack.c.b16 %v2117, %v2109
        %v2846 = vpack.c.b16 %v2118, %v2110
        %v2847 = vpack.c.b16 %v2127, %v2119
        %v2848 = vpack.c.b16 %v2128, %v2120
        %v2849 = vpack.c.b16 %v2129, %v2121
        %v2850 = vpack.c.b16 %v2130, %v2122
        %v2851 = vpack.c.b16 %v2131, %v2123
        %v2852 = vpack.c.b16 %v2132, %v2124
        %v2853 = vpack.c.b16 %v2133, %v2125
        %v2854 = vpack.c.b16 %v2134, %v2126
        %v2855 = vpack.c.b16 %v2143, %v2135
        %v2856 = vpack.c.b16 %v2144, %v2136
        %v2857 = vpack.c.b16 %v2145, %v2137
        %v2858 = vpack.c.b16 %v2146, %v2138
        %v2859 = vpack.c.b16 %v2147, %v2139
        %v2860 = vpack.c.b16 %v2148, %v2140
        %v2861 = vpack.c.b16 %v2149, %v2141
        %v2862 = vpack.c.b16 %v2150, %v2142
        %v2863 = vpack.c.b16 %v2159, %v2151
        %v2864 = vpack.c.b16 %v2160, %v2152
        %v2865 = vpack.c.b16 %v2161, %v2153
        %v2866 = vpack.c.b16 %v2162, %v2154
        %v2867 = vpack.c.b16 %v2163, %v2155
        %v2868 = vpack.c.b16 %v2164, %v2156
        %v2869 = vpack.c.b16 %v2165, %v2157
        %v2870 = vpack.c.b16 %v2166, %v2158
        %v2871 = vpack.c.b16 %v2175, %v2167
        %v2872 = vpack.c.b16 %v2176, %v2168
        %v2873 = vpack.c.b16 %v2177, %v2169
        %v2874 = vpack.c.b16 %v2178, %v2170
        %v2875 = vpack.c.b16 %v2179, %v2171
        %v2876 = vpack.c.b16 %v2180, %v2172
        %v2877 = vpack.c.b16 %v2181, %v2173
        %v2878 = vpack.c.b16 %v2182, %v2174
        %v2879 = vpack.c.b16 %v2191, %v2183
        %v2880 = vpack.c.b16 %v2192, %v2184
        %v2881 = vpack.c.b16 %v2193, %v2185
        %v2882 = vpack.c.b16 %v2194, %v2186
        %v2883 = vpack.c.b16 %v2195, %v2187
        %v2884 = vpack.c.b16 %v2196, %v2188
        %v2885 = vpack.c.b16 %v2197, %v2189
        %v2886 = vpack.c.b16 %v2198, %v2190
        %v2887 = vpack.c.b16 %v2207, %v2199
        %v2888 = vpack.c.b16 %v2208, %v2200
        %v2889 = vpack.c.b16 %v2209, %v2201
        %v2890 = vpack.c.b16 %v2210, %v2202
        %v2891 = vpack.c.b16 %v2211, %v2203
        %v2892 = vpack.c.b16 %v2212, %v2204
        %v2893 = vpack.c.b16 %v2213, %v2205
        %v2894 = vpack.c.b16 %v2214, %v2206
        %v2895 = vpack.c.b16 %v2223, %v2215
        %v2896 = vpack.c.b16 %v2224, %v2216
        %v2897 = vpack.c.b16 %v2225, %v2217
        %v2898 = vpack.c.b16 %v2226, %v2218
        %v2899 = vpack.c.b16 %v2227, %v2219
        %v2900 = vpack.c.b16 %v2228, %v2220
        %v2901 = vpack.c.b16 %v2229, %v2221
        %v2902 = vpack.c.b16 %v2230, %v2222
        %v2903 = vpack.c.b16 %v2239, %v2231
        %v2904 = vpack.c.b16 %v2240, %v2232
        %v2905 = vpack.c.b16 %v2241, %v2233
        %v2906 = vpack.c.b16 %v2242, %v2234
        %v2907 = vpack.c.b16 %v2243, %v2235
        %v2908 = vpack.c.b16 %v2244, %v2236
        %v2909 = vpack.c.b16 %v2245, %v2237
        %v2910 = vpack.c.b16 %v2246, %v2238
        %v2911 = vpack.c.b16 %v2255, %v2247
        %v2912 = vpack.c.b16 %v2256, %v2248
        %v2913 = vpack.c.b16 %v2257, %v2249
        %v2914 = vpack.c.b16 %v2258, %v2250
        %v2915 = vpack.c.b16 %v2259, %v2251
        %v2916 = vpack.c.b16 %v2260, %v2252
        %v2917 = vpack.c.b16 %v2261, %v2253
        %v2918 = vpack.c.b16 %v2262, %v2254
        %v2919 = vpack.c.b16 %v2271, %v2263
        %v2920 = vpack.c.b16 %v2272, %v2264
        %v2921 = vpack.c.b16 %v2273, %v2265
        %v2922 = vpack.c.b16 %v2274, %v2266
        %v2923 = vpack.c.b16 %v2275, %v2267
        %v2924 = vpack.c.b16 %v2276, %v2268
        %v2925 = vpack.c.b16 %v2277, %v2269
        %v2926 = vpack.c.b16 %v2278, %v2270
        %v2927 = vpack.c.b16 %v2287, %v2279
        %v2928 = vpack.c.b16 %v2288, %v2280
        %v2929 = vpack.c.b16 %v2289, %v2281
        %v2930 = vpack.c.b16 %v2290, %v2282
        %v2931 = vpack.c.b16 %v2291, %v2283
        %v2932 = vpack.c.b16 %v2292, %v2284
        %v2933 = vpack.c.b16 %v2293, %v2285
        %v2934 = vpack.c.b16 %v2294, %v2286
        %v2935 = vpack.c.b16 %v2303, %v2295
        %v2936 = vpack.c.b16 %v2304, %v2296
        %v2937 = vpack.c.b16 %v2305, %v2297
        %v2938 = vpack.c.b16 %v2306, %v2298
        %v2939 = vpack.c.b16 %v2307, %v2299
        %v2940 = vpack.c.b16 %v2308, %v2300
        %v2941 = vpack.c.b16 %v2309, %v2301
        %v2942 = vpack.c.b16 %v2310, %v2302
        %v2943 = vpack.c.b16 %v2319, %v2311
        %v2944 = vpack.c.b16 %v2320, %v2312
        %v2945 = vpack.c.b16 %v2321, %v2313
        %v2946 = vpack.c.b16 %v2322, %v2314
        %v2947 = vpack.c.b16 %v2323, %v2315
        %v2948 = vpack.c.b16 %v2324, %v2316
        %v2949 = vpack.c.b16 %v2325, %v2317
        %v2950 = vpack.c.b16 %v2326, %v2318
        %v2951 = vpack.c.b16 %v2335, %v2327
        %v2952 = vpack.c.b16 %v2336, %v2328
        %v2953 = vpack.c.b16 %v2337, %v2329
        %v2954 = vpack.c.b16 %v2338, %v2330
        %v2955 = vpack.c.b16 %v2339, %v2331
        %v2956 = vpack.c.b16 %v2340, %v2332
        %v2957 = vpack.c.b16 %v2341, %v2333
        %v2958 = vpack.c.b16 %v2342, %v2334
        %v2959 = vpack.c.b16 %v2351, %v2343
        %v2960 = vpack.c.b16 %v2352, %v2344
        %v2961 = vpack.c.b16 %v2353, %v2345
        %v2962 = vpack.c.b16 %v2354, %v2346
        %v2963 = vpack.c.b16 %v2355, %v2347
        %v2964 = vpack.c.b16 %v2356, %v2348
        %v2965 = vpack.c.b16 %v2357, %v2349
        %v2966 = vpack.c.b16 %v2358, %v2350
        %v2967 = vpack.c.b16 %v2367, %v2359
        %v2968 = vpack.c.b16 %v2368, %v2360
        %v2969 = vpack.c.b16 %v2369, %v2361
        %v2970 = vpack.c.b16 %v2370, %v2362
        %v2971 = vpack.c.b16 %v2371, %v2363
        %v2972 = vpack.c.b16 %v2372, %v2364
        %v2973 = vpack.c.b16 %v2373, %v2365
        %v2974 = vpack.c.b16 %v2374, %v2366
        %v2975 = vpack.c.b16 %v2383, %v2375
        %v2976 = vpack.c.b16 %v2384, %v2376
        %v2977 = vpack.c.b16 %v2385, %v2377
        %v2978 = vpack.c.b16 %v2386, %v2378
        %v2979 = vpack.c.b16 %v2387, %v2379
        %v2980 = vpack.c.b16 %v2388, %v2380
        %v2981 = vpack.c.b16 %v2389, %v2381
        %v2982 = vpack.c.b16 %v2390, %v2382
        %v2983 = vpack.c.b16 %v2399, %v2391
        %v2984 = vpack.c.b16 %v2400, %v2392
        %v2985 = vpack.c.b16 %v2401, %v2393
        %v2986 = vpack.c.b16 %v2402, %v2394
        %v2987 = vpack.c.b16 %v2403, %v2395
        %v2988 = vpack.c.b16 %v2404, %v2396
        %v2989 = vpack.c.b16 %v2405, %v2397
        %v2990 = vpack.c.b16 %v2406, %v2398
        %v2991 = vpack.c.b16 %v2415, %v2407
        %v2992 = vpack.c.b16 %v2416, %v2408
        %v2993 = vpack.c.b16 %v2417, %v2409
        %v2994 = vpack.c.b16 %v2418, %v2410
        %v2995 = vpack.c.b16 %v2419, %v2411
        %v2996 = vpack.c.b16 %v2420, %v2412
        %v2997 = vpack.c.b16 %v2421, %v2413
        %v2998 = vpack.c.b16 %v2422, %v2414
        %v2999 = vpack.c.b16 %v2431, %v2423
        %v3000 = vpack.c.b16 %v2432, %v2424
        %v3001 = vpack.c.b16 %v2433, %v2425
        %v3002 = vpack.c.b16 %v2434, %v2426
        %v3003 = vpack.c.b16 %v2435, %v2427
        %v3004 = vpack.c.b16 %v2436, %v2428
        %v3005 = vpack.c.b16 %v2437, %v2429
        %v3006 = vpack.c.b16 %v2438, %v2430
        %v3007 = vpack.c.b16 %v2447, %v2439
        %v3008 = vpack.c.b16 %v2448, %v2440
        %v3009 = vpack.c.b16 %v2449, %v2441
        %v3010 = vpack.c.b16 %v2450, %v2442
        %v3011 = vpack.c.b16 %v2451, %v2443
        %v3012 = vpack.c.b16 %v2452, %v2444
        %v3013 = vpack.c.b16 %v2453, %v2445
        %v3014 = vpack.c.b16 %v2454, %v2446
        %v3015 = vpack.c.b16 %v2463, %v2455
        %v3016 = vpack.c.b16 %v2464, %v2456
        %v3017 = vpack.c.b16 %v2465, %v2457
        %v3018 = vpack.c.b16 %v2466, %v2458
        %v3019 = vpack.c.b16 %v2467, %v2459
        %v3020 = vpack.c.b16 %v2468, %v2460
        %v3021 = vpack.c.b16 %v2469, %v2461
        %v3022 = vpack.c.b16 %v2470, %v2462
        %v3023 = vpack.c.b16 %v2479, %v2471
        %v3024 = vpack.c.b16 %v2480, %v2472
        %v3025 = vpack.c.b16 %v2481, %v2473
        %v3026 = vpack.c.b16 %v2482, %v2474
        %v3027 = vpack.c.b16 %v2483, %v2475
        %v3028 = vpack.c.b16 %v2484, %v2476
        %v3029 = vpack.c.b16 %v2485, %v2477
        %v3030 = vpack.c.b16 %v2486, %v2478
        %v3031 = vpack.c.b16 %v2495, %v2487
        %v3032 = vpack.c.b16 %v2496, %v2488
        %v3033 = vpack.c.b16 %v2497, %v2489
        %v3034 = vpack.c.b16 %v2498, %v2490
        %v3035 = vpack.c.b16 %v2499, %v2491
        %v3036 = vpack.c.b16 %v2500, %v2492
        %v3037 = vpack.c.b16 %v2501, %v2493
        %v3038 = vpack.c.b16 %v2502, %v2494
        %v3039 = vpack.c.b16 %v2511, %v2503
        %v3040 = vpack.c.b16 %v2512, %v2504
        %v3041 = vpack.c.b16 %v2513, %v2505
        %v3042 = vpack.c.b16 %v2514, %v2506
        %v3043 = vpack.c.b16 %v2515, %v2507
        %v3044 = vpack.c.b16 %v2516, %v2508
        %v3045 = vpack.c.b16 %v2517, %v2509
        %v3046 = vpack.c.b16 %v2518, %v2510
        %v3047 = vpack.c.b16 %v2527, %v2519
        %v3048 = vpack.c.b16 %v2528, %v2520
        %v3049 = vpack.c.b16 %v2529, %v2521
        %v3050 = vpack.c.b16 %v2530, %v2522
        %v3051 = vpack.c.b16 %v2531, %v2523
        %v3052 = vpack.c.b16 %v2532, %v2524
        %v3053 = vpack.c.b16 %v2533, %v2525
        %v3054 = vpack.c.b16 %v2534, %v2526
        %v3055 = vpack.c.b16 %v2543, %v2535
        %v3056 = vpack.c.b16 %v2544, %v2536
        %v3057 = vpack.c.b16 %v2545, %v2537
        %v3058 = vpack.c.b16 %v2546, %v2538
        %v3059 = vpack.c.b16 %v2547, %v2539
        %v3060 = vpack.c.b16 %v2548, %v2540
        %v3061 = vpack.c.b16 %v2549, %v2541
        %v3062 = vpack.c.b16 %v2550, %v2542
        %3575 = vmatprep.subr.bf16.mxu0 %v2552
        %3576 = vmatpush1.bf16.msra.mxu0 %v2551
        %3577 = vmatprep.subr.bf16.mxu0 %v2560
        %3578 = vmatpush1.bf16.msra.mxu0 %v2559
        %3579 = vmatprep.subr.bf16.mxu0 %v2568
        %3580 = vmatpush1.bf16.msra.mxu0 %v2567
        %3581 = vmatprep.subr.bf16.mxu0 %v2576
        %3582 = vmatpush1.bf16.msra.mxu0 %v2575
        %3583 = vmatprep.subr.bf16.mxu0 %v2584
        %3584 = vmatpush1.bf16.msra.mxu0 %v2583
        %3585 = vmatprep.subr.bf16.mxu0 %v2592
        %3586 = vmatpush1.bf16.msra.mxu0 %v2591
        %3587 = vmatprep.subr.bf16.mxu0 %v2600
        %3588 = vmatpush1.bf16.msra.mxu0 %v2599
        %3589 = vmatprep.subr.bf16.mxu0 %v2608
        %3590 = vmatpush1.bf16.msra.mxu0 %v2607
        %3591 = vmatprep.subr.bf16.mxu0 %v2616
        %3592 = vmatpush1.bf16.msra.mxu0 %v2615
        %3593 = vmatprep.subr.bf16.mxu0 %v2624
        %3594 = vmatpush1.bf16.msra.mxu0 %v2623
        %3595 = vmatprep.subr.bf16.mxu0 %v2632
        %3596 = vmatpush1.bf16.msra.mxu0 %v2631
        %3597 = vmatprep.subr.bf16.mxu0 %v2640
        %3598 = vmatpush1.bf16.msra.mxu0 %v2639
        %3599 = vmatprep.subr.bf16.mxu0 %v2648
        %3600 = vmatpush1.bf16.msra.mxu0 %v2647
        %3601 = vmatprep.subr.bf16.mxu0 %v2656
        %3602 = vmatpush1.bf16.msra.mxu0 %v2655
        %3603 = vmatprep.subr.bf16.mxu0 %v2664
        %3604 = vmatpush1.bf16.msra.mxu0 %v2663
        %3605 = vmatprep.subr.bf16.mxu0 %v2672
        %3606 = vmatpush1.bf16.msra.mxu0 %v2671
        %3607 = vmatprep.mubr.bf16.mxu0 %v452
        %3608 = vmatmul.mubr.bf16.gmra.mrb[0].mxu0 %v451
        %v3609 = vpop.f32.mrb[0].mxu0
        %v3610 = vadd.f32 %v978, %v3609
        %v3611 = vpop.f32.mrb[0].mxu0
        %v3612 = vadd.f32 %v982, %v3611
        %v3613 = vpop.f32.mrb[0].mxu0
        %v3614 = vpop.f32.mrb[0].mxu0
        %3615 = vdwg.mxu0
        %3616 = vmatprep.subr.bf16.mxu0 %v2680
        %3617 = vmatpush1.bf16.msra.mxu0 %v2679
        %3618 = vmatprep.subr.bf16.mxu0 %v2688
        %3619 = vmatpush1.bf16.msra.mxu0 %v2687
        %3620 = vmatprep.subr.bf16.mxu0 %v2696
        %3621 = vmatpush1.bf16.msra.mxu0 %v2695
        %3622 = vmatprep.subr.bf16.mxu0 %v2704
        %3623 = vmatpush1.bf16.msra.mxu0 %v2703
        %3624 = vmatprep.subr.bf16.mxu0 %v2712
        %3625 = vmatpush1.bf16.msra.mxu0 %v2711
        %3626 = vmatprep.subr.bf16.mxu0 %v2720
        %3627 = vmatpush1.bf16.msra.mxu0 %v2719
        %3628 = vmatprep.subr.bf16.mxu0 %v2728
        %3629 = vmatpush1.bf16.msra.mxu0 %v2727
        %3630 = vmatprep.subr.bf16.mxu0 %v2736
        %3631 = vmatpush1.bf16.msra.mxu0 %v2735
        %3632 = vmatprep.subr.bf16.mxu0 %v2744
        %3633 = vmatpush1.bf16.msra.mxu0 %v2743
        %3634 = vmatprep.subr.bf16.mxu0 %v2752
        %3635 = vmatpush1.bf16.msra.mxu0 %v2751
        %3636 = vmatprep.subr.bf16.mxu0 %v2760
        %3637 = vmatpush1.bf16.msra.mxu0 %v2759
        %3638 = vmatprep.subr.bf16.mxu0 %v2768
        %3639 = vmatpush1.bf16.msra.mxu0 %v2767
        %3640 = vmatprep.subr.bf16.mxu0 %v2776
        %3641 = vmatpush1.bf16.msra.mxu0 %v2775
        %3642 = vmatprep.subr.bf16.mxu0 %v2784
        %3643 = vmatpush1.bf16.msra.mxu0 %v2783
        %3644 = vmatprep.subr.bf16.mxu0 %v2792
        %3645 = vmatpush1.bf16.msra.mxu0 %v2791
        %3646 = vmatprep.subr.bf16.mxu0 %v2800
        %3647 = vmatpush1.bf16.msra.mxu0 %v2799
        %3648 = vmatprep.mubr.bf16.mxu0 %v454
        %3649 = vmatmul.mubr.bf16.gmra.mrb[0].mxu0 %v453
        %v3650 = vpop.f32.mrb[0].mxu0
        %v3651 = vadd.f32 %v3610, %v3650
        %v3652 = vpop.f32.mrb[0].mxu0
        %v3653 = vadd.f32 %v3612, %v3652
        %v3654 = vpop.f32.mrb[0].mxu0
        %v3655 = vpop.f32.mrb[0].mxu0
        %3656 = vdwg.mxu0
        %3657 = vmatprep.subr.bf16.mxu0 %v2808
        %3658 = vmatpush1.bf16.msra.mxu0 %v2807
        %3659 = vmatprep.subr.bf16.mxu0 %v2816
        %3660 = vmatpush1.bf16.msra.mxu0 %v2815
        %3661 = vmatprep.subr.bf16.mxu0 %v2824
        %3662 = vmatpush1.bf16.msra.mxu0 %v2823
        %3663 = vmatprep.subr.bf16.mxu0 %v2832
        %3664 = vmatpush1.bf16.msra.mxu0 %v2831
        %3665 = vmatprep.subr.bf16.mxu0 %v2840
        %3666 = vmatpush1.bf16.msra.mxu0 %v2839
        %3667 = vmatprep.subr.bf16.mxu0 %v2848
        %3668 = vmatpush1.bf16.msra.mxu0 %v2847
        %3669 = vmatprep.subr.bf16.mxu0 %v2856
        %3670 = vmatpush1.bf16.msra.mxu0 %v2855
        %3671 = vmatprep.subr.bf16.mxu0 %v2864
        %3672 = vmatpush1.bf16.msra.mxu0 %v2863
        %3673 = vmatprep.subr.bf16.mxu0 %v2872
        %3674 = vmatpush1.bf16.msra.mxu0 %v2871
        %3675 = vmatprep.subr.bf16.mxu0 %v2880
        %3676 = vmatpush1.bf16.msra.mxu0 %v2879
        %3677 = vmatprep.subr.bf16.mxu0 %v2888
        %3678 = vmatpush1.bf16.msra.mxu0 %v2887
        %3679 = vmatprep.subr.bf16.mxu0 %v2896
        %3680 = vmatpush1.bf16.msra.mxu0 %v2895
        %3681 = vmatprep.subr.bf16.mxu0 %v2904
        %3682 = vmatpush1.bf16.msra.mxu0 %v2903
        %3683 = vmatprep.subr.bf16.mxu0 %v2912
        %3684 = vmatpush1.bf16.msra.mxu0 %v2911
        %3685 = vmatprep.subr.bf16.mxu0 %v2920
        %3686 = vmatpush1.bf16.msra.mxu0 %v2919
        %3687 = vmatprep.subr.bf16.mxu0 %v2928
        %3688 = vmatpush1.bf16.msra.mxu0 %v2927
        %3689 = vmatprep.mubr.bf16.mxu0 %v456
        %3690 = vmatmul.mubr.bf16.gmra.mrb[0].mxu0 %v455
        %v3691 = vpop.f32.mrb[0].mxu0
        %v3692 = vadd.f32 %v3651, %v3691
        %v3693 = vpop.f32.mrb[0].mxu0
        %v3694 = vadd.f32 %v3653, %v3693
        %v3695 = vpop.f32.mrb[0].mxu0
        %v3696 = vpop.f32.mrb[0].mxu0
        %3697 = vdwg.mxu0
        %3698 = vmatprep.subr.bf16.mxu0 %v2936
        %3699 = vmatpush1.bf16.msra.mxu0 %v2935
        %3700 = vmatprep.subr.bf16.mxu0 %v2944
        %3701 = vmatpush1.bf16.msra.mxu0 %v2943
        %3702 = vmatprep.subr.bf16.mxu0 %v2952
        %3703 = vmatpush1.bf16.msra.mxu0 %v2951
        %3704 = vmatprep.subr.bf16.mxu0 %v2960
        %3705 = vmatpush1.bf16.msra.mxu0 %v2959
        %3706 = vmatprep.subr.bf16.mxu0 %v2968
        %3707 = vmatpush1.bf16.msra.mxu0 %v2967
        %3708 = vmatprep.subr.bf16.mxu0 %v2976
        %3709 = vmatpush1.bf16.msra.mxu0 %v2975
        %3710 = vmatprep.subr.bf16.mxu0 %v2984
        %3711 = vmatpush1.bf16.msra.mxu0 %v2983
        %3712 = vmatprep.subr.bf16.mxu0 %v2992
        %3713 = vmatpush1.bf16.msra.mxu0 %v2991
        %3714 = vmatprep.subr.bf16.mxu0 %v3000
        %3715 = vmatpush1.bf16.msra.mxu0 %v2999
        %3716 = vmatprep.subr.bf16.mxu0 %v3008
        %3717 = vmatpush1.bf16.msra.mxu0 %v3007
        %3718 = vmatprep.subr.bf16.mxu0 %v3016
        %3719 = vmatpush1.bf16.msra.mxu0 %v3015
        %3720 = vmatprep.subr.bf16.mxu0 %v3024
        %3721 = vmatpush1.bf16.msra.mxu0 %v3023
        %3722 = vmatprep.subr.bf16.mxu0 %v3032
        %3723 = vmatpush1.bf16.msra.mxu0 %v3031
        %3724 = vmatprep.subr.bf16.mxu0 %v3040
        %3725 = vmatpush1.bf16.msra.mxu0 %v3039
        %3726 = vmatprep.subr.bf16.mxu0 %v3048
        %3727 = vmatpush1.bf16.msra.mxu0 %v3047
        %3728 = vmatprep.subr.bf16.mxu0 %v3056
        %3729 = vmatpush1.bf16.msra.mxu0 %v3055
        %3730 = vmatprep.mubr.bf16.mxu0 %v458
        %3731 = vmatmul.mubr.bf16.gmra.mrb[0].mxu0 %v457
        %v3732 = vpop.f32.mrb[0].mxu0
        %v3733 = vadd.f32 %v3692, %v3732
        %v3734 = vpop.f32.mrb[0].mxu0
        %v3735 = vadd.f32 %v3694, %v3734
        %v3736 = vpop.f32.mrb[0].mxu0
        %v3737 = vpop.f32.mrb[0].mxu0
        %3738 = vdwg.mxu0
        %3739 = vmatprep.subr.bf16.mxu0 %v2554
        %3740 = vmatpush1.bf16.msra.mxu0 %v2553
        %3741 = vmatprep.subr.bf16.mxu0 %v2562
        %3742 = vmatpush1.bf16.msra.mxu0 %v2561
        %3743 = vmatprep.subr.bf16.mxu0 %v2570
        %3744 = vmatpush1.bf16.msra.mxu0 %v2569
        %3745 = vmatprep.subr.bf16.mxu0 %v2578
        %3746 = vmatpush1.bf16.msra.mxu0 %v2577
        %3747 = vmatprep.subr.bf16.mxu0 %v2586
        %3748 = vmatpush1.bf16.msra.mxu0 %v2585
        %3749 = vmatprep.subr.bf16.mxu0 %v2594
        %3750 = vmatpush1.bf16.msra.mxu0 %v2593
        %3751 = vmatprep.subr.bf16.mxu0 %v2602
        %3752 = vmatpush1.bf16.msra.mxu0 %v2601
        %3753 = vmatprep.subr.bf16.mxu0 %v2610
        %3754 = vmatpush1.bf16.msra.mxu0 %v2609
        %3755 = vmatprep.subr.bf16.mxu0 %v2618
        %3756 = vmatpush1.bf16.msra.mxu0 %v2617
        %3757 = vmatprep.subr.bf16.mxu0 %v2626
        %3758 = vmatpush1.bf16.msra.mxu0 %v2625
        %3759 = vmatprep.subr.bf16.mxu0 %v2634
        %3760 = vmatpush1.bf16.msra.mxu0 %v2633
        %3761 = vmatprep.subr.bf16.mxu0 %v2642
        %3762 = vmatpush1.bf16.msra.mxu0 %v2641
        %3763 = vmatprep.subr.bf16.mxu0 %v2650
        %3764 = vmatpush1.bf16.msra.mxu0 %v2649
        %3765 = vmatprep.subr.bf16.mxu0 %v2658
        %3766 = vmatpush1.bf16.msra.mxu0 %v2657
        %3767 = vmatprep.subr.bf16.mxu0 %v2666
        %3768 = vmatpush1.bf16.msra.mxu0 %v2665
        %3769 = vmatprep.subr.bf16.mxu0 %v2674
        %3770 = vmatpush1.bf16.msra.mxu0 %v2673
        %3771 = vmatprep.mubr.bf16.mxu0 %v452
        %3772 = vmatmul.mubr.bf16.gmra.mrb[0].mxu0 %v451
        %v3773 = vpop.f32.mrb[0].mxu0
        %v3774 = vadd.f32 %v986, %v3773
        %v3775 = vpop.f32.mrb[0].mxu0
        %v3776 = vadd.f32 %v990, %v3775
        %v3777 = vpop.f32.mrb[0].mxu0
        %v3778 = vpop.f32.mrb[0].mxu0
        %3779 = vdwg.mxu0
        %3780 = vmatprep.subr.bf16.mxu0 %v2682
        %3781 = vmatpush1.bf16.msra.mxu0 %v2681
        %3782 = vmatprep.subr.bf16.mxu0 %v2690
        %3783 = vmatpush1.bf16.msra.mxu0 %v2689
        %3784 = vmatprep.subr.bf16.mxu0 %v2698
        %3785 = vmatpush1.bf16.msra.mxu0 %v2697
        %3786 = vmatprep.subr.bf16.mxu0 %v2706
        %3787 = vmatpush1.bf16.msra.mxu0 %v2705
        %3788 = vmatprep.subr.bf16.mxu0 %v2714
        %3789 = vmatpush1.bf16.msra.mxu0 %v2713
        %3790 = vmatprep.subr.bf16.mxu0 %v2722
        %3791 = vmatpush1.bf16.msra.mxu0 %v2721
        %3792 = vmatprep.subr.bf16.mxu0 %v2730
        %3793 = vmatpush1.bf16.msra.mxu0 %v2729
        %3794 = vmatprep.subr.bf16.mxu0 %v2738
        %3795 = vmatpush1.bf16.msra.mxu0 %v2737
        %3796 = vmatprep.subr.bf16.mxu0 %v2746
        %3797 = vmatpush1.bf16.msra.mxu0 %v2745
        %3798 = vmatprep.subr.bf16.mxu0 %v2754
        %3799 = vmatpush1.bf16.msra.mxu0 %v2753
        %3800 = vmatprep.subr.bf16.mxu0 %v2762
        %3801 = vmatpush1.bf16.msra.mxu0 %v2761
        %3802 = vmatprep.subr.bf16.mxu0 %v2770
        %3803 = vmatpush1.bf16.msra.mxu0 %v2769
        %3804 = vmatprep.subr.bf16.mxu0 %v2778
        %3805 = vmatpush1.bf16.msra.mxu0 %v2777
        %3806 = vmatprep.subr.bf16.mxu0 %v2786
        %3807 = vmatpush1.bf16.msra.mxu0 %v2785
        %3808 = vmatprep.subr.bf16.mxu0 %v2794
        %3809 = vmatpush1.bf16.msra.mxu0 %v2793
        %3810 = vmatprep.subr.bf16.mxu0 %v2802
        %3811 = vmatpush1.bf16.msra.mxu0 %v2801
        %3812 = vmatprep.mubr.bf16.mxu0 %v454
        %3813 = vmatmul.mubr.bf16.gmra.mrb[0].mxu0 %v453
        %v3814 = vpop.f32.mrb[0].mxu0
        %v3815 = vadd.f32 %v3774, %v3814
        %v3816 = vpop.f32.mrb[0].mxu0
        %v3817 = vadd.f32 %v3776, %v3816
        %v3818 = vpop.f32.mrb[0].mxu0
        %v3819 = vpop.f32.mrb[0].mxu0
        %3820 = vdwg.mxu0
        %3821 = vmatprep.subr.bf16.mxu0 %v2810
        %3822 = vmatpush1.bf16.msra.mxu0 %v2809
        %3823 = vmatprep.subr.bf16.mxu0 %v2818
        %3824 = vmatpush1.bf16.msra.mxu0 %v2817
        %3825 = vmatprep.subr.bf16.mxu0 %v2826
        %3826 = vmatpush1.bf16.msra.mxu0 %v2825
        %3827 = vmatprep.subr.bf16.mxu0 %v2834
        %3828 = vmatpush1.bf16.msra.mxu0 %v2833
        %3829 = vmatprep.subr.bf16.mxu0 %v2842
        %3830 = vmatpush1.bf16.msra.mxu0 %v2841
        %3831 = vmatprep.subr.bf16.mxu0 %v2850
        %3832 = vmatpush1.bf16.msra.mxu0 %v2849
        %3833 = vmatprep.subr.bf16.mxu0 %v2858
        %3834 = vmatpush1.bf16.msra.mxu0 %v2857
        %3835 = vmatprep.subr.bf16.mxu0 %v2866
        %3836 = vmatpush1.bf16.msra.mxu0 %v2865
        %3837 = vmatprep.subr.bf16.mxu0 %v2874
        %3838 = vmatpush1.bf16.msra.mxu0 %v2873
        %3839 = vmatprep.subr.bf16.mxu0 %v2882
        %3840 = vmatpush1.bf16.msra.mxu0 %v2881
        %3841 = vmatprep.subr.bf16.mxu0 %v2890
        %3842 = vmatpush1.bf16.msra.mxu0 %v2889
        %3843 = vmatprep.subr.bf16.mxu0 %v2898
        %3844 = vmatpush1.bf16.msra.mxu0 %v2897
        %3845 = vmatprep.subr.bf16.mxu0 %v2906
        %3846 = vmatpush1.bf16.msra.mxu0 %v2905
        %3847 = vmatprep.subr.bf16.mxu0 %v2914
        %3848 = vmatpush1.bf16.msra.mxu0 %v2913
        %3849 = vmatprep.subr.bf16.mxu0 %v2922
        %3850 = vmatpush1.bf16.msra.mxu0 %v2921
        %3851 = vmatprep.subr.bf16.mxu0 %v2930
        %3852 = vmatpush1.bf16.msra.mxu0 %v2929
        %3853 = vmatprep.mubr.bf16.mxu0 %v456
        %3854 = vmatmul.mubr.bf16.gmra.mrb[0].mxu0 %v455
        %v3855 = vpop.f32.mrb[0].mxu0
        %v3856 = vadd.f32 %v3815, %v3855
        %v3857 = vpop.f32.mrb[0].mxu0
        %v3858 = vadd.f32 %v3817, %v3857
        %v3859 = vpop.f32.mrb[0].mxu0
        %v3860 = vpop.f32.mrb[0].mxu0
        %3861 = vdwg.mxu0
        %3862 = vmatprep.subr.bf16.mxu0 %v2938
        %3863 = vmatpush1.bf16.msra.mxu0 %v2937
        %3864 = vmatprep.subr.bf16.mxu0 %v2946
        %3865 = vmatpush1.bf16.msra.mxu0 %v2945
        %3866 = vmatprep.subr.bf16.mxu0 %v2954
        %3867 = vmatpush1.bf16.msra.mxu0 %v2953
        %3868 = vmatprep.subr.bf16.mxu0 %v2962
        %3869 = vmatpush1.bf16.msra.mxu0 %v2961
        %3870 = vmatprep.subr.bf16.mxu0 %v2970
        %3871 = vmatpush1.bf16.msra.mxu0 %v2969
        %3872 = vmatprep.subr.bf16.mxu0 %v2978
        %3873 = vmatpush1.bf16.msra.mxu0 %v2977
        %3874 = vmatprep.subr.bf16.mxu0 %v2986
        %3875 = vmatpush1.bf16.msra.mxu0 %v2985
        %3876 = vmatprep.subr.bf16.mxu0 %v2994
        %3877 = vmatpush1.bf16.msra.mxu0 %v2993
        %3878 = vmatprep.subr.bf16.mxu0 %v3002
        %3879 = vmatpush1.bf16.msra.mxu0 %v3001
        %3880 = vmatprep.subr.bf16.mxu0 %v3010
        %3881 = vmatpush1.bf16.msra.mxu0 %v3009
        %3882 = vmatprep.subr.bf16.mxu0 %v3018
        %3883 = vmatpush1.bf16.msra.mxu0 %v3017
        %3884 = vmatprep.subr.bf16.mxu0 %v3026
        %3885 = vmatpush1.bf16.msra.mxu0 %v3025
        %3886 = vmatprep.subr.bf16.mxu0 %v3034
        %3887 = vmatpush1.bf16.msra.mxu0 %v3033
        %3888 = vmatprep.subr.bf16.mxu0 %v3042
        %3889 = vmatpush1.bf16.msra.mxu0 %v3041
        %3890 = vmatprep.subr.bf16.mxu0 %v3050
        %3891 = vmatpush1.bf16.msra.mxu0 %v3049
        %3892 = vmatprep.subr.bf16.mxu0 %v3058
        %3893 = vmatpush1.bf16.msra.mxu0 %v3057
        %3894 = vmatprep.mubr.bf16.mxu0 %v458
        %3895 = vmatmul.mubr.bf16.gmra.mrb[0].mxu0 %v457
        %v3896 = vpop.f32.mrb[0].mxu0
        %v3897 = vadd.f32 %v3856, %v3896
        %v3898 = vpop.f32.mrb[0].mxu0
        %v3899 = vadd.f32 %v3858, %v3898
        %v3900 = vpop.f32.mrb[0].mxu0
        %v3901 = vpop.f32.mrb[0].mxu0
        %3902 = vdwg.mxu0
        %3903 = vmatprep.subr.bf16.mxu0 %v2556
        %3904 = vmatpush1.bf16.msra.mxu0 %v2555
        %3905 = vmatprep.subr.bf16.mxu0 %v2564
        %3906 = vmatpush1.bf16.msra.mxu0 %v2563
        %3907 = vmatprep.subr.bf16.mxu0 %v2572
        %3908 = vmatpush1.bf16.msra.mxu0 %v2571
        %3909 = vmatprep.subr.bf16.mxu0 %v2580
        %3910 = vmatpush1.bf16.msra.mxu0 %v2579
        %3911 = vmatprep.subr.bf16.mxu0 %v2588
        %3912 = vmatpush1.bf16.msra.mxu0 %v2587
        %3913 = vmatprep.subr.bf16.mxu0 %v2596
        %3914 = vmatpush1.bf16.msra.mxu0 %v2595
        %3915 = vmatprep.subr.bf16.mxu0 %v2604
        %3916 = vmatpush1.bf16.msra.mxu0 %v2603
        %3917 = vmatprep.subr.bf16.mxu0 %v2612
        %3918 = vmatpush1.bf16.msra.mxu0 %v2611
        %3919 = vmatprep.subr.bf16.mxu0 %v2620
        %3920 = vmatpush1.bf16.msra.mxu0 %v2619
        %3921 = vmatprep.subr.bf16.mxu0 %v2628
        %3922 = vmatpush1.bf16.msra.mxu0 %v2627
        %3923 = vmatprep.subr.bf16.mxu0 %v2636
        %3924 = vmatpush1.bf16.msra.mxu0 %v2635
        %3925 = vmatprep.subr.bf16.mxu0 %v2644
        %3926 = vmatpush1.bf16.msra.mxu0 %v2643
        %3927 = vmatprep.subr.bf16.mxu0 %v2652
        %3928 = vmatpush1.bf16.msra.mxu0 %v2651
        %3929 = vmatprep.subr.bf16.mxu0 %v2660
        %3930 = vmatpush1.bf16.msra.mxu0 %v2659
        %3931 = vmatprep.subr.bf16.mxu0 %v2668
        %3932 = vmatpush1.bf16.msra.mxu0 %v2667
        %3933 = vmatprep.subr.bf16.mxu0 %v2676
        %3934 = vmatpush1.bf16.msra.mxu0 %v2675
        %3935 = vmatprep.mubr.bf16.mxu0 %v452
        %3936 = vmatmul.mubr.bf16.gmra.mrb[0].mxu0 %v451
        %v3937 = vpop.f32.mrb[0].mxu0
        %v3938 = vadd.f32 %v994, %v3937
        %v3939 = vpop.f32.mrb[0].mxu0
        %v3940 = vadd.f32 %v998, %v3939
        %v3941 = vpop.f32.mrb[0].mxu0
        %v3942 = vpop.f32.mrb[0].mxu0
        %3943 = vdwg.mxu0
        %3944 = vmatprep.subr.bf16.mxu0 %v2684
        %3945 = vmatpush1.bf16.msra.mxu0 %v2683
        %3946 = vmatprep.subr.bf16.mxu0 %v2692
        %3947 = vmatpush1.bf16.msra.mxu0 %v2691
        %3948 = vmatprep.subr.bf16.mxu0 %v2700
        %3949 = vmatpush1.bf16.msra.mxu0 %v2699
        %3950 = vmatprep.subr.bf16.mxu0 %v2708
        %3951 = vmatpush1.bf16.msra.mxu0 %v2707
        %3952 = vmatprep.subr.bf16.mxu0 %v2716
        %3953 = vmatpush1.bf16.msra.mxu0 %v2715
        %3954 = vmatprep.subr.bf16.mxu0 %v2724
        %3955 = vmatpush1.bf16.msra.mxu0 %v2723
        %3956 = vmatprep.subr.bf16.mxu0 %v2732
        %3957 = vmatpush1.bf16.msra.mxu0 %v2731
        %3958 = vmatprep.subr.bf16.mxu0 %v2740
        %3959 = vmatpush1.bf16.msra.mxu0 %v2739
        %3960 = vmatprep.subr.bf16.mxu0 %v2748
        %3961 = vmatpush1.bf16.msra.mxu0 %v2747
        %3962 = vmatprep.subr.bf16.mxu0 %v2756
        %3963 = vmatpush1.bf16.msra.mxu0 %v2755
        %3964 = vmatprep.subr.bf16.mxu0 %v2764
        %3965 = vmatpush1.bf16.msra.mxu0 %v2763
        %3966 = vmatprep.subr.bf16.mxu0 %v2772
        %3967 = vmatpush1.bf16.msra.mxu0 %v2771
        %3968 = vmatprep.subr.bf16.mxu0 %v2780
        %3969 = vmatpush1.bf16.msra.mxu0 %v2779
        %3970 = vmatprep.subr.bf16.mxu0 %v2788
        %3971 = vmatpush1.bf16.msra.mxu0 %v2787
        %3972 = vmatprep.subr.bf16.mxu0 %v2796
        %3973 = vmatpush1.bf16.msra.mxu0 %v2795
        %3974 = vmatprep.subr.bf16.mxu0 %v2804
        %3975 = vmatpush1.bf16.msra.mxu0 %v2803
        %3976 = vmatprep.mubr.bf16.mxu0 %v454
        %3977 = vmatmul.mubr.bf16.gmra.mrb[0].mxu0 %v453
        %v3978 = vpop.f32.mrb[0].mxu0
        %v3979 = vadd.f32 %v3938, %v3978
        %v3980 = vpop.f32.mrb[0].mxu0
        %v3981 = vadd.f32 %v3940, %v3980
        %v3982 = vpop.f32.mrb[0].mxu0
        %v3983 = vpop.f32.mrb[0].mxu0
        %3984 = vdwg.mxu0
        %3985 = vmatprep.subr.bf16.mxu0 %v2812
        %3986 = vmatpush1.bf16.msra.mxu0 %v2811
        %3987 = vmatprep.subr.bf16.mxu0 %v2820
        %3988 = vmatpush1.bf16.msra.mxu0 %v2819
        %3989 = vmatprep.subr.bf16.mxu0 %v2828
        %3990 = vmatpush1.bf16.msra.mxu0 %v2827
        %3991 = vmatprep.subr.bf16.mxu0 %v2836
        %3992 = vmatpush1.bf16.msra.mxu0 %v2835
        %3993 = vmatprep.subr.bf16.mxu0 %v2844
        %3994 = vmatpush1.bf16.msra.mxu0 %v2843
        %3995 = vmatprep.subr.bf16.mxu0 %v2852
        %3996 = vmatpush1.bf16.msra.mxu0 %v2851
        %3997 = vmatprep.subr.bf16.mxu0 %v2860
        %3998 = vmatpush1.bf16.msra.mxu0 %v2859
        %3999 = vmatprep.subr.bf16.mxu0 %v2868
        %4000 = vmatpush1.bf16.msra.mxu0 %v2867
        %4001 = vmatprep.subr.bf16.mxu0 %v2876
        %4002 = vmatpush1.bf16.msra.mxu0 %v2875
        %4003 = vmatprep.subr.bf16.mxu0 %v2884
        %4004 = vmatpush1.bf16.msra.mxu0 %v2883
        %4005 = vmatprep.subr.bf16.mxu0 %v2892
        %4006 = vmatpush1.bf16.msra.mxu0 %v2891
        %4007 = vmatprep.subr.bf16.mxu0 %v2900
        %4008 = vmatpush1.bf16.msra.mxu0 %v2899
        %4009 = vmatprep.subr.bf16.mxu0 %v2908
        %4010 = vmatpush1.bf16.msra.mxu0 %v2907
        %4011 = vmatprep.subr.bf16.mxu0 %v2916
        %4012 = vmatpush1.bf16.msra.mxu0 %v2915
        %4013 = vmatprep.subr.bf16.mxu0 %v2924
        %4014 = vmatpush1.bf16.msra.mxu0 %v2923
        %4015 = vmatprep.subr.bf16.mxu0 %v2932
        %4016 = vmatpush1.bf16.msra.mxu0 %v2931
        %4017 = vmatprep.mubr.bf16.mxu0 %v456
        %4018 = vmatmul.mubr.bf16.gmra.mrb[0].mxu0 %v455
        %v4019 = vpop.f32.mrb[0].mxu0
        %v4020 = vadd.f32 %v3979, %v4019
        %v4021 = vpop.f32.mrb[0].mxu0
        %v4022 = vadd.f32 %v3981, %v4021
        %v4023 = vpop.f32.mrb[0].mxu0
        %v4024 = vpop.f32.mrb[0].mxu0
        %4025 = vdwg.mxu0
        %4026 = vmatprep.subr.bf16.mxu0 %v2940
        %4027 = vmatpush1.bf16.msra.mxu0 %v2939
        %4028 = vmatprep.subr.bf16.mxu0 %v2948
        %4029 = vmatpush1.bf16.msra.mxu0 %v2947
        %4030 = vmatprep.subr.bf16.mxu0 %v2956
        %4031 = vmatpush1.bf16.msra.mxu0 %v2955
        %4032 = vmatprep.subr.bf16.mxu0 %v2964
        %4033 = vmatpush1.bf16.msra.mxu0 %v2963
        %4034 = vmatprep.subr.bf16.mxu0 %v2972
        %4035 = vmatpush1.bf16.msra.mxu0 %v2971
        %4036 = vmatprep.subr.bf16.mxu0 %v2980
        %4037 = vmatpush1.bf16.msra.mxu0 %v2979
        %4038 = vmatprep.subr.bf16.mxu0 %v2988
        %4039 = vmatpush1.bf16.msra.mxu0 %v2987
        %4040 = vmatprep.subr.bf16.mxu0 %v2996
        %4041 = vmatpush1.bf16.msra.mxu0 %v2995
        %4042 = vmatprep.subr.bf16.mxu0 %v3004
        %4043 = vmatpush1.bf16.msra.mxu0 %v3003
        %4044 = vmatprep.subr.bf16.mxu0 %v3012
        %4045 = vmatpush1.bf16.msra.mxu0 %v3011
        %4046 = vmatprep.subr.bf16.mxu0 %v3020
        %4047 = vmatpush1.bf16.msra.mxu0 %v3019
        %4048 = vmatprep.subr.bf16.mxu0 %v3028
        %4049 = vmatpush1.bf16.msra.mxu0 %v3027
        %4050 = vmatprep.subr.bf16.mxu0 %v3036
        %4051 = vmatpush1.bf16.msra.mxu0 %v3035
        %4052 = vmatprep.subr.bf16.mxu0 %v3044
        %4053 = vmatpush1.bf16.msra.mxu0 %v3043
        %4054 = vmatprep.subr.bf16.mxu0 %v3052
        %4055 = vmatpush1.bf16.msra.mxu0 %v3051
        %4056 = vmatprep.subr.bf16.mxu0 %v3060
        %4057 = vmatpush1.bf16.msra.mxu0 %v3059
        %4058 = vmatprep.mubr.bf16.mxu0 %v458
        %4059 = vmatmul.mubr.bf16.gmra.mrb[0].mxu0 %v457
        %v4060 = vpop.f32.mrb[0].mxu0
        %v4061 = vadd.f32 %v4020, %v4060
        %v4062 = vpop.f32.mrb[0].mxu0
        %v4063 = vadd.f32 %v4022, %v4062
        %v4064 = vpop.f32.mrb[0].mxu0
        %v4065 = vpop.f32.mrb[0].mxu0
        %4066 = vdwg.mxu0
        %4067 = vmatprep.subr.bf16.mxu0 %v2558
        %4068 = vmatpush1.bf16.msra.mxu0 %v2557
        %4069 = vmatprep.subr.bf16.mxu0 %v2566
        %4070 = vmatpush1.bf16.msra.mxu0 %v2565
        %4071 = vmatprep.subr.bf16.mxu0 %v2574
        %4072 = vmatpush1.bf16.msra.mxu0 %v2573
        %4073 = vmatprep.subr.bf16.mxu0 %v2582
        %4074 = vmatpush1.bf16.msra.mxu0 %v2581
        %4075 = vmatprep.subr.bf16.mxu0 %v2590
        %4076 = vmatpush1.bf16.msra.mxu0 %v2589
        %4077 = vmatprep.subr.bf16.mxu0 %v2598
        %4078 = vmatpush1.bf16.msra.mxu0 %v2597
        %4079 = vmatprep.subr.bf16.mxu0 %v2606
        %4080 = vmatpush1.bf16.msra.mxu0 %v2605
        %4081 = vmatprep.subr.bf16.mxu0 %v2614
        %4082 = vmatpush1.bf16.msra.mxu0 %v2613
        %4083 = vmatprep.subr.bf16.mxu0 %v2622
        %4084 = vmatpush1.bf16.msra.mxu0 %v2621
        %4085 = vmatprep.subr.bf16.mxu0 %v2630
        %4086 = vmatpush1.bf16.msra.mxu0 %v2629
        %4087 = vmatprep.subr.bf16.mxu0 %v2638
        %4088 = vmatpush1.bf16.msra.mxu0 %v2637
        %4089 = vmatprep.subr.bf16.mxu0 %v2646
        %4090 = vmatpush1.bf16.msra.mxu0 %v2645
        %4091 = vmatprep.subr.bf16.mxu0 %v2654
        %4092 = vmatpush1.bf16.msra.mxu0 %v2653
        %4093 = vmatprep.subr.bf16.mxu0 %v2662
        %4094 = vmatpush1.bf16.msra.mxu0 %v2661
        %4095 = vmatprep.subr.bf16.mxu0 %v2670
        %4096 = vmatpush1.bf16.msra.mxu0 %v2669
        %4097 = vmatprep.subr.bf16.mxu0 %v2678
        %4098 = vmatpush1.bf16.msra.mxu0 %v2677
        %4099 = vmatprep.mubr.bf16.mxu0 %v452
        %4100 = vmatmul.mubr.bf16.gmra.mrb[0].mxu0 %v451
        %v4101 = vpop.f32.mrb[0].mxu0
        %v4102 = vadd.f32 %v1002, %v4101
        %v4103 = vpop.f32.mrb[0].mxu0
        %v4104 = vadd.f32 %v1006, %v4103
        %v4105 = vpop.f32.mrb[0].mxu0
        %v4106 = vpop.f32.mrb[0].mxu0
        %4107 = vdwg.mxu0
        %4108 = vmatprep.subr.bf16.mxu0 %v2686
        %4109 = vmatpush1.bf16.msra.mxu0 %v2685
        %4110 = vmatprep.subr.bf16.mxu0 %v2694
        %4111 = vmatpush1.bf16.msra.mxu0 %v2693
        %4112 = vmatprep.subr.bf16.mxu0 %v2702
        %4113 = vmatpush1.bf16.msra.mxu0 %v2701
        %4114 = vmatprep.subr.bf16.mxu0 %v2710
        %4115 = vmatpush1.bf16.msra.mxu0 %v2709
        %4116 = vmatprep.subr.bf16.mxu0 %v2718
        %4117 = vmatpush1.bf16.msra.mxu0 %v2717
        %4118 = vmatprep.subr.bf16.mxu0 %v2726
        %4119 = vmatpush1.bf16.msra.mxu0 %v2725
        %4120 = vmatprep.subr.bf16.mxu0 %v2734
        %4121 = vmatpush1.bf16.msra.mxu0 %v2733
        %4122 = vmatprep.subr.bf16.mxu0 %v2742
        %4123 = vmatpush1.bf16.msra.mxu0 %v2741
        %4124 = vmatprep.subr.bf16.mxu0 %v2750
        %4125 = vmatpush1.bf16.msra.mxu0 %v2749
        %4126 = vmatprep.subr.bf16.mxu0 %v2758
        %4127 = vmatpush1.bf16.msra.mxu0 %v2757
        %4128 = vmatprep.subr.bf16.mxu0 %v2766
        %4129 = vmatpush1.bf16.msra.mxu0 %v2765
        %4130 = vmatprep.subr.bf16.mxu0 %v2774
        %4131 = vmatpush1.bf16.msra.mxu0 %v2773
        %4132 = vmatprep.subr.bf16.mxu0 %v2782
        %4133 = vmatpush1.bf16.msra.mxu0 %v2781
        %4134 = vmatprep.subr.bf16.mxu0 %v2790
        %4135 = vmatpush1.bf16.msra.mxu0 %v2789
        %4136 = vmatprep.subr.bf16.mxu0 %v2798
        %4137 = vmatpush1.bf16.msra.mxu0 %v2797
        %4138 = vmatprep.subr.bf16.mxu0 %v2806
        %4139 = vmatpush1.bf16.msra.mxu0 %v2805
        %4140 = vmatprep.mubr.bf16.mxu0 %v454
        %4141 = vmatmul.mubr.bf16.gmra.mrb[0].mxu0 %v453
        %v4142 = vpop.f32.mrb[0].mxu0
        %v4143 = vadd.f32 %v4102, %v4142
        %v4144 = vpop.f32.mrb[0].mxu0
        %v4145 = vadd.f32 %v4104, %v4144
        %v4146 = vpop.f32.mrb[0].mxu0
        %v4147 = vpop.f32.mrb[0].mxu0
        %4148 = vdwg.mxu0
        %4149 = vmatprep.subr.bf16.mxu0 %v2814
        %4150 = vmatpush1.bf16.msra.mxu0 %v2813
        %4151 = vmatprep.subr.bf16.mxu0 %v2822
        %4152 = vmatpush1.bf16.msra.mxu0 %v2821
        %4153 = vmatprep.subr.bf16.mxu0 %v2830
        %4154 = vmatpush1.bf16.msra.mxu0 %v2829
        %4155 = vmatprep.subr.bf16.mxu0 %v2838
        %4156 = vmatpush1.bf16.msra.mxu0 %v2837
        %4157 = vmatprep.subr.bf16.mxu0 %v2846
        %4158 = vmatpush1.bf16.msra.mxu0 %v2845
        %4159 = vmatprep.subr.bf16.mxu0 %v2854
        %4160 = vmatpush1.bf16.msra.mxu0 %v2853
        %4161 = vmatprep.subr.bf16.mxu0 %v2862
        %4162 = vmatpush1.bf16.msra.mxu0 %v2861
        %4163 = vmatprep.subr.bf16.mxu0 %v2870
        %4164 = vmatpush1.bf16.msra.mxu0 %v2869
        %4165 = vmatprep.subr.bf16.mxu0 %v2878
        %4166 = vmatpush1.bf16.msra.mxu0 %v2877
        %4167 = vmatprep.subr.bf16.mxu0 %v2886
        %4168 = vmatpush1.bf16.msra.mxu0 %v2885
        %4169 = vmatprep.subr.bf16.mxu0 %v2894
        %4170 = vmatpush1.bf16.msra.mxu0 %v2893
        %4171 = vmatprep.subr.bf16.mxu0 %v2902
        %4172 = vmatpush1.bf16.msra.mxu0 %v2901
        %4173 = vmatprep.subr.bf16.mxu0 %v2910
        %4174 = vmatpush1.bf16.msra.mxu0 %v2909
        %4175 = vmatprep.subr.bf16.mxu0 %v2918
        %4176 = vmatpush1.bf16.msra.mxu0 %v2917
        %4177 = vmatprep.subr.bf16.mxu0 %v2926
        %4178 = vmatpush1.bf16.msra.mxu0 %v2925
        %4179 = vmatprep.subr.bf16.mxu0 %v2934
        %4180 = vmatpush1.bf16.msra.mxu0 %v2933
        %4181 = vmatprep.mubr.bf16.mxu0 %v456
        %4182 = vmatmul.mubr.bf16.gmra.mrb[0].mxu0 %v455
        %v4183 = vpop.f32.mrb[0].mxu0
        %v4184 = vadd.f32 %v4143, %v4183
        %v4185 = vpop.f32.mrb[0].mxu0
        %v4186 = vadd.f32 %v4145, %v4185
        %v4187 = vpop.f32.mrb[0].mxu0
        %v4188 = vpop.f32.mrb[0].mxu0
        %4189 = vdwg.mxu0
        %4190 = vmatprep.subr.bf16.mxu0 %v2942
        %4191 = vmatpush1.bf16.msra.mxu0 %v2941
        %4192 = vmatprep.subr.bf16.mxu0 %v2950
        %4193 = vmatpush1.bf16.msra.mxu0 %v2949
        %4194 = vmatprep.subr.bf16.mxu0 %v2958
        %4195 = vmatpush1.bf16.msra.mxu0 %v2957
        %4196 = vmatprep.subr.bf16.mxu0 %v2966
        %4197 = vmatpush1.bf16.msra.mxu0 %v2965
        %4198 = vmatprep.subr.bf16.mxu0 %v2974
        %4199 = vmatpush1.bf16.msra.mxu0 %v2973
        %4200 = vmatprep.subr.bf16.mxu0 %v2982
        %4201 = vmatpush1.bf16.msra.mxu0 %v2981
        %4202 = vmatprep.subr.bf16.mxu0 %v2990
        %4203 = vmatpush1.bf16.msra.mxu0 %v2989
        %4204 = vmatprep.subr.bf16.mxu0 %v2998
        %4205 = vmatpush1.bf16.msra.mxu0 %v2997
        %4206 = vmatprep.subr.bf16.mxu0 %v3006
        %4207 = vmatpush1.bf16.msra.mxu0 %v3005
        %4208 = vmatprep.subr.bf16.mxu0 %v3014
        %4209 = vmatpush1.bf16.msra.mxu0 %v3013
        %4210 = vmatprep.subr.bf16.mxu0 %v3022
        %4211 = vmatpush1.bf16.msra.mxu0 %v3021
        %4212 = vmatprep.subr.bf16.mxu0 %v3030
        %4213 = vmatpush1.bf16.msra.mxu0 %v3029
        %4214 = vmatprep.subr.bf16.mxu0 %v3038
        %4215 = vmatpush1.bf16.msra.mxu0 %v3037
        %4216 = vmatprep.subr.bf16.mxu0 %v3046
        %4217 = vmatpush1.bf16.msra.mxu0 %v3045
        %4218 = vmatprep.subr.bf16.mxu0 %v3054
        %4219 = vmatpush1.bf16.msra.mxu0 %v3053
        %4220 = vmatprep.subr.bf16.mxu0 %v3062
        %4221 = vmatpush1.bf16.msra.mxu0 %v3061
        %4222 = vmatprep.mubr.bf16.mxu0 %v458
        %4223 = vmatmul.mubr.bf16.gmra.mrb[0].mxu0 %v457
        %v4224 = vpop.f32.mrb[0].mxu0
        %v4225 = vadd.f32 %v4184, %v4224
        %v4226 = vpop.f32.mrb[0].mxu0
        %v4227 = vadd.f32 %v4186, %v4226
        %v4228 = vpop.f32.mrb[0].mxu0
        %v4229 = vpop.f32.mrb[0].mxu0
        %4230 = vdwg.mxu0
        %v4231 = vmax.f32 %v3733, 0.0
        %v4232 = vmax.f32 %v3735, 0.0
        %v4233 = vmax.f32 %v3897, 0.0
        %v4234 = vmax.f32 %v3899, 0.0
        %v4235 = vmax.f32 %v4061, 0.0
        %v4236 = vmax.f32 %v4063, 0.0
        %v4237 = vmax.f32 %v4225, 0.0
        %v4238 = vmax.f32 %v4227, 0.0
        %s4239 = scalar_lea.vmem %s441, 1
        %v4240 = vld [vmem:[%s4239] ss:$8 sm:$0xf]
        %v4241 = vld [vmem:[%s4239] ss:$8 sm:$0xf0]
        %v4242 = vor.u32 %v4240, %v4241
        %s4243 = scalar_lea.vmem %s441, 2
        %v4244 = vld [vmem:[%s4243] ss:$8 sm:$0xf]
        %v4245 = vld [vmem:[%s4243] ss:$8 sm:$0xf0]
        %v4246 = vor.u32 %v4244, %v4245
        %v4247 = vrot.slane %v4231, 4
        %v4248 = vadd.f32 %v4231, %v4247
        %v4249 = vrot.slane %v4248, 2
        %v4250 = vadd.f32 %v4248, %v4249
        %v4251 = vrot.slane %v4250, 1
        %v4252 = vadd.f32 %v4250, %v4251
        %v4253 = vrot.slane %v4232, 4
        %v4254 = vadd.f32 %v4232, %v4253
        %v4255 = vrot.slane %v4254, 2
        %v4256 = vadd.f32 %v4254, %v4255
        %v4257 = vrot.slane %v4256, 1
        %v4258 = vadd.f32 %v4256, %v4257
        %v4259 = vrot.slane %v4233, 4
        %v4260 = vadd.f32 %v4233, %v4259
        %v4261 = vrot.slane %v4260, 2
        %v4262 = vadd.f32 %v4260, %v4261
        %v4263 = vrot.slane %v4262, 1
        %v4264 = vadd.f32 %v4262, %v4263
        %v4265 = vrot.slane %v4234, 4
        %v4266 = vadd.f32 %v4234, %v4265
        %v4267 = vrot.slane %v4266, 2
        %v4268 = vadd.f32 %v4266, %v4267
        %v4269 = vrot.slane %v4268, 1
        %v4270 = vadd.f32 %v4268, %v4269
        %v4271 = vrot.slane %v4235, 4
        %v4272 = vadd.f32 %v4235, %v4271
        %v4273 = vrot.slane %v4272, 2
        %v4274 = vadd.f32 %v4272, %v4273
        %v4275 = vrot.slane %v4274, 1
        %v4276 = vadd.f32 %v4274, %v4275
        %v4277 = vrot.slane %v4236, 4
        %v4278 = vadd.f32 %v4236, %v4277
        %v4279 = vrot.slane %v4278, 2
        %v4280 = vadd.f32 %v4278, %v4279
        %v4281 = vrot.slane %v4280, 1
        %v4282 = vadd.f32 %v4280, %v4281
        %v4283 = vrot.slane %v4237, 4
        %v4284 = vadd.f32 %v4237, %v4283
        %v4285 = vrot.slane %v4284, 2
        %v4286 = vadd.f32 %v4284, %v4285
        %v4287 = vrot.slane %v4286, 1
        %v4288 = vadd.f32 %v4286, %v4287
        %v4289 = vrot.slane %v4238, 4
        %v4290 = vadd.f32 %v4238, %v4289
        %v4291 = vrot.slane %v4290, 2
        %v4292 = vadd.f32 %v4290, %v4291
        %v4293 = vrot.slane %v4292, 1
        %v4294 = vadd.f32 %v4292, %v4293
        %v4295 = vrcp.pop 8.0
        %v4296 = vmul.f32 %v4252, %v4295
        %v4297 = vmul.f32 %v4258, %v4295
        %v4298 = vmul.f32 %v4264, %v4295
        %v4299 = vmul.f32 %v4270, %v4295
        %v4300 = vmul.f32 %v4276, %v4295
        %v4301 = vmul.f32 %v4282, %v4295
        %v4302 = vmul.f32 %v4288, %v4295
        %v4303 = vmul.f32 %v4294, %v4295
        %v4304 = vsub.f32 %v4231, %v4296
        %v4305 = vsub.f32 %v4232, %v4297
        %v4306 = vsub.f32 %v4233, %v4298
        %v4307 = vsub.f32 %v4234, %v4299
        %v4308 = vsub.f32 %v4235, %v4300
        %v4309 = vsub.f32 %v4236, %v4301
        %v4310 = vsub.f32 %v4237, %v4302
        %v4311 = vsub.f32 %v4238, %v4303
        %v4312 = vmul.f32 %v4304, %v4304
        %v4313 = vmul.f32 %v4305, %v4305
        %v4314 = vmul.f32 %v4306, %v4306
        %v4315 = vmul.f32 %v4307, %v4307
        %v4316 = vmul.f32 %v4308, %v4308
        %v4317 = vmul.f32 %v4309, %v4309
        %v4318 = vmul.f32 %v4310, %v4310
        %v4319 = vmul.f32 %v4311, %v4311
        %v4320 = vrot.slane %v4312, 4
        %v4321 = vadd.f32 %v4312, %v4320
        %v4322 = vrot.slane %v4321, 2
        %v4323 = vadd.f32 %v4321, %v4322
        %v4324 = vrot.slane %v4323, 1
        %v4325 = vadd.f32 %v4323, %v4324
        %v4326 = vrot.slane %v4313, 4
        %v4327 = vadd.f32 %v4313, %v4326
        %v4328 = vrot.slane %v4327, 2
        %v4329 = vadd.f32 %v4327, %v4328
        %v4330 = vrot.slane %v4329, 1
        %v4331 = vadd.f32 %v4329, %v4330
        %v4332 = vrot.slane %v4314, 4
        %v4333 = vadd.f32 %v4314, %v4332
        %v4334 = vrot.slane %v4333, 2
        %v4335 = vadd.f32 %v4333, %v4334
        %v4336 = vrot.slane %v4335, 1
        %v4337 = vadd.f32 %v4335, %v4336
        %v4338 = vrot.slane %v4315, 4
        %v4339 = vadd.f32 %v4315, %v4338
        %v4340 = vrot.slane %v4339, 2
        %v4341 = vadd.f32 %v4339, %v4340
        %v4342 = vrot.slane %v4341, 1
        %v4343 = vadd.f32 %v4341, %v4342
        %v4344 = vrot.slane %v4316, 4
        %v4345 = vadd.f32 %v4316, %v4344
        %v4346 = vrot.slane %v4345, 2
        %v4347 = vadd.f32 %v4345, %v4346
        %v4348 = vrot.slane %v4347, 1
        %v4349 = vadd.f32 %v4347, %v4348
        %v4350 = vrot.slane %v4317, 4
        %v4351 = vadd.f32 %v4317, %v4350
        %v4352 = vrot.slane %v4351, 2
        %v4353 = vadd.f32 %v4351, %v4352
        %v4354 = vrot.slane %v4353, 1
        %v4355 = vadd.f32 %v4353, %v4354
        %v4356 = vrot.slane %v4318, 4
        %v4357 = vadd.f32 %v4318, %v4356
        %v4358 = vrot.slane %v4357, 2
        %v4359 = vadd.f32 %v4357, %v4358
        %v4360 = vrot.slane %v4359, 1
        %v4361 = vadd.f32 %v4359, %v4360
        %v4362 = vrot.slane %v4319, 4
        %v4363 = vadd.f32 %v4319, %v4362
        %v4364 = vrot.slane %v4363, 2
        %v4365 = vadd.f32 %v4363, %v4364
        %v4366 = vrot.slane %v4365, 1
        %v4367 = vadd.f32 %v4365, %v4366
        %v4368 = vmul.f32 %v4325, %v4295
        %v4369 = vmul.f32 %v4331, %v4295
        %v4370 = vmul.f32 %v4337, %v4295
        %v4371 = vmul.f32 %v4343, %v4295
        %v4372 = vmul.f32 %v4349, %v4295
        %v4373 = vmul.f32 %v4355, %v4295
        %v4374 = vmul.f32 %v4361, %v4295
        %v4375 = vmul.f32 %v4367, %v4295
        %v4376 = vadd.f32 %v4368, 1e-05
        %v4377 = vadd.f32 %v4369, 1e-05
        %v4378 = vadd.f32 %v4370, 1e-05
        %v4379 = vadd.f32 %v4371, 1e-05
        %v4380 = vadd.f32 %v4372, 1e-05
        %v4381 = vadd.f32 %v4373, 1e-05
        %v4382 = vadd.f32 %v4374, 1e-05
        %v4383 = vadd.f32 %v4375, 1e-05
        %v4384 = vrsqrt.pop %v4376
        %v4385 = vrsqrt.pop %v4377
        %v4386 = vrsqrt.pop %v4378
        %v4387 = vrsqrt.pop %v4379
        %v4388 = vrsqrt.pop %v4380
        %v4389 = vrsqrt.pop %v4381
        %v4390 = vrsqrt.pop %v4382
        %v4391 = vrsqrt.pop %v4383
        %v4392 = vmul.f32 %v4304, %v4384
        %v4393 = vmul.f32 %v4305, %v4385
        %v4394 = vmul.f32 %v4306, %v4386
        %v4395 = vmul.f32 %v4307, %v4387
        %v4396 = vmul.f32 %v4308, %v4388
        %v4397 = vmul.f32 %v4309, %v4389
        %v4398 = vmul.f32 %v4310, %v4390
        %v4399 = vmul.f32 %v4311, %v4391
        %v4401 = vlaneseq
        %v4402 = vshrl.u32 %v4401, 7
        %v4403 = vsub.s32 0, %v4402
        %v4404 = vrot.slane %v4242, %v4403
        %v4405 = vlaneseq
        %v4406 = vshrl.u32 %v4405, 7
        %v4407 = vsub.s32 1, %v4406
        %v4408 = vrot.slane %v4242, %v4407
        %v4409 = vlaneseq
        %v4410 = vshrl.u32 %v4409, 7
        %v4411 = vsub.s32 2, %v4410
        %v4412 = vrot.slane %v4242, %v4411
        %v4413 = vlaneseq
        %v4414 = vshrl.u32 %v4413, 7
        %v4415 = vsub.s32 3, %v4414
        %v4416 = vrot.slane %v4242, %v4415
        %v4417 = vlaneseq
        %v4418 = vshrl.u32 %v4417, 7
        %v4419 = vsub.s32 4, %v4418
        %v4420 = vrot.slane %v4242, %v4419
        %v4421 = vlaneseq
        %v4422 = vshrl.u32 %v4421, 7
        %v4423 = vsub.s32 5, %v4422
        %v4424 = vrot.slane %v4242, %v4423
        %v4425 = vlaneseq
        %v4426 = vshrl.u32 %v4425, 7
        %v4427 = vsub.s32 6, %v4426
        %v4428 = vrot.slane %v4242, %v4427
        %v4429 = vlaneseq
        %v4430 = vshrl.u32 %v4429, 7
        %v4431 = vsub.s32 7, %v4430
        %v4432 = vrot.slane %v4242, %v4431
        %v4441 = vmul.f32 %v4392, %v4404
        %v4442 = vmul.f32 %v4393, %v4408
        %v4443 = vmul.f32 %v4394, %v4412
        %v4444 = vmul.f32 %v4395, %v4416
        %v4445 = vmul.f32 %v4396, %v4420
        %v4446 = vmul.f32 %v4397, %v4424
        %v4447 = vmul.f32 %v4398, %v4428
        %v4448 = vmul.f32 %v4399, %v4432
        %v4450 = vlaneseq
        %v4451 = vshrl.u32 %v4450, 7
        %v4452 = vsub.s32 0, %v4451
        %v4453 = vrot.slane %v4246, %v4452
        %v4454 = vlaneseq
        %v4455 = vshrl.u32 %v4454, 7
        %v4456 = vsub.s32 1, %v4455
        %v4457 = vrot.slane %v4246, %v4456
        %v4458 = vlaneseq
        %v4459 = vshrl.u32 %v4458, 7
        %v4460 = vsub.s32 2, %v4459
        %v4461 = vrot.slane %v4246, %v4460
        %v4462 = vlaneseq
        %v4463 = vshrl.u32 %v4462, 7
        %v4464 = vsub.s32 3, %v4463
        %v4465 = vrot.slane %v4246, %v4464
        %v4466 = vlaneseq
        %v4467 = vshrl.u32 %v4466, 7
        %v4468 = vsub.s32 4, %v4467
        %v4469 = vrot.slane %v4246, %v4468
        %v4470 = vlaneseq
        %v4471 = vshrl.u32 %v4470, 7
        %v4472 = vsub.s32 5, %v4471
        %v4473 = vrot.slane %v4246, %v4472
        %v4474 = vlaneseq
        %v4475 = vshrl.u32 %v4474, 7
        %v4476 = vsub.s32 6, %v4475
        %v4477 = vrot.slane %v4246, %v4476
        %v4478 = vlaneseq
        %v4479 = vshrl.u32 %v4478, 7
        %v4480 = vsub.s32 7, %v4479
        %v4481 = vrot.slane %v4246, %v4480
        %v4490 = vadd.f32 %v4441, %v4453
        %v4491 = vadd.f32 %v4442, %v4457
        %v4492 = vadd.f32 %v4443, %v4461
        %v4493 = vadd.f32 %v4444, %v4465
        %v4494 = vadd.f32 %v4445, %v4469
        %v4495 = vadd.f32 %v4446, %v4473
        %v4496 = vadd.f32 %v4447, %v4477
        %v4497 = vadd.f32 %v4448, %v4481
        %v4498 = vpack.c.bf16 %v4490, %v4490
        %v4499 = vpack.c.bf16 %v4491, %v4491
        %v4500 = vpack.c.bf16 %v4492, %v4492
        %v4501 = vpack.c.bf16 %v4493, %v4493
        %v4502 = vpack.c.bf16 %v4494, %v4494
        %v4503 = vpack.c.bf16 %v4495, %v4495
        %v4504 = vpack.c.bf16 %v4496, %v4496
        %v4505 = vpack.c.bf16 %v4497, %v4497
        %v4506 = vld [vmem:[%s365] sm:$0xff]
        %v4507 = vld [vmem:[%s365 + $0x8] sm:$0xff]
        %v4508 = vld [vmem:[%s365 + $0x10] sm:$0xff]
        %v4509 = vld [vmem:[%s365 + $0x18] sm:$0xff]
        %v4510 = vld [vmem:[%s365 + $0x20] sm:$0xff]
        %v4511 = vld [vmem:[%s365 + $0x28] sm:$0xff]
        %v4512 = vld [vmem:[%s365 + $0x30] sm:$0xff]
        %v4513 = vld [vmem:[%s365 + $0x38] sm:$0xff]
        %v4514 = vld [vmem:[%s365 + $0x40] sm:$0xff]
        %v4515 = vld [vmem:[%s365 + $0x48] sm:$0xff]
        %v4516 = vld [vmem:[%s365 + $0x50] sm:$0xff]
        %v4517 = vld [vmem:[%s365 + $0x58] sm:$0xff]
        %v4518 = vld [vmem:[%s365 + $0x60] sm:$0xff]
        %v4519 = vld [vmem:[%s365 + $0x68] sm:$0xff]
        %v4520 = vld [vmem:[%s365 + $0x70] sm:$0xff]
        %v4521 = vld [vmem:[%s365 + $0x78] sm:$0xff]
        %v4522 = vld [vmem:[%s365 + $0x80] sm:$0xff]
        %v4523 = vld [vmem:[%s365 + $0x88] sm:$0xff]
        %v4524 = vld [vmem:[%s365 + $0x90] sm:$0xff]
        %v4525 = vld [vmem:[%s365 + $0x98] sm:$0xff]
        %v4526 = vld [vmem:[%s365 + $0xa0] sm:$0xff]
        %v4527 = vld [vmem:[%s365 + $0xa8] sm:$0xff]
        %v4528 = vld [vmem:[%s365 + $0xb0] sm:$0xff]
        %v4529 = vld [vmem:[%s365 + $0xb8] sm:$0xff]
        %v4530 = vld [vmem:[%s365 + $0xc0] sm:$0xff]
        %v4531 = vld [vmem:[%s365 + $0xc8] sm:$0xff]
        %v4532 = vld [vmem:[%s365 + $0xd0] sm:$0xff]
        %v4533 = vld [vmem:[%s365 + $0xd8] sm:$0xff]
        %v4534 = vld [vmem:[%s365 + $0xe0] sm:$0xff]
        %v4535 = vld [vmem:[%s365 + $0xe8] sm:$0xff]
        %v4536 = vld [vmem:[%s365 + $0xf0] sm:$0xff]
        %v4537 = vld [vmem:[%s365 + $0xf8] sm:$0xff]
        %v4538 = vld [vmem:[%s365 + $0x100] sm:$0xff]
        %v4539 = vld [vmem:[%s365 + $0x108] sm:$0xff]
        %v4540 = vld [vmem:[%s365 + $0x110] sm:$0xff]
        %v4541 = vld [vmem:[%s365 + $0x118] sm:$0xff]
        %v4542 = vld [vmem:[%s365 + $0x120] sm:$0xff]
        %v4543 = vld [vmem:[%s365 + $0x128] sm:$0xff]
        %v4544 = vld [vmem:[%s365 + $0x130] sm:$0xff]
        %v4545 = vld [vmem:[%s365 + $0x138] sm:$0xff]
        %v4546 = vld [vmem:[%s365 + $0x140] sm:$0xff]
        %v4547 = vld [vmem:[%s365 + $0x148] sm:$0xff]
        %v4548 = vld [vmem:[%s365 + $0x150] sm:$0xff]
        %v4549 = vld [vmem:[%s365 + $0x158] sm:$0xff]
        %v4550 = vld [vmem:[%s365 + $0x160] sm:$0xff]
        %v4551 = vld [vmem:[%s365 + $0x168] sm:$0xff]
        %v4552 = vld [vmem:[%s365 + $0x170] sm:$0xff]
        %v4553 = vld [vmem:[%s365 + $0x178] sm:$0xff]
        %v4554 = vld [vmem:[%s365 + $0x180] sm:$0xff]
        %v4555 = vld [vmem:[%s365 + $0x188] sm:$0xff]
        %v4556 = vld [vmem:[%s365 + $0x190] sm:$0xff]
        %v4557 = vld [vmem:[%s365 + $0x198] sm:$0xff]
        %v4558 = vld [vmem:[%s365 + $0x1a0] sm:$0xff]
        %v4559 = vld [vmem:[%s365 + $0x1a8] sm:$0xff]
        %v4560 = vld [vmem:[%s365 + $0x1b0] sm:$0xff]
        %v4561 = vld [vmem:[%s365 + $0x1b8] sm:$0xff]
        %v4562 = vld [vmem:[%s365 + $0x1c0] sm:$0xff]
        %v4563 = vld [vmem:[%s365 + $0x1c8] sm:$0xff]
        %v4564 = vld [vmem:[%s365 + $0x1d0] sm:$0xff]
        %v4565 = vld [vmem:[%s365 + $0x1d8] sm:$0xff]
        %v4566 = vld [vmem:[%s365 + $0x1e0] sm:$0xff]
        %v4567 = vld [vmem:[%s365 + $0x1e8] sm:$0xff]
        %v4568 = vld [vmem:[%s365 + $0x1f0] sm:$0xff]
        %v4569 = vld [vmem:[%s365 + $0x1f8] sm:$0xff]
        %v4570 = vld [vmem:[%s365 + $0x200] sm:$0xff]
        %v4571 = vld [vmem:[%s365 + $0x208] sm:$0xff]
        %v4572 = vld [vmem:[%s365 + $0x210] sm:$0xff]
        %v4573 = vld [vmem:[%s365 + $0x218] sm:$0xff]
        %v4574 = vld [vmem:[%s365 + $0x220] sm:$0xff]
        %v4575 = vld [vmem:[%s365 + $0x228] sm:$0xff]
        %v4576 = vld [vmem:[%s365 + $0x230] sm:$0xff]
        %v4577 = vld [vmem:[%s365 + $0x238] sm:$0xff]
        %v4578 = vld [vmem:[%s365 + $0x240] sm:$0xff]
        %v4579 = vld [vmem:[%s365 + $0x248] sm:$0xff]
        %v4580 = vld [vmem:[%s365 + $0x250] sm:$0xff]
        %v4581 = vld [vmem:[%s365 + $0x258] sm:$0xff]
        %v4582 = vld [vmem:[%s365 + $0x260] sm:$0xff]
        %v4583 = vld [vmem:[%s365 + $0x268] sm:$0xff]
        %v4584 = vld [vmem:[%s365 + $0x270] sm:$0xff]
        %v4585 = vld [vmem:[%s365 + $0x278] sm:$0xff]
        %v4586 = vld [vmem:[%s365 + $0x280] sm:$0xff]
        %v4587 = vld [vmem:[%s365 + $0x288] sm:$0xff]
        %v4588 = vld [vmem:[%s365 + $0x290] sm:$0xff]
        %v4589 = vld [vmem:[%s365 + $0x298] sm:$0xff]
        %v4590 = vld [vmem:[%s365 + $0x2a0] sm:$0xff]
        %v4591 = vld [vmem:[%s365 + $0x2a8] sm:$0xff]
        %v4592 = vld [vmem:[%s365 + $0x2b0] sm:$0xff]
        %v4593 = vld [vmem:[%s365 + $0x2b8] sm:$0xff]
        %v4594 = vld [vmem:[%s365 + $0x2c0] sm:$0xff]
        %v4595 = vld [vmem:[%s365 + $0x2c8] sm:$0xff]
        %v4596 = vld [vmem:[%s365 + $0x2d0] sm:$0xff]
        %v4597 = vld [vmem:[%s365 + $0x2d8] sm:$0xff]
        %v4598 = vld [vmem:[%s365 + $0x2e0] sm:$0xff]
        %v4599 = vld [vmem:[%s365 + $0x2e8] sm:$0xff]
        %v4600 = vld [vmem:[%s365 + $0x2f0] sm:$0xff]
        %v4601 = vld [vmem:[%s365 + $0x2f8] sm:$0xff]
        %v4602 = vld [vmem:[%s365 + $0x300] sm:$0xff]
        %v4603 = vld [vmem:[%s365 + $0x308] sm:$0xff]
        %v4604 = vld [vmem:[%s365 + $0x310] sm:$0xff]
        %v4605 = vld [vmem:[%s365 + $0x318] sm:$0xff]
        %v4606 = vld [vmem:[%s365 + $0x320] sm:$0xff]
        %v4607 = vld [vmem:[%s365 + $0x328] sm:$0xff]
        %v4608 = vld [vmem:[%s365 + $0x330] sm:$0xff]
        %v4609 = vld [vmem:[%s365 + $0x338] sm:$0xff]
        %v4610 = vld [vmem:[%s365 + $0x340] sm:$0xff]
        %v4611 = vld [vmem:[%s365 + $0x348] sm:$0xff]
        %v4612 = vld [vmem:[%s365 + $0x350] sm:$0xff]
        %v4613 = vld [vmem:[%s365 + $0x358] sm:$0xff]
        %v4614 = vld [vmem:[%s365 + $0x360] sm:$0xff]
        %v4615 = vld [vmem:[%s365 + $0x368] sm:$0xff]
        %v4616 = vld [vmem:[%s365 + $0x370] sm:$0xff]
        %v4617 = vld [vmem:[%s365 + $0x378] sm:$0xff]
        %v4618 = vld [vmem:[%s365 + $0x380] sm:$0xff]
        %v4619 = vld [vmem:[%s365 + $0x388] sm:$0xff]
        %v4620 = vld [vmem:[%s365 + $0x390] sm:$0xff]
        %v4621 = vld [vmem:[%s365 + $0x398] sm:$0xff]
        %v4622 = vld [vmem:[%s365 + $0x3a0] sm:$0xff]
        %v4623 = vld [vmem:[%s365 + $0x3a8] sm:$0xff]
        %v4624 = vld [vmem:[%s365 + $0x3b0] sm:$0xff]
        %v4625 = vld [vmem:[%s365 + $0x3b8] sm:$0xff]
        %v4626 = vld [vmem:[%s365 + $0x3c0] sm:$0xff]
        %v4627 = vld [vmem:[%s365 + $0x3c8] sm:$0xff]
        %v4628 = vld [vmem:[%s365 + $0x3d0] sm:$0xff]
        %v4629 = vld [vmem:[%s365 + $0x3d8] sm:$0xff]
        %v4630 = vld [vmem:[%s365 + $0x3e0] sm:$0xff]
        %v4631 = vld [vmem:[%s365 + $0x3e8] sm:$0xff]
        %v4632 = vld [vmem:[%s365 + $0x3f0] sm:$0xff]
        %v4633 = vld [vmem:[%s365 + $0x3f8] sm:$0xff]
        %v4634 = vld [vmem:[%s365 + $0x400] sm:$0xff]
        %v4635 = vld [vmem:[%s365 + $0x408] sm:$0xff]
        %v4636 = vld [vmem:[%s365 + $0x410] sm:$0xff]
        %v4637 = vld [vmem:[%s365 + $0x418] sm:$0xff]
        %v4638 = vld [vmem:[%s365 + $0x420] sm:$0xff]
        %v4639 = vld [vmem:[%s365 + $0x428] sm:$0xff]
        %v4640 = vld [vmem:[%s365 + $0x430] sm:$0xff]
        %v4641 = vld [vmem:[%s365 + $0x438] sm:$0xff]
        %v4642 = vld [vmem:[%s365 + $0x440] sm:$0xff]
        %v4643 = vld [vmem:[%s365 + $0x448] sm:$0xff]
        %v4644 = vld [vmem:[%s365 + $0x450] sm:$0xff]
        %v4645 = vld [vmem:[%s365 + $0x458] sm:$0xff]
        %v4646 = vld [vmem:[%s365 + $0x460] sm:$0xff]
        %v4647 = vld [vmem:[%s365 + $0x468] sm:$0xff]
        %v4648 = vld [vmem:[%s365 + $0x470] sm:$0xff]
        %v4649 = vld [vmem:[%s365 + $0x478] sm:$0xff]
        %v4650 = vld [vmem:[%s365 + $0x480] sm:$0xff]
        %v4651 = vld [vmem:[%s365 + $0x488] sm:$0xff]
        %v4652 = vld [vmem:[%s365 + $0x490] sm:$0xff]
        %v4653 = vld [vmem:[%s365 + $0x498] sm:$0xff]
        %v4654 = vld [vmem:[%s365 + $0x4a0] sm:$0xff]
        %v4655 = vld [vmem:[%s365 + $0x4a8] sm:$0xff]
        %v4656 = vld [vmem:[%s365 + $0x4b0] sm:$0xff]
        %v4657 = vld [vmem:[%s365 + $0x4b8] sm:$0xff]
        %v4658 = vld [vmem:[%s365 + $0x4c0] sm:$0xff]
        %v4659 = vld [vmem:[%s365 + $0x4c8] sm:$0xff]
        %v4660 = vld [vmem:[%s365 + $0x4d0] sm:$0xff]
        %v4661 = vld [vmem:[%s365 + $0x4d8] sm:$0xff]
        %v4662 = vld [vmem:[%s365 + $0x4e0] sm:$0xff]
        %v4663 = vld [vmem:[%s365 + $0x4e8] sm:$0xff]
        %v4664 = vld [vmem:[%s365 + $0x4f0] sm:$0xff]
        %v4665 = vld [vmem:[%s365 + $0x4f8] sm:$0xff]
        %v4666 = vld [vmem:[%s365 + $0x500] sm:$0xff]
        %v4667 = vld [vmem:[%s365 + $0x508] sm:$0xff]
        %v4668 = vld [vmem:[%s365 + $0x510] sm:$0xff]
        %v4669 = vld [vmem:[%s365 + $0x518] sm:$0xff]
        %v4670 = vld [vmem:[%s365 + $0x520] sm:$0xff]
        %v4671 = vld [vmem:[%s365 + $0x528] sm:$0xff]
        %v4672 = vld [vmem:[%s365 + $0x530] sm:$0xff]
        %v4673 = vld [vmem:[%s365 + $0x538] sm:$0xff]
        %v4674 = vld [vmem:[%s365 + $0x540] sm:$0xff]
        %v4675 = vld [vmem:[%s365 + $0x548] sm:$0xff]
        %v4676 = vld [vmem:[%s365 + $0x550] sm:$0xff]
        %v4677 = vld [vmem:[%s365 + $0x558] sm:$0xff]
        %v4678 = vld [vmem:[%s365 + $0x560] sm:$0xff]
        %v4679 = vld [vmem:[%s365 + $0x568] sm:$0xff]
        %v4680 = vld [vmem:[%s365 + $0x570] sm:$0xff]
        %v4681 = vld [vmem:[%s365 + $0x578] sm:$0xff]
        %v4682 = vld [vmem:[%s365 + $0x580] sm:$0xff]
        %v4683 = vld [vmem:[%s365 + $0x588] sm:$0xff]
        %v4684 = vld [vmem:[%s365 + $0x590] sm:$0xff]
        %v4685 = vld [vmem:[%s365 + $0x598] sm:$0xff]
        %v4686 = vld [vmem:[%s365 + $0x5a0] sm:$0xff]
        %v4687 = vld [vmem:[%s365 + $0x5a8] sm:$0xff]
        %v4688 = vld [vmem:[%s365 + $0x5b0] sm:$0xff]
        %v4689 = vld [vmem:[%s365 + $0x5b8] sm:$0xff]
        %v4690 = vld [vmem:[%s365 + $0x5c0] sm:$0xff]
        %v4691 = vld [vmem:[%s365 + $0x5c8] sm:$0xff]
        %v4692 = vld [vmem:[%s365 + $0x5d0] sm:$0xff]
        %v4693 = vld [vmem:[%s365 + $0x5d8] sm:$0xff]
        %v4694 = vld [vmem:[%s365 + $0x5e0] sm:$0xff]
        %v4695 = vld [vmem:[%s365 + $0x5e8] sm:$0xff]
        %v4696 = vld [vmem:[%s365 + $0x5f0] sm:$0xff]
        %v4697 = vld [vmem:[%s365 + $0x5f8] sm:$0xff]
        %v4698 = vld [vmem:[%s365 + $0x600] sm:$0xff]
        %v4699 = vld [vmem:[%s365 + $0x608] sm:$0xff]
        %v4700 = vld [vmem:[%s365 + $0x610] sm:$0xff]
        %v4701 = vld [vmem:[%s365 + $0x618] sm:$0xff]
        %v4702 = vld [vmem:[%s365 + $0x620] sm:$0xff]
        %v4703 = vld [vmem:[%s365 + $0x628] sm:$0xff]
        %v4704 = vld [vmem:[%s365 + $0x630] sm:$0xff]
        %v4705 = vld [vmem:[%s365 + $0x638] sm:$0xff]
        %v4706 = vld [vmem:[%s365 + $0x640] sm:$0xff]
        %v4707 = vld [vmem:[%s365 + $0x648] sm:$0xff]
        %v4708 = vld [vmem:[%s365 + $0x650] sm:$0xff]
        %v4709 = vld [vmem:[%s365 + $0x658] sm:$0xff]
        %v4710 = vld [vmem:[%s365 + $0x660] sm:$0xff]
        %v4711 = vld [vmem:[%s365 + $0x668] sm:$0xff]
        %v4712 = vld [vmem:[%s365 + $0x670] sm:$0xff]
        %v4713 = vld [vmem:[%s365 + $0x678] sm:$0xff]
        %v4714 = vld [vmem:[%s365 + $0x680] sm:$0xff]
        %v4715 = vld [vmem:[%s365 + $0x688] sm:$0xff]
        %v4716 = vld [vmem:[%s365 + $0x690] sm:$0xff]
        %v4717 = vld [vmem:[%s365 + $0x698] sm:$0xff]
        %v4718 = vld [vmem:[%s365 + $0x6a0] sm:$0xff]
        %v4719 = vld [vmem:[%s365 + $0x6a8] sm:$0xff]
        %v4720 = vld [vmem:[%s365 + $0x6b0] sm:$0xff]
        %v4721 = vld [vmem:[%s365 + $0x6b8] sm:$0xff]
        %v4722 = vld [vmem:[%s365 + $0x6c0] sm:$0xff]
        %v4723 = vld [vmem:[%s365 + $0x6c8] sm:$0xff]
        %v4724 = vld [vmem:[%s365 + $0x6d0] sm:$0xff]
        %v4725 = vld [vmem:[%s365 + $0x6d8] sm:$0xff]
        %v4726 = vld [vmem:[%s365 + $0x6e0] sm:$0xff]
        %v4727 = vld [vmem:[%s365 + $0x6e8] sm:$0xff]
        %v4728 = vld [vmem:[%s365 + $0x6f0] sm:$0xff]
        %v4729 = vld [vmem:[%s365 + $0x6f8] sm:$0xff]
        %v4730 = vld [vmem:[%s365 + $0x700] sm:$0xff]
        %v4731 = vld [vmem:[%s365 + $0x708] sm:$0xff]
        %v4732 = vld [vmem:[%s365 + $0x710] sm:$0xff]
        %v4733 = vld [vmem:[%s365 + $0x718] sm:$0xff]
        %v4734 = vld [vmem:[%s365 + $0x720] sm:$0xff]
        %v4735 = vld [vmem:[%s365 + $0x728] sm:$0xff]
        %v4736 = vld [vmem:[%s365 + $0x730] sm:$0xff]
        %v4737 = vld [vmem:[%s365 + $0x738] sm:$0xff]
        %v4738 = vld [vmem:[%s365 + $0x740] sm:$0xff]
        %v4739 = vld [vmem:[%s365 + $0x748] sm:$0xff]
        %v4740 = vld [vmem:[%s365 + $0x750] sm:$0xff]
        %v4741 = vld [vmem:[%s365 + $0x758] sm:$0xff]
        %v4742 = vld [vmem:[%s365 + $0x760] sm:$0xff]
        %v4743 = vld [vmem:[%s365 + $0x768] sm:$0xff]
        %v4744 = vld [vmem:[%s365 + $0x770] sm:$0xff]
        %v4745 = vld [vmem:[%s365 + $0x778] sm:$0xff]
        %v4746 = vld [vmem:[%s365 + $0x780] sm:$0xff]
        %v4747 = vld [vmem:[%s365 + $0x788] sm:$0xff]
        %v4748 = vld [vmem:[%s365 + $0x790] sm:$0xff]
        %v4749 = vld [vmem:[%s365 + $0x798] sm:$0xff]
        %v4750 = vld [vmem:[%s365 + $0x7a0] sm:$0xff]
        %v4751 = vld [vmem:[%s365 + $0x7a8] sm:$0xff]
        %v4752 = vld [vmem:[%s365 + $0x7b0] sm:$0xff]
        %v4753 = vld [vmem:[%s365 + $0x7b8] sm:$0xff]
        %v4754 = vld [vmem:[%s365 + $0x7c0] sm:$0xff]
        %v4755 = vld [vmem:[%s365 + $0x7c8] sm:$0xff]
        %v4756 = vld [vmem:[%s365 + $0x7d0] sm:$0xff]
        %v4757 = vld [vmem:[%s365 + $0x7d8] sm:$0xff]
        %v4758 = vld [vmem:[%s365 + $0x7e0] sm:$0xff]
        %v4759 = vld [vmem:[%s365 + $0x7e8] sm:$0xff]
        %v4760 = vld [vmem:[%s365 + $0x7f0] sm:$0xff]
        %v4761 = vld [vmem:[%s365 + $0x7f8] sm:$0xff]
        %s4762 = scalar_lea.vmem %s441, 3
        %v4763 = vld [vmem:[%s4762] ss:$8 sm:$0xf]
        %v4765 = vlaneseq
        %v4766 = vshrl.u32 %v4765, 7
        %v4767 = vsub.s32 0, %v4766
        %v4768 = vrot.slane %v4763, %v4767
        %v4769 = vlaneseq
        %v4770 = vshrl.u32 %v4769, 7
        %v4771 = vsub.s32 1, %v4770
        %v4772 = vrot.slane %v4763, %v4771
        %v4773 = vlaneseq
        %v4774 = vshrl.u32 %v4773, 7
        %v4775 = vsub.s32 2, %v4774
        %v4776 = vrot.slane %v4763, %v4775
        %v4777 = vlaneseq
        %v4778 = vshrl.u32 %v4777, 7
        %v4779 = vsub.s32 3, %v4778
        %v4780 = vrot.slane %v4763, %v4779
        %v5041 = vunpack.c.l.b16 %v4506
        %v5042 = vunpack.c.h.b16 %v4506
        %v5043 = vunpack.c.l.b16 %v4507
        %v5044 = vunpack.c.h.b16 %v4507
        %v5045 = vunpack.c.l.b16 %v4508
        %v5046 = vunpack.c.h.b16 %v4508
        %v5047 = vunpack.c.l.b16 %v4509
        %v5048 = vunpack.c.h.b16 %v4509
        %v5049 = vunpack.c.l.b16 %v4510
        %v5050 = vunpack.c.h.b16 %v4510
        %v5051 = vunpack.c.l.b16 %v4511
        %v5052 = vunpack.c.h.b16 %v4511
        %v5053 = vunpack.c.l.b16 %v4512
        %v5054 = vunpack.c.h.b16 %v4512
        %v5055 = vunpack.c.l.b16 %v4513
        %v5056 = vunpack.c.h.b16 %v4513
        %v5057 = vunpack.c.l.b16 %v4514
        %v5058 = vunpack.c.h.b16 %v4514
        %v5059 = vunpack.c.l.b16 %v4515
        %v5060 = vunpack.c.h.b16 %v4515
        %v5061 = vunpack.c.l.b16 %v4516
        %v5062 = vunpack.c.h.b16 %v4516
        %v5063 = vunpack.c.l.b16 %v4517
        %v5064 = vunpack.c.h.b16 %v4517
        %v5065 = vunpack.c.l.b16 %v4518
        %v5066 = vunpack.c.h.b16 %v4518
        %v5067 = vunpack.c.l.b16 %v4519
        %v5068 = vunpack.c.h.b16 %v4519
        %v5069 = vunpack.c.l.b16 %v4520
        %v5070 = vunpack.c.h.b16 %v4520
        %v5071 = vunpack.c.l.b16 %v4521
        %v5072 = vunpack.c.h.b16 %v4521
        %v5073 = vunpack.c.l.b16 %v4522
        %v5074 = vunpack.c.h.b16 %v4522
        %v5075 = vunpack.c.l.b16 %v4523
        %v5076 = vunpack.c.h.b16 %v4523
        %v5077 = vunpack.c.l.b16 %v4524
        %v5078 = vunpack.c.h.b16 %v4524
        %v5079 = vunpack.c.l.b16 %v4525
        %v5080 = vunpack.c.h.b16 %v4525
        %v5081 = vunpack.c.l.b16 %v4526
        %v5082 = vunpack.c.h.b16 %v4526
        %v5083 = vunpack.c.l.b16 %v4527
        %v5084 = vunpack.c.h.b16 %v4527
        %v5085 = vunpack.c.l.b16 %v4528
        %v5086 = vunpack.c.h.b16 %v4528
        %v5087 = vunpack.c.l.b16 %v4529
        %v5088 = vunpack.c.h.b16 %v4529
        %v5089 = vunpack.c.l.b16 %v4530
        %v5090 = vunpack.c.h.b16 %v4530
        %v5091 = vunpack.c.l.b16 %v4531
        %v5092 = vunpack.c.h.b16 %v4531
        %v5093 = vunpack.c.l.b16 %v4532
        %v5094 = vunpack.c.h.b16 %v4532
        %v5095 = vunpack.c.l.b16 %v4533
        %v5096 = vunpack.c.h.b16 %v4533
        %v5097 = vunpack.c.l.b16 %v4534
        %v5098 = vunpack.c.h.b16 %v4534
        %v5099 = vunpack.c.l.b16 %v4535
        %v5100 = vunpack.c.h.b16 %v4535
        %v5101 = vunpack.c.l.b16 %v4536
        %v5102 = vunpack.c.h.b16 %v4536
        %v5103 = vunpack.c.l.b16 %v4537
        %v5104 = vunpack.c.h.b16 %v4537
        %v5105 = vunpack.c.l.b16 %v4538
        %v5106 = vunpack.c.h.b16 %v4538
        %v5107 = vunpack.c.l.b16 %v4539
        %v5108 = vunpack.c.h.b16 %v4539
        %v5109 = vunpack.c.l.b16 %v4540
        %v5110 = vunpack.c.h.b16 %v4540
        %v5111 = vunpack.c.l.b16 %v4541
        %v5112 = vunpack.c.h.b16 %v4541
        %v5113 = vunpack.c.l.b16 %v4542
        %v5114 = vunpack.c.h.b16 %v4542
        %v5115 = vunpack.c.l.b16 %v4543
        %v5116 = vunpack.c.h.b16 %v4543
        %v5117 = vunpack.c.l.b16 %v4544
        %v5118 = vunpack.c.h.b16 %v4544
        %v5119 = vunpack.c.l.b16 %v4545
        %v5120 = vunpack.c.h.b16 %v4545
        %v5121 = vunpack.c.l.b16 %v4546
        %v5122 = vunpack.c.h.b16 %v4546
        %v5123 = vunpack.c.l.b16 %v4547
        %v5124 = vunpack.c.h.b16 %v4547
        %v5125 = vunpack.c.l.b16 %v4548
        %v5126 = vunpack.c.h.b16 %v4548
        %v5127 = vunpack.c.l.b16 %v4549
        %v5128 = vunpack.c.h.b16 %v4549
        %v5129 = vunpack.c.l.b16 %v4550
        %v5130 = vunpack.c.h.b16 %v4550
        %v5131 = vunpack.c.l.b16 %v4551
        %v5132 = vunpack.c.h.b16 %v4551
        %v5133 = vunpack.c.l.b16 %v4552
        %v5134 = vunpack.c.h.b16 %v4552
        %v5135 = vunpack.c.l.b16 %v4553
        %v5136 = vunpack.c.h.b16 %v4553
        %v5137 = vunpack.c.l.b16 %v4554
        %v5138 = vunpack.c.h.b16 %v4554
        %v5139 = vunpack.c.l.b16 %v4555
        %v5140 = vunpack.c.h.b16 %v4555
        %v5141 = vunpack.c.l.b16 %v4556
        %v5142 = vunpack.c.h.b16 %v4556
        %v5143 = vunpack.c.l.b16 %v4557
        %v5144 = vunpack.c.h.b16 %v4557
        %v5145 = vunpack.c.l.b16 %v4558
        %v5146 = vunpack.c.h.b16 %v4558
        %v5147 = vunpack.c.l.b16 %v4559
        %v5148 = vunpack.c.h.b16 %v4559
        %v5149 = vunpack.c.l.b16 %v4560
        %v5150 = vunpack.c.h.b16 %v4560
        %v5151 = vunpack.c.l.b16 %v4561
        %v5152 = vunpack.c.h.b16 %v4561
        %v5153 = vunpack.c.l.b16 %v4562
        %v5154 = vunpack.c.h.b16 %v4562
        %v5155 = vunpack.c.l.b16 %v4563
        %v5156 = vunpack.c.h.b16 %v4563
        %v5157 = vunpack.c.l.b16 %v4564
        %v5158 = vunpack.c.h.b16 %v4564
        %v5159 = vunpack.c.l.b16 %v4565
        %v5160 = vunpack.c.h.b16 %v4565
        %v5161 = vunpack.c.l.b16 %v4566
        %v5162 = vunpack.c.h.b16 %v4566
        %v5163 = vunpack.c.l.b16 %v4567
        %v5164 = vunpack.c.h.b16 %v4567
        %v5165 = vunpack.c.l.b16 %v4568
        %v5166 = vunpack.c.h.b16 %v4568
        %v5167 = vunpack.c.l.b16 %v4569
        %v5168 = vunpack.c.h.b16 %v4569
        %v5169 = vunpack.c.l.b16 %v4570
        %v5170 = vunpack.c.h.b16 %v4570
        %v5171 = vunpack.c.l.b16 %v4571
        %v5172 = vunpack.c.h.b16 %v4571
        %v5173 = vunpack.c.l.b16 %v4572
        %v5174 = vunpack.c.h.b16 %v4572
        %v5175 = vunpack.c.l.b16 %v4573
        %v5176 = vunpack.c.h.b16 %v4573
        %v5177 = vunpack.c.l.b16 %v4574
        %v5178 = vunpack.c.h.b16 %v4574
        %v5179 = vunpack.c.l.b16 %v4575
        %v5180 = vunpack.c.h.b16 %v4575
        %v5181 = vunpack.c.l.b16 %v4576
        %v5182 = vunpack.c.h.b16 %v4576
        %v5183 = vunpack.c.l.b16 %v4577
        %v5184 = vunpack.c.h.b16 %v4577
        %v5185 = vunpack.c.l.b16 %v4578
        %v5186 = vunpack.c.h.b16 %v4578
        %v5187 = vunpack.c.l.b16 %v4579
        %v5188 = vunpack.c.h.b16 %v4579
        %v5189 = vunpack.c.l.b16 %v4580
        %v5190 = vunpack.c.h.b16 %v4580
        %v5191 = vunpack.c.l.b16 %v4581
        %v5192 = vunpack.c.h.b16 %v4581
        %v5193 = vunpack.c.l.b16 %v4582
        %v5194 = vunpack.c.h.b16 %v4582
        %v5195 = vunpack.c.l.b16 %v4583
        %v5196 = vunpack.c.h.b16 %v4583
        %v5197 = vunpack.c.l.b16 %v4584
        %v5198 = vunpack.c.h.b16 %v4584
        %v5199 = vunpack.c.l.b16 %v4585
        %v5200 = vunpack.c.h.b16 %v4585
        %v5201 = vunpack.c.l.b16 %v4586
        %v5202 = vunpack.c.h.b16 %v4586
        %v5203 = vunpack.c.l.b16 %v4587
        %v5204 = vunpack.c.h.b16 %v4587
        %v5205 = vunpack.c.l.b16 %v4588
        %v5206 = vunpack.c.h.b16 %v4588
        %v5207 = vunpack.c.l.b16 %v4589
        %v5208 = vunpack.c.h.b16 %v4589
        %v5209 = vunpack.c.l.b16 %v4590
        %v5210 = vunpack.c.h.b16 %v4590
        %v5211 = vunpack.c.l.b16 %v4591
        %v5212 = vunpack.c.h.b16 %v4591
        %v5213 = vunpack.c.l.b16 %v4592
        %v5214 = vunpack.c.h.b16 %v4592
        %v5215 = vunpack.c.l.b16 %v4593
        %v5216 = vunpack.c.h.b16 %v4593
        %v5217 = vunpack.c.l.b16 %v4594
        %v5218 = vunpack.c.h.b16 %v4594
        %v5219 = vunpack.c.l.b16 %v4595
        %v5220 = vunpack.c.h.b16 %v4595
        %v5221 = vunpack.c.l.b16 %v4596
        %v5222 = vunpack.c.h.b16 %v4596
        %v5223 = vunpack.c.l.b16 %v4597
        %v5224 = vunpack.c.h.b16 %v4597
        %v5225 = vunpack.c.l.b16 %v4598
        %v5226 = vunpack.c.h.b16 %v4598
        %v5227 = vunpack.c.l.b16 %v4599
        %v5228 = vunpack.c.h.b16 %v4599
        %v5229 = vunpack.c.l.b16 %v4600
        %v5230 = vunpack.c.h.b16 %v4600
        %v5231 = vunpack.c.l.b16 %v4601
        %v5232 = vunpack.c.h.b16 %v4601
        %v5233 = vunpack.c.l.b16 %v4602
        %v5234 = vunpack.c.h.b16 %v4602
        %v5235 = vunpack.c.l.b16 %v4603
        %v5236 = vunpack.c.h.b16 %v4603
        %v5237 = vunpack.c.l.b16 %v4604
        %v5238 = vunpack.c.h.b16 %v4604
        %v5239 = vunpack.c.l.b16 %v4605
        %v5240 = vunpack.c.h.b16 %v4605
        %v5241 = vunpack.c.l.b16 %v4606
        %v5242 = vunpack.c.h.b16 %v4606
        %v5243 = vunpack.c.l.b16 %v4607
        %v5244 = vunpack.c.h.b16 %v4607
        %v5245 = vunpack.c.l.b16 %v4608
        %v5246 = vunpack.c.h.b16 %v4608
        %v5247 = vunpack.c.l.b16 %v4609
        %v5248 = vunpack.c.h.b16 %v4609
        %v5249 = vunpack.c.l.b16 %v4610
        %v5250 = vunpack.c.h.b16 %v4610
        %v5251 = vunpack.c.l.b16 %v4611
        %v5252 = vunpack.c.h.b16 %v4611
        %v5253 = vunpack.c.l.b16 %v4612
        %v5254 = vunpack.c.h.b16 %v4612
        %v5255 = vunpack.c.l.b16 %v4613
        %v5256 = vunpack.c.h.b16 %v4613
        %v5257 = vunpack.c.l.b16 %v4614
        %v5258 = vunpack.c.h.b16 %v4614
        %v5259 = vunpack.c.l.b16 %v4615
        %v5260 = vunpack.c.h.b16 %v4615
        %v5261 = vunpack.c.l.b16 %v4616
        %v5262 = vunpack.c.h.b16 %v4616
        %v5263 = vunpack.c.l.b16 %v4617
        %v5264 = vunpack.c.h.b16 %v4617
        %v5265 = vunpack.c.l.b16 %v4618
        %v5266 = vunpack.c.h.b16 %v4618
        %v5267 = vunpack.c.l.b16 %v4619
        %v5268 = vunpack.c.h.b16 %v4619
        %v5269 = vunpack.c.l.b16 %v4620
        %v5270 = vunpack.c.h.b16 %v4620
        %v5271 = vunpack.c.l.b16 %v4621
        %v5272 = vunpack.c.h.b16 %v4621
        %v5273 = vunpack.c.l.b16 %v4622
        %v5274 = vunpack.c.h.b16 %v4622
        %v5275 = vunpack.c.l.b16 %v4623
        %v5276 = vunpack.c.h.b16 %v4623
        %v5277 = vunpack.c.l.b16 %v4624
        %v5278 = vunpack.c.h.b16 %v4624
        %v5279 = vunpack.c.l.b16 %v4625
        %v5280 = vunpack.c.h.b16 %v4625
        %v5281 = vunpack.c.l.b16 %v4626
        %v5282 = vunpack.c.h.b16 %v4626
        %v5283 = vunpack.c.l.b16 %v4627
        %v5284 = vunpack.c.h.b16 %v4627
        %v5285 = vunpack.c.l.b16 %v4628
        %v5286 = vunpack.c.h.b16 %v4628
        %v5287 = vunpack.c.l.b16 %v4629
        %v5288 = vunpack.c.h.b16 %v4629
        %v5289 = vunpack.c.l.b16 %v4630
        %v5290 = vunpack.c.h.b16 %v4630
        %v5291 = vunpack.c.l.b16 %v4631
        %v5292 = vunpack.c.h.b16 %v4631
        %v5293 = vunpack.c.l.b16 %v4632
        %v5294 = vunpack.c.h.b16 %v4632
        %v5295 = vunpack.c.l.b16 %v4633
        %v5296 = vunpack.c.h.b16 %v4633
        %v5297 = vunpack.c.l.b16 %v4634
        %v5298 = vunpack.c.h.b16 %v4634
        %v5299 = vunpack.c.l.b16 %v4635
        %v5300 = vunpack.c.h.b16 %v4635
        %v5301 = vunpack.c.l.b16 %v4636
        %v5302 = vunpack.c.h.b16 %v4636
        %v5303 = vunpack.c.l.b16 %v4637
        %v5304 = vunpack.c.h.b16 %v4637
        %v5305 = vunpack.c.l.b16 %v4638
        %v5306 = vunpack.c.h.b16 %v4638
        %v5307 = vunpack.c.l.b16 %v4639
        %v5308 = vunpack.c.h.b16 %v4639
        %v5309 = vunpack.c.l.b16 %v4640
        %v5310 = vunpack.c.h.b16 %v4640
        %v5311 = vunpack.c.l.b16 %v4641
        %v5312 = vunpack.c.h.b16 %v4641
        %v5313 = vunpack.c.l.b16 %v4642
        %v5314 = vunpack.c.h.b16 %v4642
        %v5315 = vunpack.c.l.b16 %v4643
        %v5316 = vunpack.c.h.b16 %v4643
        %v5317 = vunpack.c.l.b16 %v4644
        %v5318 = vunpack.c.h.b16 %v4644
        %v5319 = vunpack.c.l.b16 %v4645
        %v5320 = vunpack.c.h.b16 %v4645
        %v5321 = vunpack.c.l.b16 %v4646
        %v5322 = vunpack.c.h.b16 %v4646
        %v5323 = vunpack.c.l.b16 %v4647
        %v5324 = vunpack.c.h.b16 %v4647
        %v5325 = vunpack.c.l.b16 %v4648
        %v5326 = vunpack.c.h.b16 %v4648
        %v5327 = vunpack.c.l.b16 %v4649
        %v5328 = vunpack.c.h.b16 %v4649
        %v5329 = vunpack.c.l.b16 %v4650
        %v5330 = vunpack.c.h.b16 %v4650
        %v5331 = vunpack.c.l.b16 %v4651
        %v5332 = vunpack.c.h.b16 %v4651
        %v5333 = vunpack.c.l.b16 %v4652
        %v5334 = vunpack.c.h.b16 %v4652
        %v5335 = vunpack.c.l.b16 %v4653
        %v5336 = vunpack.c.h.b16 %v4653
        %v5337 = vunpack.c.l.b16 %v4654
        %v5338 = vunpack.c.h.b16 %v4654
        %v5339 = vunpack.c.l.b16 %v4655
        %v5340 = vunpack.c.h.b16 %v4655
        %v5341 = vunpack.c.l.b16 %v4656
        %v5342 = vunpack.c.h.b16 %v4656
        %v5343 = vunpack.c.l.b16 %v4657
        %v5344 = vunpack.c.h.b16 %v4657
        %v5345 = vunpack.c.l.b16 %v4658
        %v5346 = vunpack.c.h.b16 %v4658
        %v5347 = vunpack.c.l.b16 %v4659
        %v5348 = vunpack.c.h.b16 %v4659
        %v5349 = vunpack.c.l.b16 %v4660
        %v5350 = vunpack.c.h.b16 %v4660
        %v5351 = vunpack.c.l.b16 %v4661
        %v5352 = vunpack.c.h.b16 %v4661
        %v5353 = vunpack.c.l.b16 %v4662
        %v5354 = vunpack.c.h.b16 %v4662
        %v5355 = vunpack.c.l.b16 %v4663
        %v5356 = vunpack.c.h.b16 %v4663
        %v5357 = vunpack.c.l.b16 %v4664
        %v5358 = vunpack.c.h.b16 %v4664
        %v5359 = vunpack.c.l.b16 %v4665
        %v5360 = vunpack.c.h.b16 %v4665
        %v5361 = vunpack.c.l.b16 %v4666
        %v5362 = vunpack.c.h.b16 %v4666
        %v5363 = vunpack.c.l.b16 %v4667
        %v5364 = vunpack.c.h.b16 %v4667
        %v5365 = vunpack.c.l.b16 %v4668
        %v5366 = vunpack.c.h.b16 %v4668
        %v5367 = vunpack.c.l.b16 %v4669
        %v5368 = vunpack.c.h.b16 %v4669
        %v5369 = vunpack.c.l.b16 %v4670
        %v5370 = vunpack.c.h.b16 %v4670
        %v5371 = vunpack.c.l.b16 %v4671
        %v5372 = vunpack.c.h.b16 %v4671
        %v5373 = vunpack.c.l.b16 %v4672
        %v5374 = vunpack.c.h.b16 %v4672
        %v5375 = vunpack.c.l.b16 %v4673
        %v5376 = vunpack.c.h.b16 %v4673
        %v5377 = vunpack.c.l.b16 %v4674
        %v5378 = vunpack.c.h.b16 %v4674
        %v5379 = vunpack.c.l.b16 %v4675
        %v5380 = vunpack.c.h.b16 %v4675
        %v5381 = vunpack.c.l.b16 %v4676
        %v5382 = vunpack.c.h.b16 %v4676
        %v5383 = vunpack.c.l.b16 %v4677
        %v5384 = vunpack.c.h.b16 %v4677
        %v5385 = vunpack.c.l.b16 %v4678
        %v5386 = vunpack.c.h.b16 %v4678
        %v5387 = vunpack.c.l.b16 %v4679
        %v5388 = vunpack.c.h.b16 %v4679
        %v5389 = vunpack.c.l.b16 %v4680
        %v5390 = vunpack.c.h.b16 %v4680
        %v5391 = vunpack.c.l.b16 %v4681
        %v5392 = vunpack.c.h.b16 %v4681
        %v5393 = vunpack.c.l.b16 %v4682
        %v5394 = vunpack.c.h.b16 %v4682
        %v5395 = vunpack.c.l.b16 %v4683
        %v5396 = vunpack.c.h.b16 %v4683
        %v5397 = vunpack.c.l.b16 %v4684
        %v5398 = vunpack.c.h.b16 %v4684
        %v5399 = vunpack.c.l.b16 %v4685
        %v5400 = vunpack.c.h.b16 %v4685
        %v5401 = vunpack.c.l.b16 %v4686
        %v5402 = vunpack.c.h.b16 %v4686
        %v5403 = vunpack.c.l.b16 %v4687
        %v5404 = vunpack.c.h.b16 %v4687
        %v5405 = vunpack.c.l.b16 %v4688
        %v5406 = vunpack.c.h.b16 %v4688
        %v5407 = vunpack.c.l.b16 %v4689
        %v5408 = vunpack.c.h.b16 %v4689
        %v5409 = vunpack.c.l.b16 %v4690
        %v5410 = vunpack.c.h.b16 %v4690
        %v5411 = vunpack.c.l.b16 %v4691
        %v5412 = vunpack.c.h.b16 %v4691
        %v5413 = vunpack.c.l.b16 %v4692
        %v5414 = vunpack.c.h.b16 %v4692
        %v5415 = vunpack.c.l.b16 %v4693
        %v5416 = vunpack.c.h.b16 %v4693
        %v5417 = vunpack.c.l.b16 %v4694
        %v5418 = vunpack.c.h.b16 %v4694
        %v5419 = vunpack.c.l.b16 %v4695
        %v5420 = vunpack.c.h.b16 %v4695
        %v5421 = vunpack.c.l.b16 %v4696
        %v5422 = vunpack.c.h.b16 %v4696
        %v5423 = vunpack.c.l.b16 %v4697
        %v5424 = vunpack.c.h.b16 %v4697
        %v5425 = vunpack.c.l.b16 %v4698
        %v5426 = vunpack.c.h.b16 %v4698
        %v5427 = vunpack.c.l.b16 %v4699
        %v5428 = vunpack.c.h.b16 %v4699
        %v5429 = vunpack.c.l.b16 %v4700
        %v5430 = vunpack.c.h.b16 %v4700
        %v5431 = vunpack.c.l.b16 %v4701
        %v5432 = vunpack.c.h.b16 %v4701
        %v5433 = vunpack.c.l.b16 %v4702
        %v5434 = vunpack.c.h.b16 %v4702
        %v5435 = vunpack.c.l.b16 %v4703
        %v5436 = vunpack.c.h.b16 %v4703
        %v5437 = vunpack.c.l.b16 %v4704
        %v5438 = vunpack.c.h.b16 %v4704
        %v5439 = vunpack.c.l.b16 %v4705
        %v5440 = vunpack.c.h.b16 %v4705
        %v5441 = vunpack.c.l.b16 %v4706
        %v5442 = vunpack.c.h.b16 %v4706
        %v5443 = vunpack.c.l.b16 %v4707
        %v5444 = vunpack.c.h.b16 %v4707
        %v5445 = vunpack.c.l.b16 %v4708
        %v5446 = vunpack.c.h.b16 %v4708
        %v5447 = vunpack.c.l.b16 %v4709
        %v5448 = vunpack.c.h.b16 %v4709
        %v5449 = vunpack.c.l.b16 %v4710
        %v5450 = vunpack.c.h.b16 %v4710
        %v5451 = vunpack.c.l.b16 %v4711
        %v5452 = vunpack.c.h.b16 %v4711
        %v5453 = vunpack.c.l.b16 %v4712
        %v5454 = vunpack.c.h.b16 %v4712
        %v5455 = vunpack.c.l.b16 %v4713
        %v5456 = vunpack.c.h.b16 %v4713
        %v5457 = vunpack.c.l.b16 %v4714
        %v5458 = vunpack.c.h.b16 %v4714
        %v5459 = vunpack.c.l.b16 %v4715
        %v5460 = vunpack.c.h.b16 %v4715
        %v5461 = vunpack.c.l.b16 %v4716
        %v5462 = vunpack.c.h.b16 %v4716
        %v5463 = vunpack.c.l.b16 %v4717
        %v5464 = vunpack.c.h.b16 %v4717
        %v5465 = vunpack.c.l.b16 %v4718
        %v5466 = vunpack.c.h.b16 %v4718
        %v5467 = vunpack.c.l.b16 %v4719
        %v5468 = vunpack.c.h.b16 %v4719
        %v5469 = vunpack.c.l.b16 %v4720
        %v5470 = vunpack.c.h.b16 %v4720
        %v5471 = vunpack.c.l.b16 %v4721
        %v5472 = vunpack.c.h.b16 %v4721
        %v5473 = vunpack.c.l.b16 %v4722
        %v5474 = vunpack.c.h.b16 %v4722
        %v5475 = vunpack.c.l.b16 %v4723
        %v5476 = vunpack.c.h.b16 %v4723
        %v5477 = vunpack.c.l.b16 %v4724
        %v5478 = vunpack.c.h.b16 %v4724
        %v5479 = vunpack.c.l.b16 %v4725
        %v5480 = vunpack.c.h.b16 %v4725
        %v5481 = vunpack.c.l.b16 %v4726
        %v5482 = vunpack.c.h.b16 %v4726
        %v5483 = vunpack.c.l.b16 %v4727
        %v5484 = vunpack.c.h.b16 %v4727
        %v5485 = vunpack.c.l.b16 %v4728
        %v5486 = vunpack.c.h.b16 %v4728
        %v5487 = vunpack.c.l.b16 %v4729
        %v5488 = vunpack.c.h.b16 %v4729
        %v5489 = vunpack.c.l.b16 %v4730
        %v5490 = vunpack.c.h.b16 %v4730
        %v5491 = vunpack.c.l.b16 %v4731
        %v5492 = vunpack.c.h.b16 %v4731
        %v5493 = vunpack.c.l.b16 %v4732
        %v5494 = vunpack.c.h.b16 %v4732
        %v5495 = vunpack.c.l.b16 %v4733
        %v5496 = vunpack.c.h.b16 %v4733
        %v5497 = vunpack.c.l.b16 %v4734
        %v5498 = vunpack.c.h.b16 %v4734
        %v5499 = vunpack.c.l.b16 %v4735
        %v5500 = vunpack.c.h.b16 %v4735
        %v5501 = vunpack.c.l.b16 %v4736
        %v5502 = vunpack.c.h.b16 %v4736
        %v5503 = vunpack.c.l.b16 %v4737
        %v5504 = vunpack.c.h.b16 %v4737
        %v5505 = vunpack.c.l.b16 %v4738
        %v5506 = vunpack.c.h.b16 %v4738
        %v5507 = vunpack.c.l.b16 %v4739
        %v5508 = vunpack.c.h.b16 %v4739
        %v5509 = vunpack.c.l.b16 %v4740
        %v5510 = vunpack.c.h.b16 %v4740
        %v5511 = vunpack.c.l.b16 %v4741
        %v5512 = vunpack.c.h.b16 %v4741
        %v5513 = vunpack.c.l.b16 %v4742
        %v5514 = vunpack.c.h.b16 %v4742
        %v5515 = vunpack.c.l.b16 %v4743
        %v5516 = vunpack.c.h.b16 %v4743
        %v5517 = vunpack.c.l.b16 %v4744
        %v5518 = vunpack.c.h.b16 %v4744
        %v5519 = vunpack.c.l.b16 %v4745
        %v5520 = vunpack.c.h.b16 %v4745
        %v5521 = vunpack.c.l.b16 %v4746
        %v5522 = vunpack.c.h.b16 %v4746
        %v5523 = vunpack.c.l.b16 %v4747
        %v5524 = vunpack.c.h.b16 %v4747
        %v5525 = vunpack.c.l.b16 %v4748
        %v5526 = vunpack.c.h.b16 %v4748
        %v5527 = vunpack.c.l.b16 %v4749
        %v5528 = vunpack.c.h.b16 %v4749
        %v5529 = vunpack.c.l.b16 %v4750
        %v5530 = vunpack.c.h.b16 %v4750
        %v5531 = vunpack.c.l.b16 %v4751
        %v5532 = vunpack.c.h.b16 %v4751
        %v5533 = vunpack.c.l.b16 %v4752
        %v5534 = vunpack.c.h.b16 %v4752
        %v5535 = vunpack.c.l.b16 %v4753
        %v5536 = vunpack.c.h.b16 %v4753
        %v5537 = vunpack.c.l.b16 %v4754
        %v5538 = vunpack.c.h.b16 %v4754
        %v5539 = vunpack.c.l.b16 %v4755
        %v5540 = vunpack.c.h.b16 %v4755
        %v5541 = vunpack.c.l.b16 %v4756
        %v5542 = vunpack.c.h.b16 %v4756
        %v5543 = vunpack.c.l.b16 %v4757
        %v5544 = vunpack.c.h.b16 %v4757
        %v5545 = vunpack.c.l.b16 %v4758
        %v5546 = vunpack.c.h.b16 %v4758
        %v5547 = vunpack.c.l.b16 %v4759
        %v5548 = vunpack.c.h.b16 %v4759
        %v5549 = vunpack.c.l.b16 %v4760
        %v5550 = vunpack.c.h.b16 %v4760
        %v5551 = vunpack.c.l.b16 %v4761
        %v5552 = vunpack.c.h.b16 %v4761
        %v5553 = vpack.c.b16 %v5045, %v5041
        %v5554 = vpack.c.b16 %v5046, %v5042
        %v5555 = vpack.c.b16 %v5047, %v5043
        %v5556 = vpack.c.b16 %v5048, %v5044
        %v5557 = vpack.c.b16 %v5053, %v5049
        %v5558 = vpack.c.b16 %v5054, %v5050
        %v5559 = vpack.c.b16 %v5055, %v5051
        %v5560 = vpack.c.b16 %v5056, %v5052
        %v5561 = vpack.c.b16 %v5061, %v5057
        %v5562 = vpack.c.b16 %v5062, %v5058
        %v5563 = vpack.c.b16 %v5063, %v5059
        %v5564 = vpack.c.b16 %v5064, %v5060
        %v5565 = vpack.c.b16 %v5069, %v5065
        %v5566 = vpack.c.b16 %v5070, %v5066
        %v5567 = vpack.c.b16 %v5071, %v5067
        %v5568 = vpack.c.b16 %v5072, %v5068
        %v5569 = vpack.c.b16 %v5077, %v5073
        %v5570 = vpack.c.b16 %v5078, %v5074
        %v5571 = vpack.c.b16 %v5079, %v5075
        %v5572 = vpack.c.b16 %v5080, %v5076
        %v5573 = vpack.c.b16 %v5085, %v5081
        %v5574 = vpack.c.b16 %v5086, %v5082
        %v5575 = vpack.c.b16 %v5087, %v5083
        %v5576 = vpack.c.b16 %v5088, %v5084
        %v5577 = vpack.c.b16 %v5093, %v5089
        %v5578 = vpack.c.b16 %v5094, %v5090
        %v5579 = vpack.c.b16 %v5095, %v5091
        %v5580 = vpack.c.b16 %v5096, %v5092
        %v5581 = vpack.c.b16 %v5101, %v5097
        %v5582 = vpack.c.b16 %v5102, %v5098
        %v5583 = vpack.c.b16 %v5103, %v5099
        %v5584 = vpack.c.b16 %v5104, %v5100
        %v5585 = vpack.c.b16 %v5109, %v5105
        %v5586 = vpack.c.b16 %v5110, %v5106
        %v5587 = vpack.c.b16 %v5111, %v5107
        %v5588 = vpack.c.b16 %v5112, %v5108
        %v5589 = vpack.c.b16 %v5117, %v5113
        %v5590 = vpack.c.b16 %v5118, %v5114
        %v5591 = vpack.c.b16 %v5119, %v5115
        %v5592 = vpack.c.b16 %v5120, %v5116
        %v5593 = vpack.c.b16 %v5125, %v5121
        %v5594 = vpack.c.b16 %v5126, %v5122
        %v5595 = vpack.c.b16 %v5127, %v5123
        %v5596 = vpack.c.b16 %v5128, %v5124
        %v5597 = vpack.c.b16 %v5133, %v5129
        %v5598 = vpack.c.b16 %v5134, %v5130
        %v5599 = vpack.c.b16 %v5135, %v5131
        %v5600 = vpack.c.b16 %v5136, %v5132
        %v5601 = vpack.c.b16 %v5141, %v5137
        %v5602 = vpack.c.b16 %v5142, %v5138
        %v5603 = vpack.c.b16 %v5143, %v5139
        %v5604 = vpack.c.b16 %v5144, %v5140
        %v5605 = vpack.c.b16 %v5149, %v5145
        %v5606 = vpack.c.b16 %v5150, %v5146
        %v5607 = vpack.c.b16 %v5151, %v5147
        %v5608 = vpack.c.b16 %v5152, %v5148
        %v5609 = vpack.c.b16 %v5157, %v5153
        %v5610 = vpack.c.b16 %v5158, %v5154
        %v5611 = vpack.c.b16 %v5159, %v5155
        %v5612 = vpack.c.b16 %v5160, %v5156
        %v5613 = vpack.c.b16 %v5165, %v5161
        %v5614 = vpack.c.b16 %v5166, %v5162
        %v5615 = vpack.c.b16 %v5167, %v5163
        %v5616 = vpack.c.b16 %v5168, %v5164
        %v5617 = vpack.c.b16 %v5173, %v5169
        %v5618 = vpack.c.b16 %v5174, %v5170
        %v5619 = vpack.c.b16 %v5175, %v5171
        %v5620 = vpack.c.b16 %v5176, %v5172
        %v5621 = vpack.c.b16 %v5181, %v5177
        %v5622 = vpack.c.b16 %v5182, %v5178
        %v5623 = vpack.c.b16 %v5183, %v5179
        %v5624 = vpack.c.b16 %v5184, %v5180
        %v5625 = vpack.c.b16 %v5189, %v5185
        %v5626 = vpack.c.b16 %v5190, %v5186
        %v5627 = vpack.c.b16 %v5191, %v5187
        %v5628 = vpack.c.b16 %v5192, %v5188
        %v5629 = vpack.c.b16 %v5197, %v5193
        %v5630 = vpack.c.b16 %v5198, %v5194
        %v5631 = vpack.c.b16 %v5199, %v5195
        %v5632 = vpack.c.b16 %v5200, %v5196
        %v5633 = vpack.c.b16 %v5205, %v5201
        %v5634 = vpack.c.b16 %v5206, %v5202
        %v5635 = vpack.c.b16 %v5207, %v5203
        %v5636 = vpack.c.b16 %v5208, %v5204
        %v5637 = vpack.c.b16 %v5213, %v5209
        %v5638 = vpack.c.b16 %v5214, %v5210
        %v5639 = vpack.c.b16 %v5215, %v5211
        %v5640 = vpack.c.b16 %v5216, %v5212
        %v5641 = vpack.c.b16 %v5221, %v5217
        %v5642 = vpack.c.b16 %v5222, %v5218
        %v5643 = vpack.c.b16 %v5223, %v5219
        %v5644 = vpack.c.b16 %v5224, %v5220
        %v5645 = vpack.c.b16 %v5229, %v5225
        %v5646 = vpack.c.b16 %v5230, %v5226
        %v5647 = vpack.c.b16 %v5231, %v5227
        %v5648 = vpack.c.b16 %v5232, %v5228
        %v5649 = vpack.c.b16 %v5237, %v5233
        %v5650 = vpack.c.b16 %v5238, %v5234
        %v5651 = vpack.c.b16 %v5239, %v5235
        %v5652 = vpack.c.b16 %v5240, %v5236
        %v5653 = vpack.c.b16 %v5245, %v5241
        %v5654 = vpack.c.b16 %v5246, %v5242
        %v5655 = vpack.c.b16 %v5247, %v5243
        %v5656 = vpack.c.b16 %v5248, %v5244
        %v5657 = vpack.c.b16 %v5253, %v5249
        %v5658 = vpack.c.b16 %v5254, %v5250
        %v5659 = vpack.c.b16 %v5255, %v5251
        %v5660 = vpack.c.b16 %v5256, %v5252
        %v5661 = vpack.c.b16 %v5261, %v5257
        %v5662 = vpack.c.b16 %v5262, %v5258
        %v5663 = vpack.c.b16 %v5263, %v5259
        %v5664 = vpack.c.b16 %v5264, %v5260
        %v5665 = vpack.c.b16 %v5269, %v5265
        %v5666 = vpack.c.b16 %v5270, %v5266
        %v5667 = vpack.c.b16 %v5271, %v5267
        %v5668 = vpack.c.b16 %v5272, %v5268
        %v5669 = vpack.c.b16 %v5277, %v5273
        %v5670 = vpack.c.b16 %v5278, %v5274
        %v5671 = vpack.c.b16 %v5279, %v5275
        %v5672 = vpack.c.b16 %v5280, %v5276
        %v5673 = vpack.c.b16 %v5285, %v5281
        %v5674 = vpack.c.b16 %v5286, %v5282
        %v5675 = vpack.c.b16 %v5287, %v5283
        %v5676 = vpack.c.b16 %v5288, %v5284
        %v5677 = vpack.c.b16 %v5293, %v5289
        %v5678 = vpack.c.b16 %v5294, %v5290
        %v5679 = vpack.c.b16 %v5295, %v5291
        %v5680 = vpack.c.b16 %v5296, %v5292
        %v5681 = vpack.c.b16 %v5301, %v5297
        %v5682 = vpack.c.b16 %v5302, %v5298
        %v5683 = vpack.c.b16 %v5303, %v5299
        %v5684 = vpack.c.b16 %v5304, %v5300
        %v5685 = vpack.c.b16 %v5309, %v5305
        %v5686 = vpack.c.b16 %v5310, %v5306
        %v5687 = vpack.c.b16 %v5311, %v5307
        %v5688 = vpack.c.b16 %v5312, %v5308
        %v5689 = vpack.c.b16 %v5317, %v5313
        %v5690 = vpack.c.b16 %v5318, %v5314
        %v5691 = vpack.c.b16 %v5319, %v5315
        %v5692 = vpack.c.b16 %v5320, %v5316
        %v5693 = vpack.c.b16 %v5325, %v5321
        %v5694 = vpack.c.b16 %v5326, %v5322
        %v5695 = vpack.c.b16 %v5327, %v5323
        %v5696 = vpack.c.b16 %v5328, %v5324
        %v5697 = vpack.c.b16 %v5333, %v5329
        %v5698 = vpack.c.b16 %v5334, %v5330
        %v5699 = vpack.c.b16 %v5335, %v5331
        %v5700 = vpack.c.b16 %v5336, %v5332
        %v5701 = vpack.c.b16 %v5341, %v5337
        %v5702 = vpack.c.b16 %v5342, %v5338
        %v5703 = vpack.c.b16 %v5343, %v5339
        %v5704 = vpack.c.b16 %v5344, %v5340
        %v5705 = vpack.c.b16 %v5349, %v5345
        %v5706 = vpack.c.b16 %v5350, %v5346
        %v5707 = vpack.c.b16 %v5351, %v5347
        %v5708 = vpack.c.b16 %v5352, %v5348
        %v5709 = vpack.c.b16 %v5357, %v5353
        %v5710 = vpack.c.b16 %v5358, %v5354
        %v5711 = vpack.c.b16 %v5359, %v5355
        %v5712 = vpack.c.b16 %v5360, %v5356
        %v5713 = vpack.c.b16 %v5365, %v5361
        %v5714 = vpack.c.b16 %v5366, %v5362
        %v5715 = vpack.c.b16 %v5367, %v5363
        %v5716 = vpack.c.b16 %v5368, %v5364
        %v5717 = vpack.c.b16 %v5373, %v5369
        %v5718 = vpack.c.b16 %v5374, %v5370
        %v5719 = vpack.c.b16 %v5375, %v5371
        %v5720 = vpack.c.b16 %v5376, %v5372
        %v5721 = vpack.c.b16 %v5381, %v5377
        %v5722 = vpack.c.b16 %v5382, %v5378
        %v5723 = vpack.c.b16 %v5383, %v5379
        %v5724 = vpack.c.b16 %v5384, %v5380
        %v5725 = vpack.c.b16 %v5389, %v5385
        %v5726 = vpack.c.b16 %v5390, %v5386
        %v5727 = vpack.c.b16 %v5391, %v5387
        %v5728 = vpack.c.b16 %v5392, %v5388
        %v5729 = vpack.c.b16 %v5397, %v5393
        %v5730 = vpack.c.b16 %v5398, %v5394
        %v5731 = vpack.c.b16 %v5399, %v5395
        %v5732 = vpack.c.b16 %v5400, %v5396
        %v5733 = vpack.c.b16 %v5405, %v5401
        %v5734 = vpack.c.b16 %v5406, %v5402
        %v5735 = vpack.c.b16 %v5407, %v5403
        %v5736 = vpack.c.b16 %v5408, %v5404
        %v5737 = vpack.c.b16 %v5413, %v5409
        %v5738 = vpack.c.b16 %v5414, %v5410
        %v5739 = vpack.c.b16 %v5415, %v5411
        %v5740 = vpack.c.b16 %v5416, %v5412
        %v5741 = vpack.c.b16 %v5421, %v5417
        %v5742 = vpack.c.b16 %v5422, %v5418
        %v5743 = vpack.c.b16 %v5423, %v5419
        %v5744 = vpack.c.b16 %v5424, %v5420
        %v5745 = vpack.c.b16 %v5429, %v5425
        %v5746 = vpack.c.b16 %v5430, %v5426
        %v5747 = vpack.c.b16 %v5431, %v5427
        %v5748 = vpack.c.b16 %v5432, %v5428
        %v5749 = vpack.c.b16 %v5437, %v5433
        %v5750 = vpack.c.b16 %v5438, %v5434
        %v5751 = vpack.c.b16 %v5439, %v5435
        %v5752 = vpack.c.b16 %v5440, %v5436
        %v5753 = vpack.c.b16 %v5445, %v5441
        %v5754 = vpack.c.b16 %v5446, %v5442
        %v5755 = vpack.c.b16 %v5447, %v5443
        %v5756 = vpack.c.b16 %v5448, %v5444
        %v5757 = vpack.c.b16 %v5453, %v5449
        %v5758 = vpack.c.b16 %v5454, %v5450
        %v5759 = vpack.c.b16 %v5455, %v5451
        %v5760 = vpack.c.b16 %v5456, %v5452
        %v5761 = vpack.c.b16 %v5461, %v5457
        %v5762 = vpack.c.b16 %v5462, %v5458
        %v5763 = vpack.c.b16 %v5463, %v5459
        %v5764 = vpack.c.b16 %v5464, %v5460
        %v5765 = vpack.c.b16 %v5469, %v5465
        %v5766 = vpack.c.b16 %v5470, %v5466
        %v5767 = vpack.c.b16 %v5471, %v5467
        %v5768 = vpack.c.b16 %v5472, %v5468
        %v5769 = vpack.c.b16 %v5477, %v5473
        %v5770 = vpack.c.b16 %v5478, %v5474
        %v5771 = vpack.c.b16 %v5479, %v5475
        %v5772 = vpack.c.b16 %v5480, %v5476
        %v5773 = vpack.c.b16 %v5485, %v5481
        %v5774 = vpack.c.b16 %v5486, %v5482
        %v5775 = vpack.c.b16 %v5487, %v5483
        %v5776 = vpack.c.b16 %v5488, %v5484
        %v5777 = vpack.c.b16 %v5493, %v5489
        %v5778 = vpack.c.b16 %v5494, %v5490
        %v5779 = vpack.c.b16 %v5495, %v5491
        %v5780 = vpack.c.b16 %v5496, %v5492
        %v5781 = vpack.c.b16 %v5501, %v5497
        %v5782 = vpack.c.b16 %v5502, %v5498
        %v5783 = vpack.c.b16 %v5503, %v5499
        %v5784 = vpack.c.b16 %v5504, %v5500
        %v5785 = vpack.c.b16 %v5509, %v5505
        %v5786 = vpack.c.b16 %v5510, %v5506
        %v5787 = vpack.c.b16 %v5511, %v5507
        %v5788 = vpack.c.b16 %v5512, %v5508
        %v5789 = vpack.c.b16 %v5517, %v5513
        %v5790 = vpack.c.b16 %v5518, %v5514
        %v5791 = vpack.c.b16 %v5519, %v5515
        %v5792 = vpack.c.b16 %v5520, %v5516
        %v5793 = vpack.c.b16 %v5525, %v5521
        %v5794 = vpack.c.b16 %v5526, %v5522
        %v5795 = vpack.c.b16 %v5527, %v5523
        %v5796 = vpack.c.b16 %v5528, %v5524
        %v5797 = vpack.c.b16 %v5533, %v5529
        %v5798 = vpack.c.b16 %v5534, %v5530
        %v5799 = vpack.c.b16 %v5535, %v5531
        %v5800 = vpack.c.b16 %v5536, %v5532
        %v5801 = vpack.c.b16 %v5541, %v5537
        %v5802 = vpack.c.b16 %v5542, %v5538
        %v5803 = vpack.c.b16 %v5543, %v5539
        %v5804 = vpack.c.b16 %v5544, %v5540
        %v5805 = vpack.c.b16 %v5549, %v5545
        %v5806 = vpack.c.b16 %v5550, %v5546
        %v5807 = vpack.c.b16 %v5551, %v5547
        %v5808 = vpack.c.b16 %v5552, %v5548
        %6065 = vmatprep.subr.bf16.mxu0 %v5554
        %6066 = vmatpush1.bf16.msra.mxu0 %v5553
        %6067 = vmatprep.subr.bf16.mxu0 %v5558
        %6068 = vmatpush1.bf16.msra.mxu0 %v5557
        %6069 = vmatprep.subr.bf16.mxu0 %v5562
        %6070 = vmatpush1.bf16.msra.mxu0 %v5561
        %6071 = vmatprep.subr.bf16.mxu0 %v5566
        %6072 = vmatpush1.bf16.msra.mxu0 %v5565
        %6073 = vmatprep.subr.bf16.mxu0 %v5570
        %6074 = vmatpush1.bf16.msra.mxu0 %v5569
        %6075 = vmatprep.subr.bf16.mxu0 %v5574
        %6076 = vmatpush1.bf16.msra.mxu0 %v5573
        %6077 = vmatprep.subr.bf16.mxu0 %v5578
        %6078 = vmatpush1.bf16.msra.mxu0 %v5577
        %6079 = vmatprep.subr.bf16.mxu0 %v5582
        %6080 = vmatpush1.bf16.msra.mxu0 %v5581
        %6081 = vmatprep.subr.bf16.mxu0 %v5586
        %6082 = vmatpush1.bf16.msra.mxu0 %v5585
        %6083 = vmatprep.subr.bf16.mxu0 %v5590
        %6084 = vmatpush1.bf16.msra.mxu0 %v5589
        %6085 = vmatprep.subr.bf16.mxu0 %v5594
        %6086 = vmatpush1.bf16.msra.mxu0 %v5593
        %6087 = vmatprep.subr.bf16.mxu0 %v5598
        %6088 = vmatpush1.bf16.msra.mxu0 %v5597
        %6089 = vmatprep.subr.bf16.mxu0 %v5602
        %6090 = vmatpush1.bf16.msra.mxu0 %v5601
        %6091 = vmatprep.subr.bf16.mxu0 %v5606
        %6092 = vmatpush1.bf16.msra.mxu0 %v5605
        %6093 = vmatprep.subr.bf16.mxu0 %v5610
        %6094 = vmatpush1.bf16.msra.mxu0 %v5609
        %6095 = vmatprep.subr.bf16.mxu0 %v5614
        %6096 = vmatpush1.bf16.msra.mxu0 %v5613
        %6097 = vmatprep.mubr.bf16.mxu0 %v4499
        %6098 = vmatmul.mubr.bf16.gmra.mrb[0].mxu0 %v4498
        %v6099 = vpop.f32.mrb[0].mxu0
        %v6100 = vadd.f32 %v4768, %v6099
        %v6101 = vpop.f32.mrb[0].mxu0
        %v6102 = vadd.f32 %v4772, %v6101
        %v6103 = vpop.f32.mrb[0].mxu0
        %v6104 = vpop.f32.mrb[0].mxu0
        %6105 = vdwg.mxu0
        %6106 = vmatprep.subr.bf16.mxu0 %v5618
        %6107 = vmatpush1.bf16.msra.mxu0 %v5617
        %6108 = vmatprep.subr.bf16.mxu0 %v5622
        %6109 = vmatpush1.bf16.msra.mxu0 %v5621
        %6110 = vmatprep.subr.bf16.mxu0 %v5626
        %6111 = vmatpush1.bf16.msra.mxu0 %v5625
        %6112 = vmatprep.subr.bf16.mxu0 %v5630
        %6113 = vmatpush1.bf16.msra.mxu0 %v5629
        %6114 = vmatprep.subr.bf16.mxu0 %v5634
        %6115 = vmatpush1.bf16.msra.mxu0 %v5633
        %6116 = vmatprep.subr.bf16.mxu0 %v5638
        %6117 = vmatpush1.bf16.msra.mxu0 %v5637
        %6118 = vmatprep.subr.bf16.mxu0 %v5642
        %6119 = vmatpush1.bf16.msra.mxu0 %v5641
        %6120 = vmatprep.subr.bf16.mxu0 %v5646
        %6121 = vmatpush1.bf16.msra.mxu0 %v5645
        %6122 = vmatprep.subr.bf16.mxu0 %v5650
        %6123 = vmatpush1.bf16.msra.mxu0 %v5649
        %6124 = vmatprep.subr.bf16.mxu0 %v5654
        %6125 = vmatpush1.bf16.msra.mxu0 %v5653
        %6126 = vmatprep.subr.bf16.mxu0 %v5658
        %6127 = vmatpush1.bf16.msra.mxu0 %v5657
        %6128 = vmatprep.subr.bf16.mxu0 %v5662
        %6129 = vmatpush1.bf16.msra.mxu0 %v5661
        %6130 = vmatprep.subr.bf16.mxu0 %v5666
        %6131 = vmatpush1.bf16.msra.mxu0 %v5665
        %6132 = vmatprep.subr.bf16.mxu0 %v5670
        %6133 = vmatpush1.bf16.msra.mxu0 %v5669
        %6134 = vmatprep.subr.bf16.mxu0 %v5674
        %6135 = vmatpush1.bf16.msra.mxu0 %v5673
        %6136 = vmatprep.subr.bf16.mxu0 %v5678
        %6137 = vmatpush1.bf16.msra.mxu0 %v5677
        %6138 = vmatprep.mubr.bf16.mxu0 %v4501
        %6139 = vmatmul.mubr.bf16.gmra.mrb[0].mxu0 %v4500
        %v6140 = vpop.f32.mrb[0].mxu0
        %v6141 = vadd.f32 %v6100, %v6140
        %v6142 = vpop.f32.mrb[0].mxu0
        %v6143 = vadd.f32 %v6102, %v6142
        %v6144 = vpop.f32.mrb[0].mxu0
        %v6145 = vpop.f32.mrb[0].mxu0
        %6146 = vdwg.mxu0
        %6147 = vmatprep.subr.bf16.mxu0 %v5682
        %6148 = vmatpush1.bf16.msra.mxu0 %v5681
        %6149 = vmatprep.subr.bf16.mxu0 %v5686
        %6150 = vmatpush1.bf16.msra.mxu0 %v5685
        %6151 = vmatprep.subr.bf16.mxu0 %v5690
        %6152 = vmatpush1.bf16.msra.mxu0 %v5689
        %6153 = vmatprep.subr.bf16.mxu0 %v5694
        %6154 = vmatpush1.bf16.msra.mxu0 %v5693
        %6155 = vmatprep.subr.bf16.mxu0 %v5698
        %6156 = vmatpush1.bf16.msra.mxu0 %v5697
        %6157 = vmatprep.subr.bf16.mxu0 %v5702
        %6158 = vmatpush1.bf16.msra.mxu0 %v5701
        %6159 = vmatprep.subr.bf16.mxu0 %v5706
        %6160 = vmatpush1.bf16.msra.mxu0 %v5705
        %6161 = vmatprep.subr.bf16.mxu0 %v5710
        %6162 = vmatpush1.bf16.msra.mxu0 %v5709
        %6163 = vmatprep.subr.bf16.mxu0 %v5714
        %6164 = vmatpush1.bf16.msra.mxu0 %v5713
        %6165 = vmatprep.subr.bf16.mxu0 %v5718
        %6166 = vmatpush1.bf16.msra.mxu0 %v5717
        %6167 = vmatprep.subr.bf16.mxu0 %v5722
        %6168 = vmatpush1.bf16.msra.mxu0 %v5721
        %6169 = vmatprep.subr.bf16.mxu0 %v5726
        %6170 = vmatpush1.bf16.msra.mxu0 %v5725
        %6171 = vmatprep.subr.bf16.mxu0 %v5730
        %6172 = vmatpush1.bf16.msra.mxu0 %v5729
        %6173 = vmatprep.subr.bf16.mxu0 %v5734
        %6174 = vmatpush1.bf16.msra.mxu0 %v5733
        %6175 = vmatprep.subr.bf16.mxu0 %v5738
        %6176 = vmatpush1.bf16.msra.mxu0 %v5737
        %6177 = vmatprep.subr.bf16.mxu0 %v5742
        %6178 = vmatpush1.bf16.msra.mxu0 %v5741
        %6179 = vmatprep.mubr.bf16.mxu0 %v4503
        %6180 = vmatmul.mubr.bf16.gmra.mrb[0].mxu0 %v4502
        %v6181 = vpop.f32.mrb[0].mxu0
        %v6182 = vadd.f32 %v6141, %v6181
        %v6183 = vpop.f32.mrb[0].mxu0
        %v6184 = vadd.f32 %v6143, %v6183
        %v6185 = vpop.f32.mrb[0].mxu0
        %v6186 = vpop.f32.mrb[0].mxu0
        %6187 = vdwg.mxu0
        %6188 = vmatprep.subr.bf16.mxu0 %v5746
        %6189 = vmatpush1.bf16.msra.mxu0 %v5745
        %6190 = vmatprep.subr.bf16.mxu0 %v5750
        %6191 = vmatpush1.bf16.msra.mxu0 %v5749
        %6192 = vmatprep.subr.bf16.mxu0 %v5754
        %6193 = vmatpush1.bf16.msra.mxu0 %v5753
        %6194 = vmatprep.subr.bf16.mxu0 %v5758
        %6195 = vmatpush1.bf16.msra.mxu0 %v5757
        %6196 = vmatprep.subr.bf16.mxu0 %v5762
        %6197 = vmatpush1.bf16.msra.mxu0 %v5761
        %6198 = vmatprep.subr.bf16.mxu0 %v5766
        %6199 = vmatpush1.bf16.msra.mxu0 %v5765
        %6200 = vmatprep.subr.bf16.mxu0 %v5770
        %6201 = vmatpush1.bf16.msra.mxu0 %v5769
        %6202 = vmatprep.subr.bf16.mxu0 %v5774
        %6203 = vmatpush1.bf16.msra.mxu0 %v5773
        %6204 = vmatprep.subr.bf16.mxu0 %v5778
        %6205 = vmatpush1.bf16.msra.mxu0 %v5777
        %6206 = vmatprep.subr.bf16.mxu0 %v5782
        %6207 = vmatpush1.bf16.msra.mxu0 %v5781
        %6208 = vmatprep.subr.bf16.mxu0 %v5786
        %6209 = vmatpush1.bf16.msra.mxu0 %v5785
        %6210 = vmatprep.subr.bf16.mxu0 %v5790
        %6211 = vmatpush1.bf16.msra.mxu0 %v5789
        %6212 = vmatprep.subr.bf16.mxu0 %v5794
        %6213 = vmatpush1.bf16.msra.mxu0 %v5793
        %6214 = vmatprep.subr.bf16.mxu0 %v5798
        %6215 = vmatpush1.bf16.msra.mxu0 %v5797
        %6216 = vmatprep.subr.bf16.mxu0 %v5802
        %6217 = vmatpush1.bf16.msra.mxu0 %v5801
        %6218 = vmatprep.subr.bf16.mxu0 %v5806
        %6219 = vmatpush1.bf16.msra.mxu0 %v5805
        %6220 = vmatprep.mubr.bf16.mxu0 %v4505
        %6221 = vmatmul.mubr.bf16.gmra.mrb[0].mxu0 %v4504
        %v6222 = vpop.f32.mrb[0].mxu0
        %v6223 = vadd.f32 %v6182, %v6222
        %v6224 = vpop.f32.mrb[0].mxu0
        %v6225 = vadd.f32 %v6184, %v6224
        %v6226 = vpop.f32.mrb[0].mxu0
        %v6227 = vpop.f32.mrb[0].mxu0
        %6228 = vdwg.mxu0
        %6229 = vmatprep.subr.bf16.mxu0 %v5556
        %6230 = vmatpush1.bf16.msra.mxu0 %v5555
        %6231 = vmatprep.subr.bf16.mxu0 %v5560
        %6232 = vmatpush1.bf16.msra.mxu0 %v5559
        %6233 = vmatprep.subr.bf16.mxu0 %v5564
        %6234 = vmatpush1.bf16.msra.mxu0 %v5563
        %6235 = vmatprep.subr.bf16.mxu0 %v5568
        %6236 = vmatpush1.bf16.msra.mxu0 %v5567
        %6237 = vmatprep.subr.bf16.mxu0 %v5572
        %6238 = vmatpush1.bf16.msra.mxu0 %v5571
        %6239 = vmatprep.subr.bf16.mxu0 %v5576
        %6240 = vmatpush1.bf16.msra.mxu0 %v5575
        %6241 = vmatprep.subr.bf16.mxu0 %v5580
        %6242 = vmatpush1.bf16.msra.mxu0 %v5579
        %6243 = vmatprep.subr.bf16.mxu0 %v5584
        %6244 = vmatpush1.bf16.msra.mxu0 %v5583
        %6245 = vmatprep.subr.bf16.mxu0 %v5588
        %6246 = vmatpush1.bf16.msra.mxu0 %v5587
        %6247 = vmatprep.subr.bf16.mxu0 %v5592
        %6248 = vmatpush1.bf16.msra.mxu0 %v5591
        %6249 = vmatprep.subr.bf16.mxu0 %v5596
        %6250 = vmatpush1.bf16.msra.mxu0 %v5595
        %6251 = vmatprep.subr.bf16.mxu0 %v5600
        %6252 = vmatpush1.bf16.msra.mxu0 %v5599
        %6253 = vmatprep.subr.bf16.mxu0 %v5604
        %6254 = vmatpush1.bf16.msra.mxu0 %v5603
        %6255 = vmatprep.subr.bf16.mxu0 %v5608
        %6256 = vmatpush1.bf16.msra.mxu0 %v5607
        %6257 = vmatprep.subr.bf16.mxu0 %v5612
        %6258 = vmatpush1.bf16.msra.mxu0 %v5611
        %6259 = vmatprep.subr.bf16.mxu0 %v5616
        %6260 = vmatpush1.bf16.msra.mxu0 %v5615
        %6261 = vmatprep.mubr.bf16.mxu0 %v4499
        %6262 = vmatmul.mubr.bf16.gmra.mrb[0].mxu0 %v4498
        %v6263 = vpop.f32.mrb[0].mxu0
        %v6264 = vadd.f32 %v4776, %v6263
        %v6265 = vpop.f32.mrb[0].mxu0
        %v6266 = vadd.f32 %v4780, %v6265
        %v6267 = vpop.f32.mrb[0].mxu0
        %v6268 = vpop.f32.mrb[0].mxu0
        %6269 = vdwg.mxu0
        %6270 = vmatprep.subr.bf16.mxu0 %v5620
        %6271 = vmatpush1.bf16.msra.mxu0 %v5619
        %6272 = vmatprep.subr.bf16.mxu0 %v5624
        %6273 = vmatpush1.bf16.msra.mxu0 %v5623
        %6274 = vmatprep.subr.bf16.mxu0 %v5628
        %6275 = vmatpush1.bf16.msra.mxu0 %v5627
        %6276 = vmatprep.subr.bf16.mxu0 %v5632
        %6277 = vmatpush1.bf16.msra.mxu0 %v5631
        %6278 = vmatprep.subr.bf16.mxu0 %v5636
        %6279 = vmatpush1.bf16.msra.mxu0 %v5635
        %6280 = vmatprep.subr.bf16.mxu0 %v5640
        %6281 = vmatpush1.bf16.msra.mxu0 %v5639
        %6282 = vmatprep.subr.bf16.mxu0 %v5644
        %6283 = vmatpush1.bf16.msra.mxu0 %v5643
        %6284 = vmatprep.subr.bf16.mxu0 %v5648
        %6285 = vmatpush1.bf16.msra.mxu0 %v5647
        %6286 = vmatprep.subr.bf16.mxu0 %v5652
        %6287 = vmatpush1.bf16.msra.mxu0 %v5651
        %6288 = vmatprep.subr.bf16.mxu0 %v5656
        %6289 = vmatpush1.bf16.msra.mxu0 %v5655
        %6290 = vmatprep.subr.bf16.mxu0 %v5660
        %6291 = vmatpush1.bf16.msra.mxu0 %v5659
        %6292 = vmatprep.subr.bf16.mxu0 %v5664
        %6293 = vmatpush1.bf16.msra.mxu0 %v5663
        %6294 = vmatprep.subr.bf16.mxu0 %v5668
        %6295 = vmatpush1.bf16.msra.mxu0 %v5667
        %6296 = vmatprep.subr.bf16.mxu0 %v5672
        %6297 = vmatpush1.bf16.msra.mxu0 %v5671
        %6298 = vmatprep.subr.bf16.mxu0 %v5676
        %6299 = vmatpush1.bf16.msra.mxu0 %v5675
        %6300 = vmatprep.subr.bf16.mxu0 %v5680
        %6301 = vmatpush1.bf16.msra.mxu0 %v5679
        %6302 = vmatprep.mubr.bf16.mxu0 %v4501
        %6303 = vmatmul.mubr.bf16.gmra.mrb[0].mxu0 %v4500
        %v6304 = vpop.f32.mrb[0].mxu0
        %v6305 = vadd.f32 %v6264, %v6304
        %v6306 = vpop.f32.mrb[0].mxu0
        %v6307 = vadd.f32 %v6266, %v6306
        %v6308 = vpop.f32.mrb[0].mxu0
        %v6309 = vpop.f32.mrb[0].mxu0
        %6310 = vdwg.mxu0
        %6311 = vmatprep.subr.bf16.mxu0 %v5684
        %6312 = vmatpush1.bf16.msra.mxu0 %v5683
        %6313 = vmatprep.subr.bf16.mxu0 %v5688
        %6314 = vmatpush1.bf16.msra.mxu0 %v5687
        %6315 = vmatprep.subr.bf16.mxu0 %v5692
        %6316 = vmatpush1.bf16.msra.mxu0 %v5691
        %6317 = vmatprep.subr.bf16.mxu0 %v5696
        %6318 = vmatpush1.bf16.msra.mxu0 %v5695
        %6319 = vmatprep.subr.bf16.mxu0 %v5700
        %6320 = vmatpush1.bf16.msra.mxu0 %v5699
        %6321 = vmatprep.subr.bf16.mxu0 %v5704
        %6322 = vmatpush1.bf16.msra.mxu0 %v5703
        %6323 = vmatprep.subr.bf16.mxu0 %v5708
        %6324 = vmatpush1.bf16.msra.mxu0 %v5707
        %6325 = vmatprep.subr.bf16.mxu0 %v5712
        %6326 = vmatpush1.bf16.msra.mxu0 %v5711
        %6327 = vmatprep.subr.bf16.mxu0 %v5716
        %6328 = vmatpush1.bf16.msra.mxu0 %v5715
        %6329 = vmatprep.subr.bf16.mxu0 %v5720
        %6330 = vmatpush1.bf16.msra.mxu0 %v5719
        %6331 = vmatprep.subr.bf16.mxu0 %v5724
        %6332 = vmatpush1.bf16.msra.mxu0 %v5723
        %6333 = vmatprep.subr.bf16.mxu0 %v5728
        %6334 = vmatpush1.bf16.msra.mxu0 %v5727
        %6335 = vmatprep.subr.bf16.mxu0 %v5732
        %6336 = vmatpush1.bf16.msra.mxu0 %v5731
        %6337 = vmatprep.subr.bf16.mxu0 %v5736
        %6338 = vmatpush1.bf16.msra.mxu0 %v5735
        %6339 = vmatprep.subr.bf16.mxu0 %v5740
        %6340 = vmatpush1.bf16.msra.mxu0 %v5739
        %6341 = vmatprep.subr.bf16.mxu0 %v5744
        %6342 = vmatpush1.bf16.msra.mxu0 %v5743
        %6343 = vmatprep.mubr.bf16.mxu0 %v4503
        %6344 = vmatmul.mubr.bf16.gmra.mrb[0].mxu0 %v4502
        %v6345 = vpop.f32.mrb[0].mxu0
        %v6346 = vadd.f32 %v6305, %v6345
        %v6347 = vpop.f32.mrb[0].mxu0
        %v6348 = vadd.f32 %v6307, %v6347
        %v6349 = vpop.f32.mrb[0].mxu0
        %v6350 = vpop.f32.mrb[0].mxu0
        %6351 = vdwg.mxu0
        %6352 = vmatprep.subr.bf16.mxu0 %v5748
        %6353 = vmatpush1.bf16.msra.mxu0 %v5747
        %6354 = vmatprep.subr.bf16.mxu0 %v5752
        %6355 = vmatpush1.bf16.msra.mxu0 %v5751
        %6356 = vmatprep.subr.bf16.mxu0 %v5756
        %6357 = vmatpush1.bf16.msra.mxu0 %v5755
        %6358 = vmatprep.subr.bf16.mxu0 %v5760
        %6359 = vmatpush1.bf16.msra.mxu0 %v5759
        %6360 = vmatprep.subr.bf16.mxu0 %v5764
        %6361 = vmatpush1.bf16.msra.mxu0 %v5763
        %6362 = vmatprep.subr.bf16.mxu0 %v5768
        %6363 = vmatpush1.bf16.msra.mxu0 %v5767
        %6364 = vmatprep.subr.bf16.mxu0 %v5772
        %6365 = vmatpush1.bf16.msra.mxu0 %v5771
        %6366 = vmatprep.subr.bf16.mxu0 %v5776
        %6367 = vmatpush1.bf16.msra.mxu0 %v5775
        %6368 = vmatprep.subr.bf16.mxu0 %v5780
        %6369 = vmatpush1.bf16.msra.mxu0 %v5779
        %6370 = vmatprep.subr.bf16.mxu0 %v5784
        %6371 = vmatpush1.bf16.msra.mxu0 %v5783
        %6372 = vmatprep.subr.bf16.mxu0 %v5788
        %6373 = vmatpush1.bf16.msra.mxu0 %v5787
        %6374 = vmatprep.subr.bf16.mxu0 %v5792
        %6375 = vmatpush1.bf16.msra.mxu0 %v5791
        %6376 = vmatprep.subr.bf16.mxu0 %v5796
        %6377 = vmatpush1.bf16.msra.mxu0 %v5795
        %6378 = vmatprep.subr.bf16.mxu0 %v5800
        %6379 = vmatpush1.bf16.msra.mxu0 %v5799
        %6380 = vmatprep.subr.bf16.mxu0 %v5804
        %6381 = vmatpush1.bf16.msra.mxu0 %v5803
        %6382 = vmatprep.subr.bf16.mxu0 %v5808
        %6383 = vmatpush1.bf16.msra.mxu0 %v5807
        %6384 = vmatprep.mubr.bf16.mxu0 %v4505
        %6385 = vmatmul.mubr.bf16.gmra.mrb[0].mxu0 %v4504
        %v6386 = vpop.f32.mrb[0].mxu0
        %v6387 = vadd.f32 %v6346, %v6386
        %v6388 = vpop.f32.mrb[0].mxu0
        %v6389 = vadd.f32 %v6348, %v6388
        %v6390 = vpop.f32.mrb[0].mxu0
        %v6391 = vpop.f32.mrb[0].mxu0
        %6392 = vdwg.mxu0
        %v6393 = vmax.f32 %v6223, 0.0
        %v6394 = vmax.f32 %v6225, 0.0
        %v6395 = vmax.f32 %v6387, 0.0
        %v6396 = vmax.f32 %v6389, 0.0
        %s6397 = scalar_lea.vmem %s441, 4
        %v6398 = vld [vmem:[%s6397] ss:$8 sm:$0xf]
        %s6399 = scalar_lea.vmem %s441, 5
        %v6400 = vld [vmem:[%s6399] ss:$8 sm:$0xf]
        %v6401 = vrot.slane %v6393, 4
        %v6402 = vadd.f32 %v6393, %v6401
        %v6403 = vrot.slane %v6402, 2
        %v6404 = vadd.f32 %v6402, %v6403
        %v6405 = vrot.slane %v6404, 1
        %v6406 = vadd.f32 %v6404, %v6405
        %v6407 = vrot.slane %v6394, 4
        %v6408 = vadd.f32 %v6394, %v6407
        %v6409 = vrot.slane %v6408, 2
        %v6410 = vadd.f32 %v6408, %v6409
        %v6411 = vrot.slane %v6410, 1
        %v6412 = vadd.f32 %v6410, %v6411
        %v6413 = vrot.slane %v6395, 4
        %v6414 = vadd.f32 %v6395, %v6413
        %v6415 = vrot.slane %v6414, 2
        %v6416 = vadd.f32 %v6414, %v6415
        %v6417 = vrot.slane %v6416, 1
        %v6418 = vadd.f32 %v6416, %v6417
        %v6419 = vrot.slane %v6396, 4
        %v6420 = vadd.f32 %v6396, %v6419
        %v6421 = vrot.slane %v6420, 2
        %v6422 = vadd.f32 %v6420, %v6421
        %v6423 = vrot.slane %v6422, 1
        %v6424 = vadd.f32 %v6422, %v6423
        %v6425 = vmul.f32 %v6406, %v4295
        %v6426 = vmul.f32 %v6412, %v4295
        %v6427 = vmul.f32 %v6418, %v4295
        %v6428 = vmul.f32 %v6424, %v4295
        %v6429 = vsub.f32 %v6393, %v6425
        %v6430 = vsub.f32 %v6394, %v6426
        %v6431 = vsub.f32 %v6395, %v6427
        %v6432 = vsub.f32 %v6396, %v6428
        %v6433 = vmul.f32 %v6429, %v6429
        %v6434 = vmul.f32 %v6430, %v6430
        %v6435 = vmul.f32 %v6431, %v6431
        %v6436 = vmul.f32 %v6432, %v6432
        %v6437 = vrot.slane %v6433, 4
        %v6438 = vadd.f32 %v6433, %v6437
        %v6439 = vrot.slane %v6438, 2
        %v6440 = vadd.f32 %v6438, %v6439
        %v6441 = vrot.slane %v6440, 1
        %v6442 = vadd.f32 %v6440, %v6441
        %v6443 = vrot.slane %v6434, 4
        %v6444 = vadd.f32 %v6434, %v6443
        %v6445 = vrot.slane %v6444, 2
        %v6446 = vadd.f32 %v6444, %v6445
        %v6447 = vrot.slane %v6446, 1
        %v6448 = vadd.f32 %v6446, %v6447
        %v6449 = vrot.slane %v6435, 4
        %v6450 = vadd.f32 %v6435, %v6449
        %v6451 = vrot.slane %v6450, 2
        %v6452 = vadd.f32 %v6450, %v6451
        %v6453 = vrot.slane %v6452, 1
        %v6454 = vadd.f32 %v6452, %v6453
        %v6455 = vrot.slane %v6436, 4
        %v6456 = vadd.f32 %v6436, %v6455
        %v6457 = vrot.slane %v6456, 2
        %v6458 = vadd.f32 %v6456, %v6457
        %v6459 = vrot.slane %v6458, 1
        %v6460 = vadd.f32 %v6458, %v6459
        %v6461 = vmul.f32 %v6442, %v4295
        %v6462 = vmul.f32 %v6448, %v4295
        %v6463 = vmul.f32 %v6454, %v4295
        %v6464 = vmul.f32 %v6460, %v4295
        %v6465 = vadd.f32 %v6461, 1e-05
        %v6466 = vadd.f32 %v6462, 1e-05
        %v6467 = vadd.f32 %v6463, 1e-05
        %v6468 = vadd.f32 %v6464, 1e-05
        %v6469 = vrsqrt.pop %v6465
        %v6470 = vrsqrt.pop %v6466
        %v6471 = vrsqrt.pop %v6467
        %v6472 = vrsqrt.pop %v6468
        %v6473 = vmul.f32 %v6429, %v6469
        %v6474 = vmul.f32 %v6430, %v6470
        %v6475 = vmul.f32 %v6431, %v6471
        %v6476 = vmul.f32 %v6432, %v6472
        %v6478 = vlaneseq
        %v6479 = vshrl.u32 %v6478, 7
        %v6480 = vsub.s32 0, %v6479
        %v6481 = vrot.slane %v6398, %v6480
        %v6482 = vlaneseq
        %v6483 = vshrl.u32 %v6482, 7
        %v6484 = vsub.s32 1, %v6483
        %v6485 = vrot.slane %v6398, %v6484
        %v6486 = vlaneseq
        %v6487 = vshrl.u32 %v6486, 7
        %v6488 = vsub.s32 2, %v6487
        %v6489 = vrot.slane %v6398, %v6488
        %v6490 = vlaneseq
        %v6491 = vshrl.u32 %v6490, 7
        %v6492 = vsub.s32 3, %v6491
        %v6493 = vrot.slane %v6398, %v6492
        %v6498 = vmul.f32 %v6473, %v6481
        %v6499 = vmul.f32 %v6474, %v6485
        %v6500 = vmul.f32 %v6475, %v6489
        %v6501 = vmul.f32 %v6476, %v6493
        %v6503 = vlaneseq
        %v6504 = vshrl.u32 %v6503, 7
        %v6505 = vsub.s32 0, %v6504
        %v6506 = vrot.slane %v6400, %v6505
        %v6507 = vlaneseq
        %v6508 = vshrl.u32 %v6507, 7
        %v6509 = vsub.s32 1, %v6508
        %v6510 = vrot.slane %v6400, %v6509
        %v6511 = vlaneseq
        %v6512 = vshrl.u32 %v6511, 7
        %v6513 = vsub.s32 2, %v6512
        %v6514 = vrot.slane %v6400, %v6513
        %v6515 = vlaneseq
        %v6516 = vshrl.u32 %v6515, 7
        %v6517 = vsub.s32 3, %v6516
        %v6518 = vrot.slane %v6400, %v6517
        %v6523 = vadd.f32 %v6498, %v6506
        %v6524 = vadd.f32 %v6499, %v6510
        %v6525 = vadd.f32 %v6500, %v6514
        %v6526 = vadd.f32 %v6501, %v6518
        %v6527 = vpack.c.bf16 %v6523, %v6523
        %v6528 = vpack.c.bf16 %v6524, %v6524
        %v6529 = vpack.c.bf16 %v6525, %v6525
        %v6530 = vpack.c.bf16 %v6526, %v6526
        %v6531 = vld [vmem:[%s374] sm:$0xff]
        %v6532 = vld [vmem:[%s374 + $0x8] sm:$0xff]
        %v6533 = vld [vmem:[%s374 + $0x10] sm:$0xff]
        %v6534 = vld [vmem:[%s374 + $0x18] sm:$0xff]
        %v6535 = vld [vmem:[%s374 + $0x20] sm:$0xff]
        %v6536 = vld [vmem:[%s374 + $0x28] sm:$0xff]
        %v6537 = vld [vmem:[%s374 + $0x30] sm:$0xff]
        %v6538 = vld [vmem:[%s374 + $0x38] sm:$0xff]
        %v6539 = vld [vmem:[%s374 + $0x40] sm:$0xff]
        %v6540 = vld [vmem:[%s374 + $0x48] sm:$0xff]
        %v6541 = vld [vmem:[%s374 + $0x50] sm:$0xff]
        %v6542 = vld [vmem:[%s374 + $0x58] sm:$0xff]
        %v6543 = vld [vmem:[%s374 + $0x60] sm:$0xff]
        %v6544 = vld [vmem:[%s374 + $0x68] sm:$0xff]
        %v6545 = vld [vmem:[%s374 + $0x70] sm:$0xff]
        %v6546 = vld [vmem:[%s374 + $0x78] sm:$0xff]
        %v6547 = vld [vmem:[%s374 + $0x80] sm:$0xff]
        %v6548 = vld [vmem:[%s374 + $0x88] sm:$0xff]
        %v6549 = vld [vmem:[%s374 + $0x90] sm:$0xff]
        %v6550 = vld [vmem:[%s374 + $0x98] sm:$0xff]
        %v6551 = vld [vmem:[%s374 + $0xa0] sm:$0xff]
        %v6552 = vld [vmem:[%s374 + $0xa8] sm:$0xff]
        %v6553 = vld [vmem:[%s374 + $0xb0] sm:$0xff]
        %v6554 = vld [vmem:[%s374 + $0xb8] sm:$0xff]
        %v6555 = vld [vmem:[%s374 + $0xc0] sm:$0xff]
        %v6556 = vld [vmem:[%s374 + $0xc8] sm:$0xff]
        %v6557 = vld [vmem:[%s374 + $0xd0] sm:$0xff]
        %v6558 = vld [vmem:[%s374 + $0xd8] sm:$0xff]
        %v6559 = vld [vmem:[%s374 + $0xe0] sm:$0xff]
        %v6560 = vld [vmem:[%s374 + $0xe8] sm:$0xff]
        %v6561 = vld [vmem:[%s374 + $0xf0] sm:$0xff]
        %v6562 = vld [vmem:[%s374 + $0xf8] sm:$0xff]
        %v6563 = vld [vmem:[%s374 + $0x100] sm:$0xff]
        %v6564 = vld [vmem:[%s374 + $0x108] sm:$0xff]
        %v6565 = vld [vmem:[%s374 + $0x110] sm:$0xff]
        %v6566 = vld [vmem:[%s374 + $0x118] sm:$0xff]
        %v6567 = vld [vmem:[%s374 + $0x120] sm:$0xff]
        %v6568 = vld [vmem:[%s374 + $0x128] sm:$0xff]
        %v6569 = vld [vmem:[%s374 + $0x130] sm:$0xff]
        %v6570 = vld [vmem:[%s374 + $0x138] sm:$0xff]
        %v6571 = vld [vmem:[%s374 + $0x140] sm:$0xff]
        %v6572 = vld [vmem:[%s374 + $0x148] sm:$0xff]
        %v6573 = vld [vmem:[%s374 + $0x150] sm:$0xff]
        %v6574 = vld [vmem:[%s374 + $0x158] sm:$0xff]
        %v6575 = vld [vmem:[%s374 + $0x160] sm:$0xff]
        %v6576 = vld [vmem:[%s374 + $0x168] sm:$0xff]
        %v6577 = vld [vmem:[%s374 + $0x170] sm:$0xff]
        %v6578 = vld [vmem:[%s374 + $0x178] sm:$0xff]
        %v6579 = vld [vmem:[%s374 + $0x180] sm:$0xff]
        %v6580 = vld [vmem:[%s374 + $0x188] sm:$0xff]
        %v6581 = vld [vmem:[%s374 + $0x190] sm:$0xff]
        %v6582 = vld [vmem:[%s374 + $0x198] sm:$0xff]
        %v6583 = vld [vmem:[%s374 + $0x1a0] sm:$0xff]
        %v6584 = vld [vmem:[%s374 + $0x1a8] sm:$0xff]
        %v6585 = vld [vmem:[%s374 + $0x1b0] sm:$0xff]
        %v6586 = vld [vmem:[%s374 + $0x1b8] sm:$0xff]
        %v6587 = vld [vmem:[%s374 + $0x1c0] sm:$0xff]
        %v6588 = vld [vmem:[%s374 + $0x1c8] sm:$0xff]
        %v6589 = vld [vmem:[%s374 + $0x1d0] sm:$0xff]
        %v6590 = vld [vmem:[%s374 + $0x1d8] sm:$0xff]
        %v6591 = vld [vmem:[%s374 + $0x1e0] sm:$0xff]
        %v6592 = vld [vmem:[%s374 + $0x1e8] sm:$0xff]
        %v6593 = vld [vmem:[%s374 + $0x1f0] sm:$0xff]
        %v6594 = vld [vmem:[%s374 + $0x1f8] sm:$0xff]
        %s6595 = scalar_lea.vmem %s441, 6
        %v6596 = vld [vmem:[%s6595] ss:$8 sm:$0x3]
        %v6598 = vlaneseq
        %v6599 = vshrl.u32 %v6598, 7
        %v6600 = vsub.s32 0, %v6599
        %v6601 = vrot.slane %v6596, %v6600
        %v6602 = vlaneseq
        %v6603 = vshrl.u32 %v6602, 7
        %v6604 = vsub.s32 1, %v6603
        %v6605 = vrot.slane %v6596, %v6604
        %v6672 = vunpack.c.l.b16 %v6531
        %v6673 = vunpack.c.h.b16 %v6531
        %v6674 = vunpack.c.l.b16 %v6532
        %v6675 = vunpack.c.h.b16 %v6532
        %v6676 = vunpack.c.l.b16 %v6533
        %v6677 = vunpack.c.h.b16 %v6533
        %v6678 = vunpack.c.l.b16 %v6534
        %v6679 = vunpack.c.h.b16 %v6534
        %v6680 = vunpack.c.l.b16 %v6535
        %v6681 = vunpack.c.h.b16 %v6535
        %v6682 = vunpack.c.l.b16 %v6536
        %v6683 = vunpack.c.h.b16 %v6536
        %v6684 = vunpack.c.l.b16 %v6537
        %v6685 = vunpack.c.h.b16 %v6537
        %v6686 = vunpack.c.l.b16 %v6538
        %v6687 = vunpack.c.h.b16 %v6538
        %v6688 = vunpack.c.l.b16 %v6539
        %v6689 = vunpack.c.h.b16 %v6539
        %v6690 = vunpack.c.l.b16 %v6540
        %v6691 = vunpack.c.h.b16 %v6540
        %v6692 = vunpack.c.l.b16 %v6541
        %v6693 = vunpack.c.h.b16 %v6541
        %v6694 = vunpack.c.l.b16 %v6542
        %v6695 = vunpack.c.h.b16 %v6542
        %v6696 = vunpack.c.l.b16 %v6543
        %v6697 = vunpack.c.h.b16 %v6543
        %v6698 = vunpack.c.l.b16 %v6544
        %v6699 = vunpack.c.h.b16 %v6544
        %v6700 = vunpack.c.l.b16 %v6545
        %v6701 = vunpack.c.h.b16 %v6545
        %v6702 = vunpack.c.l.b16 %v6546
        %v6703 = vunpack.c.h.b16 %v6546
        %v6704 = vunpack.c.l.b16 %v6547
        %v6705 = vunpack.c.h.b16 %v6547
        %v6706 = vunpack.c.l.b16 %v6548
        %v6707 = vunpack.c.h.b16 %v6548
        %v6708 = vunpack.c.l.b16 %v6549
        %v6709 = vunpack.c.h.b16 %v6549
        %v6710 = vunpack.c.l.b16 %v6550
        %v6711 = vunpack.c.h.b16 %v6550
        %v6712 = vunpack.c.l.b16 %v6551
        %v6713 = vunpack.c.h.b16 %v6551
        %v6714 = vunpack.c.l.b16 %v6552
        %v6715 = vunpack.c.h.b16 %v6552
        %v6716 = vunpack.c.l.b16 %v6553
        %v6717 = vunpack.c.h.b16 %v6553
        %v6718 = vunpack.c.l.b16 %v6554
        %v6719 = vunpack.c.h.b16 %v6554
        %v6720 = vunpack.c.l.b16 %v6555
        %v6721 = vunpack.c.h.b16 %v6555
        %v6722 = vunpack.c.l.b16 %v6556
        %v6723 = vunpack.c.h.b16 %v6556
        %v6724 = vunpack.c.l.b16 %v6557
        %v6725 = vunpack.c.h.b16 %v6557
        %v6726 = vunpack.c.l.b16 %v6558
        %v6727 = vunpack.c.h.b16 %v6558
        %v6728 = vunpack.c.l.b16 %v6559
        %v6729 = vunpack.c.h.b16 %v6559
        %v6730 = vunpack.c.l.b16 %v6560
        %v6731 = vunpack.c.h.b16 %v6560
        %v6732 = vunpack.c.l.b16 %v6561
        %v6733 = vunpack.c.h.b16 %v6561
        %v6734 = vunpack.c.l.b16 %v6562
        %v6735 = vunpack.c.h.b16 %v6562
        %v6736 = vunpack.c.l.b16 %v6563
        %v6737 = vunpack.c.h.b16 %v6563
        %v6738 = vunpack.c.l.b16 %v6564
        %v6739 = vunpack.c.h.b16 %v6564
        %v6740 = vunpack.c.l.b16 %v6565
        %v6741 = vunpack.c.h.b16 %v6565
        %v6742 = vunpack.c.l.b16 %v6566
        %v6743 = vunpack.c.h.b16 %v6566
        %v6744 = vunpack.c.l.b16 %v6567
        %v6745 = vunpack.c.h.b16 %v6567
        %v6746 = vunpack.c.l.b16 %v6568
        %v6747 = vunpack.c.h.b16 %v6568
        %v6748 = vunpack.c.l.b16 %v6569
        %v6749 = vunpack.c.h.b16 %v6569
        %v6750 = vunpack.c.l.b16 %v6570
        %v6751 = vunpack.c.h.b16 %v6570
        %v6752 = vunpack.c.l.b16 %v6571
        %v6753 = vunpack.c.h.b16 %v6571
        %v6754 = vunpack.c.l.b16 %v6572
        %v6755 = vunpack.c.h.b16 %v6572
        %v6756 = vunpack.c.l.b16 %v6573
        %v6757 = vunpack.c.h.b16 %v6573
        %v6758 = vunpack.c.l.b16 %v6574
        %v6759 = vunpack.c.h.b16 %v6574
        %v6760 = vunpack.c.l.b16 %v6575
        %v6761 = vunpack.c.h.b16 %v6575
        %v6762 = vunpack.c.l.b16 %v6576
        %v6763 = vunpack.c.h.b16 %v6576
        %v6764 = vunpack.c.l.b16 %v6577
        %v6765 = vunpack.c.h.b16 %v6577
        %v6766 = vunpack.c.l.b16 %v6578
        %v6767 = vunpack.c.h.b16 %v6578
        %v6768 = vunpack.c.l.b16 %v6579
        %v6769 = vunpack.c.h.b16 %v6579
        %v6770 = vunpack.c.l.b16 %v6580
        %v6771 = vunpack.c.h.b16 %v6580
        %v6772 = vunpack.c.l.b16 %v6581
        %v6773 = vunpack.c.h.b16 %v6581
        %v6774 = vunpack.c.l.b16 %v6582
        %v6775 = vunpack.c.h.b16 %v6582
        %v6776 = vunpack.c.l.b16 %v6583
        %v6777 = vunpack.c.h.b16 %v6583
        %v6778 = vunpack.c.l.b16 %v6584
        %v6779 = vunpack.c.h.b16 %v6584
        %v6780 = vunpack.c.l.b16 %v6585
        %v6781 = vunpack.c.h.b16 %v6585
        %v6782 = vunpack.c.l.b16 %v6586
        %v6783 = vunpack.c.h.b16 %v6586
        %v6784 = vunpack.c.l.b16 %v6587
        %v6785 = vunpack.c.h.b16 %v6587
        %v6786 = vunpack.c.l.b16 %v6588
        %v6787 = vunpack.c.h.b16 %v6588
        %v6788 = vunpack.c.l.b16 %v6589
        %v6789 = vunpack.c.h.b16 %v6589
        %v6790 = vunpack.c.l.b16 %v6590
        %v6791 = vunpack.c.h.b16 %v6590
        %v6792 = vunpack.c.l.b16 %v6591
        %v6793 = vunpack.c.h.b16 %v6591
        %v6794 = vunpack.c.l.b16 %v6592
        %v6795 = vunpack.c.h.b16 %v6592
        %v6796 = vunpack.c.l.b16 %v6593
        %v6797 = vunpack.c.h.b16 %v6593
        %v6798 = vunpack.c.l.b16 %v6594
        %v6799 = vunpack.c.h.b16 %v6594
        %v6800 = vpack.c.b16 %v6674, %v6672
        %v6801 = vpack.c.b16 %v6675, %v6673
        %v6802 = vpack.c.b16 %v6678, %v6676
        %v6803 = vpack.c.b16 %v6679, %v6677
        %v6804 = vpack.c.b16 %v6682, %v6680
        %v6805 = vpack.c.b16 %v6683, %v6681
        %v6806 = vpack.c.b16 %v6686, %v6684
        %v6807 = vpack.c.b16 %v6687, %v6685
        %v6808 = vpack.c.b16 %v6690, %v6688
        %v6809 = vpack.c.b16 %v6691, %v6689
        %v6810 = vpack.c.b16 %v6694, %v6692
        %v6811 = vpack.c.b16 %v6695, %v6693
        %v6812 = vpack.c.b16 %v6698, %v6696
        %v6813 = vpack.c.b16 %v6699, %v6697
        %v6814 = vpack.c.b16 %v6702, %v6700
        %v6815 = vpack.c.b16 %v6703, %v6701
        %v6816 = vpack.c.b16 %v6706, %v6704
        %v6817 = vpack.c.b16 %v6707, %v6705
        %v6818 = vpack.c.b16 %v6710, %v6708
        %v6819 = vpack.c.b16 %v6711, %v6709
        %v6820 = vpack.c.b16 %v6714, %v6712
        %v6821 = vpack.c.b16 %v6715, %v6713
        %v6822 = vpack.c.b16 %v6718, %v6716
        %v6823 = vpack.c.b16 %v6719, %v6717
        %v6824 = vpack.c.b16 %v6722, %v6720
        %v6825 = vpack.c.b16 %v6723, %v6721
        %v6826 = vpack.c.b16 %v6726, %v6724
        %v6827 = vpack.c.b16 %v6727, %v6725
        %v6828 = vpack.c.b16 %v6730, %v6728
        %v6829 = vpack.c.b16 %v6731, %v6729
        %v6830 = vpack.c.b16 %v6734, %v6732
        %v6831 = vpack.c.b16 %v6735, %v6733
        %v6832 = vpack.c.b16 %v6738, %v6736
        %v6833 = vpack.c.b16 %v6739, %v6737
        %v6834 = vpack.c.b16 %v6742, %v6740
        %v6835 = vpack.c.b16 %v6743, %v6741
        %v6836 = vpack.c.b16 %v6746, %v6744
        %v6837 = vpack.c.b16 %v6747, %v6745
        %v6838 = vpack.c.b16 %v6750, %v6748
        %v6839 = vpack.c.b16 %v6751, %v6749
        %v6840 = vpack.c.b16 %v6754, %v6752
        %v6841 = vpack.c.b16 %v6755, %v6753
        %v6842 = vpack.c.b16 %v6758, %v6756
        %v6843 = vpack.c.b16 %v6759, %v6757
        %v6844 = vpack.c.b16 %v6762, %v6760
        %v6845 = vpack.c.b16 %v6763, %v6761
        %v6846 = vpack.c.b16 %v6766, %v6764
        %v6847 = vpack.c.b16 %v6767, %v6765
        %v6848 = vpack.c.b16 %v6770, %v6768
        %v6849 = vpack.c.b16 %v6771, %v6769
        %v6850 = vpack.c.b16 %v6774, %v6772
        %v6851 = vpack.c.b16 %v6775, %v6773
        %v6852 = vpack.c.b16 %v6778, %v6776
        %v6853 = vpack.c.b16 %v6779, %v6777
        %v6854 = vpack.c.b16 %v6782, %v6780
        %v6855 = vpack.c.b16 %v6783, %v6781
        %v6856 = vpack.c.b16 %v6786, %v6784
        %v6857 = vpack.c.b16 %v6787, %v6785
        %v6858 = vpack.c.b16 %v6790, %v6788
        %v6859 = vpack.c.b16 %v6791, %v6789
        %v6860 = vpack.c.b16 %v6794, %v6792
        %v6861 = vpack.c.b16 %v6795, %v6793
        %v6862 = vpack.c.b16 %v6798, %v6796
        %v6863 = vpack.c.b16 %v6799, %v6797
        %6928 = vmatprep.subr.bf16.mxu0 %v6801
        %6929 = vmatpush1.bf16.msra.mxu0 %v6800
        %6930 = vmatprep.subr.bf16.mxu0 %v6803
        %6931 = vmatpush1.bf16.msra.mxu0 %v6802
        %6932 = vmatprep.subr.bf16.mxu0 %v6805
        %6933 = vmatpush1.bf16.msra.mxu0 %v6804
        %6934 = vmatprep.subr.bf16.mxu0 %v6807
        %6935 = vmatpush1.bf16.msra.mxu0 %v6806
        %6936 = vmatprep.subr.bf16.mxu0 %v6809
        %6937 = vmatpush1.bf16.msra.mxu0 %v6808
        %6938 = vmatprep.subr.bf16.mxu0 %v6811
        %6939 = vmatpush1.bf16.msra.mxu0 %v6810
        %6940 = vmatprep.subr.bf16.mxu0 %v6813
        %6941 = vmatpush1.bf16.msra.mxu0 %v6812
        %6942 = vmatprep.subr.bf16.mxu0 %v6815
        %6943 = vmatpush1.bf16.msra.mxu0 %v6814
        %6944 = vmatprep.subr.bf16.mxu0 %v6817
        %6945 = vmatpush1.bf16.msra.mxu0 %v6816
        %6946 = vmatprep.subr.bf16.mxu0 %v6819
        %6947 = vmatpush1.bf16.msra.mxu0 %v6818
        %6948 = vmatprep.subr.bf16.mxu0 %v6821
        %6949 = vmatpush1.bf16.msra.mxu0 %v6820
        %6950 = vmatprep.subr.bf16.mxu0 %v6823
        %6951 = vmatpush1.bf16.msra.mxu0 %v6822
        %6952 = vmatprep.subr.bf16.mxu0 %v6825
        %6953 = vmatpush1.bf16.msra.mxu0 %v6824
        %6954 = vmatprep.subr.bf16.mxu0 %v6827
        %6955 = vmatpush1.bf16.msra.mxu0 %v6826
        %6956 = vmatprep.subr.bf16.mxu0 %v6829
        %6957 = vmatpush1.bf16.msra.mxu0 %v6828
        %6958 = vmatprep.subr.bf16.mxu0 %v6831
        %6959 = vmatpush1.bf16.msra.mxu0 %v6830
        %6960 = vmatprep.mubr.bf16.mxu0 %v6528
        %6961 = vmatmul.mubr.bf16.gmra.mrb[0].mxu0 %v6527
        %v6962 = vpop.f32.mrb[0].mxu0
        %v6963 = vadd.f32 %v6601, %v6962
        %v6964 = vpop.f32.mrb[0].mxu0
        %v6965 = vadd.f32 %v6605, %v6964
        %v6966 = vpop.f32.mrb[0].mxu0
        %v6967 = vpop.f32.mrb[0].mxu0
        %6968 = vdwg.mxu0
        %6969 = vmatprep.subr.bf16.mxu0 %v6833
        %6970 = vmatpush1.bf16.msra.mxu0 %v6832
        %6971 = vmatprep.subr.bf16.mxu0 %v6835
        %6972 = vmatpush1.bf16.msra.mxu0 %v6834
        %6973 = vmatprep.subr.bf16.mxu0 %v6837
        %6974 = vmatpush1.bf16.msra.mxu0 %v6836
        %6975 = vmatprep.subr.bf16.mxu0 %v6839
        %6976 = vmatpush1.bf16.msra.mxu0 %v6838
        %6977 = vmatprep.subr.bf16.mxu0 %v6841
        %6978 = vmatpush1.bf16.msra.mxu0 %v6840
        %6979 = vmatprep.subr.bf16.mxu0 %v6843
        %6980 = vmatpush1.bf16.msra.mxu0 %v6842
        %6981 = vmatprep.subr.bf16.mxu0 %v6845
        %6982 = vmatpush1.bf16.msra.mxu0 %v6844
        %6983 = vmatprep.subr.bf16.mxu0 %v6847
        %6984 = vmatpush1.bf16.msra.mxu0 %v6846
        %6985 = vmatprep.subr.bf16.mxu0 %v6849
        %6986 = vmatpush1.bf16.msra.mxu0 %v6848
        %6987 = vmatprep.subr.bf16.mxu0 %v6851
        %6988 = vmatpush1.bf16.msra.mxu0 %v6850
        %6989 = vmatprep.subr.bf16.mxu0 %v6853
        %6990 = vmatpush1.bf16.msra.mxu0 %v6852
        %6991 = vmatprep.subr.bf16.mxu0 %v6855
        %6992 = vmatpush1.bf16.msra.mxu0 %v6854
        %6993 = vmatprep.subr.bf16.mxu0 %v6857
        %6994 = vmatpush1.bf16.msra.mxu0 %v6856
        %6995 = vmatprep.subr.bf16.mxu0 %v6859
        %6996 = vmatpush1.bf16.msra.mxu0 %v6858
        %6997 = vmatprep.subr.bf16.mxu0 %v6861
        %6998 = vmatpush1.bf16.msra.mxu0 %v6860
        %6999 = vmatprep.subr.bf16.mxu0 %v6863
        %7000 = vmatpush1.bf16.msra.mxu0 %v6862
        %7001 = vmatprep.mubr.bf16.mxu0 %v6530
        %7002 = vmatmul.mubr.bf16.gmra.mrb[0].mxu0 %v6529
        %v7003 = vpop.f32.mrb[0].mxu0
        %v7004 = vadd.f32 %v6963, %v7003
        %v7005 = vpop.f32.mrb[0].mxu0
        %v7006 = vadd.f32 %v6965, %v7005
        %v7007 = vpop.f32.mrb[0].mxu0
        %v7008 = vpop.f32.mrb[0].mxu0
        %7009 = vdwg.mxu0
        %v7010 = vmax.f32 %v7004, 0.0
        %v7011 = vmax.f32 %v7006, 0.0
        %s7012 = scalar_lea.vmem %s441, 7
        %v7013 = vld [vmem:[%s7012] ss:$8 sm:$0x3]
        %s7014 = scalar_lea.vmem %s441, 64
        %v7015 = vld [vmem:[%s7014] ss:$8 sm:$0x3]
        %v7016 = vrot.slane %v7010, 4
        %v7017 = vadd.f32 %v7010, %v7016
        %v7018 = vrot.slane %v7017, 2
        %v7019 = vadd.f32 %v7017, %v7018
        %v7020 = vrot.slane %v7019, 1
        %v7021 = vadd.f32 %v7019, %v7020
        %v7022 = vrot.slane %v7011, 4
        %v7023 = vadd.f32 %v7011, %v7022
        %v7024 = vrot.slane %v7023, 2
        %v7025 = vadd.f32 %v7023, %v7024
        %v7026 = vrot.slane %v7025, 1
        %v7027 = vadd.f32 %v7025, %v7026
        %v7028 = vmul.f32 %v7021, %v4295
        %v7029 = vmul.f32 %v7027, %v4295
        %v7030 = vsub.f32 %v7010, %v7028
        %v7031 = vsub.f32 %v7011, %v7029
        %v7032 = vmul.f32 %v7030, %v7030
        %v7033 = vmul.f32 %v7031, %v7031
        %v7034 = vrot.slane %v7032, 4
        %v7035 = vadd.f32 %v7032, %v7034
        %v7036 = vrot.slane %v7035, 2
        %v7037 = vadd.f32 %v7035, %v7036
        %v7038 = vrot.slane %v7037, 1
        %v7039 = vadd.f32 %v7037, %v7038
        %v7040 = vrot.slane %v7033, 4
        %v7041 = vadd.f32 %v7033, %v7040
        %v7042 = vrot.slane %v7041, 2
        %v7043 = vadd.f32 %v7041, %v7042
        %v7044 = vrot.slane %v7043, 1
        %v7045 = vadd.f32 %v7043, %v7044
        %v7046 = vmul.f32 %v7039, %v4295
        %v7047 = vmul.f32 %v7045, %v4295
        %v7048 = vadd.f32 %v7046, 1e-05
        %v7049 = vadd.f32 %v7047, 1e-05
        %v7050 = vrsqrt.pop %v7048
        %v7051 = vrsqrt.pop %v7049
        %v7052 = vmul.f32 %v7030, %v7050
        %v7053 = vmul.f32 %v7031, %v7051
        %v7055 = vlaneseq
        %v7056 = vshrl.u32 %v7055, 7
        %v7057 = vsub.s32 0, %v7056
        %v7058 = vrot.slane %v7013, %v7057
        %v7059 = vlaneseq
        %v7060 = vshrl.u32 %v7059, 7
        %v7061 = vsub.s32 1, %v7060
        %v7062 = vrot.slane %v7013, %v7061
        %v7065 = vmul.f32 %v7052, %v7058
        %v7066 = vmul.f32 %v7053, %v7062
        %v7068 = vlaneseq
        %v7069 = vshrl.u32 %v7068, 7
        %v7070 = vsub.s32 0, %v7069
        %v7071 = vrot.slane %v7015, %v7070
        %v7072 = vlaneseq
        %v7073 = vshrl.u32 %v7072, 7
        %v7074 = vsub.s32 1, %v7073
        %v7075 = vrot.slane %v7015, %v7074
        %v7078 = vadd.f32 %v7065, %v7071
        %v7079 = vadd.f32 %v7066, %v7075
        %v7080 = vpack.c.bf16 %v7078, %v7078
        %v7081 = vpack.c.bf16 %v7079, %v7079
        %v7082 = vld [vmem:[%s383] sm:$0xf]
        %v7083 = vld [vmem:[%s383 + $0x4] sm:$0xf]
        %v7084 = vld [vmem:[%s383 + $0x8] sm:$0xf]
        %v7085 = vld [vmem:[%s383 + $0xc] sm:$0xf]
        %v7086 = vld [vmem:[%s383 + $0x10] sm:$0xf]
        %v7087 = vld [vmem:[%s383 + $0x14] sm:$0xf]
        %v7088 = vld [vmem:[%s383 + $0x18] sm:$0xf]
        %v7089 = vld [vmem:[%s383 + $0x1c] sm:$0xf]
        %v7090 = vld [vmem:[%s383 + $0x20] sm:$0xf]
        %v7091 = vld [vmem:[%s383 + $0x24] sm:$0xf]
        %v7092 = vld [vmem:[%s383 + $0x28] sm:$0xf]
        %v7093 = vld [vmem:[%s383 + $0x2c] sm:$0xf]
        %v7094 = vld [vmem:[%s383 + $0x30] sm:$0xf]
        %v7095 = vld [vmem:[%s383 + $0x34] sm:$0xf]
        %v7096 = vld [vmem:[%s383 + $0x38] sm:$0xf]
        %v7097 = vld [vmem:[%s383 + $0x3c] sm:$0xf]
        %v7098 = vld [vmem:[%s383 + $0x40] sm:$0xf]
        %v7099 = vld [vmem:[%s383 + $0x44] sm:$0xf]
        %v7100 = vld [vmem:[%s383 + $0x48] sm:$0xf]
        %v7101 = vld [vmem:[%s383 + $0x4c] sm:$0xf]
        %v7102 = vld [vmem:[%s383 + $0x50] sm:$0xf]
        %v7103 = vld [vmem:[%s383 + $0x54] sm:$0xf]
        %v7104 = vld [vmem:[%s383 + $0x58] sm:$0xf]
        %v7105 = vld [vmem:[%s383 + $0x5c] sm:$0xf]
        %v7106 = vld [vmem:[%s383 + $0x60] sm:$0xf]
        %v7107 = vld [vmem:[%s383 + $0x64] sm:$0xf]
        %v7108 = vld [vmem:[%s383 + $0x68] sm:$0xf]
        %v7109 = vld [vmem:[%s383 + $0x6c] sm:$0xf]
        %v7110 = vld [vmem:[%s383 + $0x70] sm:$0xf]
        %v7111 = vld [vmem:[%s383 + $0x74] sm:$0xf]
        %v7112 = vld [vmem:[%s383 + $0x78] sm:$0xf]
        %v7113 = vld [vmem:[%s383 + $0x7c] sm:$0xf]
        %v7146 = vunpack.c.l.b16 %v7082
        %v7147 = vunpack.c.l.b16 %v7083
        %v7148 = vunpack.c.l.b16 %v7084
        %v7149 = vunpack.c.l.b16 %v7085
        %v7150 = vunpack.c.l.b16 %v7086
        %v7151 = vunpack.c.l.b16 %v7087
        %v7152 = vunpack.c.l.b16 %v7088
        %v7153 = vunpack.c.l.b16 %v7089
        %v7154 = vunpack.c.l.b16 %v7090
        %v7155 = vunpack.c.l.b16 %v7091
        %v7156 = vunpack.c.l.b16 %v7092
        %v7157 = vunpack.c.l.b16 %v7093
        %v7158 = vunpack.c.l.b16 %v7094
        %v7159 = vunpack.c.l.b16 %v7095
        %v7160 = vunpack.c.l.b16 %v7096
        %v7161 = vunpack.c.l.b16 %v7097
        %v7162 = vunpack.c.l.b16 %v7098
        %v7163 = vunpack.c.l.b16 %v7099
        %v7164 = vunpack.c.l.b16 %v7100
        %v7165 = vunpack.c.l.b16 %v7101
        %v7166 = vunpack.c.l.b16 %v7102
        %v7167 = vunpack.c.l.b16 %v7103
        %v7168 = vunpack.c.l.b16 %v7104
        %v7169 = vunpack.c.l.b16 %v7105
        %v7170 = vunpack.c.l.b16 %v7106
        %v7171 = vunpack.c.l.b16 %v7107
        %v7172 = vunpack.c.l.b16 %v7108
        %v7173 = vunpack.c.l.b16 %v7109
        %v7174 = vunpack.c.l.b16 %v7110
        %v7175 = vunpack.c.l.b16 %v7111
        %v7176 = vunpack.c.l.b16 %v7112
        %v7177 = vunpack.c.l.b16 %v7113
        %v7178 = vpack.c.b16 %v7147, %v7146
        %v7179 = vpack.c.b16 %v7149, %v7148
        %v7180 = vpack.c.b16 %v7151, %v7150
        %v7181 = vpack.c.b16 %v7153, %v7152
        %v7182 = vpack.c.b16 %v7155, %v7154
        %v7183 = vpack.c.b16 %v7157, %v7156
        %v7184 = vpack.c.b16 %v7159, %v7158
        %v7185 = vpack.c.b16 %v7161, %v7160
        %v7186 = vpack.c.b16 %v7163, %v7162
        %v7187 = vpack.c.b16 %v7165, %v7164
        %v7188 = vpack.c.b16 %v7167, %v7166
        %v7189 = vpack.c.b16 %v7169, %v7168
        %v7190 = vpack.c.b16 %v7171, %v7170
        %v7191 = vpack.c.b16 %v7173, %v7172
        %v7192 = vpack.c.b16 %v7175, %v7174
        %v7193 = vpack.c.b16 %v7177, %v7176
        %7210 = vmatprep.subr.bf16.mxu0 0
        %7211 = vmatpush1.bf16.msra.mxu0 %v7178
        %7212 = vmatprep.subr.bf16.mxu0 0
        %7213 = vmatpush1.bf16.msra.mxu0 %v7179
        %7214 = vmatprep.subr.bf16.mxu0 0
        %7215 = vmatpush1.bf16.msra.mxu0 %v7180
        %7216 = vmatprep.subr.bf16.mxu0 0
        %7217 = vmatpush1.bf16.msra.mxu0 %v7181
        %7218 = vmatprep.subr.bf16.mxu0 0
        %7219 = vmatpush1.bf16.msra.mxu0 %v7182
        %7220 = vmatprep.subr.bf16.mxu0 0
        %7221 = vmatpush1.bf16.msra.mxu0 %v7183
        %7222 = vmatprep.subr.bf16.mxu0 0
        %7223 = vmatpush1.bf16.msra.mxu0 %v7184
        %7224 = vmatprep.subr.bf16.mxu0 0
        %7225 = vmatpush1.bf16.msra.mxu0 %v7185
        %7226 = vmatprep.subr.bf16.mxu0 0
        %7227 = vmatpush1.bf16.msra.mxu0 %v7186
        %7228 = vmatprep.subr.bf16.mxu0 0
        %7229 = vmatpush1.bf16.msra.mxu0 %v7187
        %7230 = vmatprep.subr.bf16.mxu0 0
        %7231 = vmatpush1.bf16.msra.mxu0 %v7188
        %7232 = vmatprep.subr.bf16.mxu0 0
        %7233 = vmatpush1.bf16.msra.mxu0 %v7189
        %7234 = vmatprep.subr.bf16.mxu0 0
        %7235 = vmatpush1.bf16.msra.mxu0 %v7190
        %7236 = vmatprep.subr.bf16.mxu0 0
        %7237 = vmatpush1.bf16.msra.mxu0 %v7191
        %7238 = vmatprep.subr.bf16.mxu0 0
        %7239 = vmatpush1.bf16.msra.mxu0 %v7192
        %7240 = vmatprep.subr.bf16.mxu0 0
        %7241 = vmatpush1.bf16.msra.mxu0 %v7193
        %7242 = vmatprep.mubr.bf16.mxu0 %v7081
        %7243 = vmatmul.mubr.bf16.gmra.mrb[0].mxu0 %v7080
        %v7244 = vpop.f32.mrb[0].mxu0
        %v7245 = vadd.f32 0.0, %v7244
        %v7246 = vpop.f32.mrb[0].mxu0
        %v7247 = vpop.f32.mrb[0].mxu0
        %v7248 = vpop.f32.mrb[0].mxu0
        %7249 = vdwg.mxu0
        %v7250 = vld [vmem:[%s441 + $0x42] ss:$0 sm:$0xff]
        %v7251 = vld [vmem:[%s441 + $0x43] ss:$0 sm:$0xff]
        %v7252 = vrot.slane %v7245, 4
        %v7253 = vadd.f32 %v7245, %v7252
        %v7254 = vrot.slane %v7253, 2
        %v7255 = vadd.f32 %v7253, %v7254
        %v7256 = vrot.slane %v7255, 1
        %v7257 = vadd.f32 %v7255, %v7256
        %v7258 = vmul.f32 %v7257, %v4295
        %v7259 = vsub.f32 %v7245, %v7258
        %v7260 = vmul.f32 %v7259, %v7259
        %v7261 = vrot.slane %v7260, 4
        %v7262 = vadd.f32 %v7260, %v7261
        %v7263 = vrot.slane %v7262, 2
        %v7264 = vadd.f32 %v7262, %v7263
        %v7265 = vrot.slane %v7264, 1
        %v7266 = vadd.f32 %v7264, %v7265
        %v7267 = vmul.f32 %v7266, %v4295
        %v7268 = vadd.f32 %v7267, 1e-05
        %v7269 = vrsqrt.pop %v7268
        %v7270 = vmul.f32 %v7259, %v7269
        %v7271 = vmul.f32 %v7270, %v7250
        %v7272 = vadd.f32 %v7271, %v7251
        %7273 = vst [vmem:[%s436] sm:$0xff] %v7272
        %s7274 = sand.u32 %s193, 1
        %s7275 = scalar_lea.sflag [#allocation4], %s7274
        %s7276 = sand.u32 %s193, 1
        %s7277 = smul.addr %s7276, 8
        %s7278 = scalar_lea.vmem [#allocation11], %s7277
        // Predicated region
        $region65: #{tpu_custom_call.1} parent=43 // pred_check
          %p7279 = pneg %p203
        $region66: #{tpu_custom_call.1} parent=43 // pred_check_branch
          %7281 = sbr.rel (%p7279) target = $region68
        $region67: #{tpu_custom_call.1} parent=43 // pred_region
          %s7283 = ssub.s32 128, 128
          %7284 = vsyncadd %s7275, %s7283
          %s7285 = smul.addr %s29, 128
          %s7286 = scalar_lea.hbm %s6, %s7285
          %s7288 = sshll.u32 %s7278, 4
          %s7289 = int_to_ptr.vmem [resolvable:$true] %s7288
          %7291 = dma.vmem_to_hbm [thread:$0]  %s7289, 128, %s7286, %s7275
        $region68: #{tpu_custom_call.1} parent=43 // pred_fallthru
          _
      $region44: #{tpu_custom_call.1} parent=5 // pred_fallthru
        _
      %p7292 = scmp.le.s32.totalorder 2, %s24
      // Predicated region
      $region69: #{tpu_custom_call.1} parent=5 // pred_check
        %p7293 = pneg %p7292
      $region70: #{tpu_custom_call.1} parent=5 // pred_check_branch
        %7295 = sbr.rel (%p7293) target = $region72
      $region71: #{tpu_custom_call.1} parent=5 // pred_region
        %s7296 = ssub.s32 %s24, 2
        // Predicated region
        $region73: #{tpu_custom_call.1} parent=71 // pred_check
          %p7297 = pneg %p209
        $region74: #{tpu_custom_call.1} parent=71 // pred_check_branch
          %7299 = sbr.rel (%p7297) target = $region76
        $region75: #{tpu_custom_call.1} parent=71 // pred_region
          %s7300 = sand.u32 %s194, 1
          %s7301 = scalar_lea.sflag [#allocation4], %s7300
          %s7302 = sand.u32 %s194, 1
          %s7303 = smul.addr %s7302, 8
          %s7304 = scalar_lea.vmem [#allocation11], %s7303
          %7305 = dma.done %s7301, 128
        $region76: #{tpu_custom_call.1} parent=71 // pred_fallthru
          _
      $region72: #{tpu_custom_call.1} parent=5 // pred_fallthru
        _
    $region6: #{tpu_custom_call.1} parent=1 // loop_footer
      %s28 = sadd.s32 1, %s24
    $region7: #{tpu_custom_call.1} parent=1 // loop_footer_branch
      %23 = sbr.rel target = $region3
    $region8: #{tpu_custom_call.1} parent=1 // loop_exit
      _
    %7306 = vsyncpa [#allocation3], 1
    %s7307 = scalar_lea.sflag [#allocation3], 1
    %7308 = vsyncpa %s7307, 1
    %7309 = vsyncpa [#allocation6], 1
    %s7310 = scalar_lea.sflag [#allocation6], 1
    %7311 = vsyncpa %s7310, 1
    %7312 = vsyncpa [#allocation9], 1
    %s7313 = scalar_lea.sflag [#allocation9], 1
    %7314 = vsyncpa %s7313, 1
    %7315 = vsyncpa [#allocation4], 1
    %s7316 = scalar_lea.sflag [#allocation4], 1
    %7317 = vsyncpa %s7316, 1

</llo_original>
